<compile_context>
chip_gen: v6e
topology: v6e:2x2x1
jax: 0.10.0
libtpu: 0.0.40
codegen_flags: <defaults>
</compile_context>

<pallas_src>
import functools

import jax
import jax.numpy as jnp
from jax.experimental import pallas as pl
from jax.experimental.pallas import tpu as pltpu


# ----------------------------- config ------------------------------------- #
BATCH = 2
SEQ = 128           # sequence length (multiple of attention window)
HIDDEN = 64         # hidden size (Longformer-base is 768; small synthetic here)
NUM_HEADS = 1
HEAD_DIM = HIDDEN // NUM_HEADS
INTERMEDIATE = 128
NUM_LAYERS = 2
WINDOW = 16         # one-sided local attention window
VOCAB = 128
HEAD_HIDDEN = 512   # regression head hidden size (matches nn.Linear(H, 512))
LN_EPS = 1e-5
NEG_INF = -1e9
OUT_LANES = 128     # lane-dense output slab; scalar replicated across lanes


# --------------------------- in-kernel helpers ------------------------------ #
def _ln(x, g, b):
    mu = jnp.mean(x, axis=-1, keepdims=True)
    var = jnp.mean((x - mu) ** 2, axis=-1, keepdims=True)
    return (x - mu) * jax.lax.rsqrt(var + LN_EPS) * g + b


def _gelu(x):
    # tanh-approx GELU (HF Longformer uses erf-GELU; small numerical divergence)
    c = 0.7978845608028654  # sqrt(2/pi)
    return 0.5 * x * (1.0 + jnp.tanh(c * (x + 0.044715 * x * x * x)))


def _bf16(x):
    return x.astype(jnp.bfloat16)


# --------------------------- fused Pallas kernel ---------------------------- #
def _fused_kernel(x_ref, amask_ref, emb_g, emb_b,
                  wq, bq, wk, bk, wv, bv, wo, bo, ln1g, ln1b,
                  w1, b1, w2, b2, ln2g, ln2b,
                  hw1, hb1, hw2, hb2, out_ref):
    """One grid step = one batch example. Everything stays in VMEM/vregs."""
    S = SEQ

    x = x_ref[0]                               # (S, H) f32 summed embeddings
    x = _ln(x, emb_g[...], emb_b[...])         # embedding LayerNorm

    # --- build band + key-padding additive bias in-kernel (no (B,S,S) DMA) ---
    qi = jax.lax.broadcasted_iota(jnp.int32, (S, S), 0)
    kj = jax.lax.broadcasted_iota(jnp.int32, (S, S), 1)
    band = jnp.abs(qi - kj) <= WINDOW                      # (S, S) bool
    key_ok = amask_ref[0] > 0.5                            # (1, S) bool, broadcasts
    bias = jnp.where(band & key_ok, 0.0, NEG_INF).astype(jnp.float32)  # (S, S)

    for l in range(NUM_LAYERS):                # static unroll; weights resident in VMEM
        # --- sliding-window self-attention ---
        resid = x
        xb = _bf16(x)
        # 1/sqrt(head_dim) already folded into wq/bq at init time.
        q = jnp.dot(xb, wq[l], preferred_element_type=jnp.float32) + bq[l]   # (S, D)
        k = jnp.dot(xb, wk[l], preferred_element_type=jnp.float32) + bk[l]   # (S, D)
        v = jnp.dot(xb, wv[l], preferred_element_type=jnp.float32) + bv[l]   # (S, D)
        s = jax.lax.dot_general(_bf16(q), _bf16(k), (((1,), (1,)), ((), ())),
                                preferred_element_type=jnp.float32)          # (S, S)
        s = s + bias
        m = jnp.max(s, axis=-1, keepdims=True)
        p = jnp.exp(s - m)
        p = p * pl.reciprocal(jnp.sum(p, axis=-1, keepdims=True), approx=True)
        attn = jnp.dot(_bf16(p), _bf16(v), preferred_element_type=jnp.float32)
        attn = jnp.dot(_bf16(attn), wo[l], preferred_element_type=jnp.float32) + bo[l]
        x = _ln(resid + attn, ln1g[l], ln1b[l])

        # --- feed-forward ---
        resid = x
        h = _gelu(jnp.dot(_bf16(x), w1[l], preferred_element_type=jnp.float32) + b1[l])
        h = jnp.dot(_bf16(h), w2[l], preferred_element_type=jnp.float32) + b2[l]
        x = _ln(resid + h, ln2g[l], ln2b[l])

    # --- regression head, fused (pooled = hidden state of token 0) ---
    pooled = x[0:1, :]                                                        # (1, H)
    h = jnp.dot(_bf16(pooled), hw1[...], preferred_element_type=jnp.float32) + hb1[...]
    h = jnp.maximum(h, 0.0)                    # ReLU; Dropout(0.3) is identity in eval
    # (1,512)x(512,1) matmul replaced by VPU multiply + lane reduce.
    o = jnp.sum(h * hw2[...].astype(jnp.float32), axis=-1, keepdims=True) + hb2[...]
    out_ref[0] = jnp.broadcast_to(o, (1, OUT_LANES))


def fused_forward(params, x_emb, attn_mask_row):
    """x_emb: (B, S, H) f32 summed embeddings; attn_mask_row: (B, 1, S) f32 (1=keep)."""
    B, S, H = x_emb.shape
    L, I = NUM_LAYERS, INTERMEDIATE

    # Grid-invariant weight blocks (whole array, same block for every grid step).
    full3 = lambda shape: pl.BlockSpec(shape, lambda b: (0, 0, 0))
    full2 = lambda shape: pl.BlockSpec(shape, lambda b: (0, 0))

    out = pl.pallas_call(
        _fused_kernel,
        out_shape=jax.ShapeDtypeStruct((B, 1, OUT_LANES), jnp.float32),
        grid=(B,),
        in_specs=[
            pl.BlockSpec((1, S, H), lambda b: (b, 0, 0)),   # x_emb (per-example)
            pl.BlockSpec((1, 1, S), lambda b: (b, 0, 0)),   # attention mask row
            full2((1, H)),                                  # emb_ln_g
            full2((1, H)),                                  # emb_ln_b
            full3((L, H, H)),                               # wq (scale folded, bf16)
            full3((L, 1, H)),                               # bq
            full3((L, H, H)),                               # wk (bf16)
            full3((L, 1, H)),                               # bk
            full3((L, H, H)),                               # wv (bf16)
            full3((L, 1, H)),                               # bv
            full3((L, H, H)),                               # wo (bf16)
            full3((L, 1, H)),                               # bo
            full3((L, 1, H)),                               # ln1_g
            full3((L, 1, H)),                               # ln1_b
            full3((L, H, I)),                               # w1 (bf16)
            full3((L, 1, I)),                               # b1
            full3((L, I, H)),                               # w2 (bf16)
            full3((L, 1, H)),                               # b2
            full3((L, 1, H)),                               # ln2_g
            full3((L, 1, H)),                               # ln2_b
            full2((H, HEAD_HIDDEN)),                        # head_w1 (bf16)
            full2((1, HEAD_HIDDEN)),                        # head_b1
            full2((1, HEAD_HIDDEN)),                        # head_w2 (row vector, bf16)
            full2((1, 1)),                                  # head_b2
        ],
        out_specs=pl.BlockSpec((1, 1, OUT_LANES), lambda b: (b, 0, 0)),
        compiler_params=pltpu.CompilerParams(
            dimension_semantics=("parallel",)),             # batch across TCs on v7x
    )(x_emb, attn_mask_row,
      params["emb_ln_g"], params["emb_ln_b"],
      params["wq"], params["bq"], params["wk"], params["bk"],
      params["wv"], params["bv"], params["wo"], params["bo"],
      params["ln1_g"], params["ln1_b"],
      params["w1"], params["b1"], params["w2"], params["b2"],
      params["ln2_g"], params["ln2_b"],
      params["head_w1"], params["head_b1"], params["head_w2"], params["head_b2"])
    return out[:, 0, 0]                                     # (B,)


# --------------------------- parameter init -------------------------------- #
def _init_params(key):
    def nrm(k, shape, std=0.02):
        return std * jax.random.normal(k, shape, dtype=jnp.float32)

    ks = iter(jax.random.split(key, 64))
    L, H, I = NUM_LAYERS, HIDDEN, INTERMEDIATE
    scale = 1.0 / (HEAD_DIM ** 0.5)
    bf = jnp.bfloat16
    return {
        # embeddings (gathered in plain JAX, kept f32)
        "word_emb": nrm(next(ks), (VOCAB, H)),
        "pos_emb": nrm(next(ks), (SEQ, H)),
        "type_emb": nrm(next(ks), (1, H)),
        "emb_ln_g": jnp.ones((1, H), jnp.float32),
        "emb_ln_b": jnp.zeros((1, H), jnp.float32),
        # encoder weights: bf16 matmul operands, f32 biases / LN params.
        # 1/sqrt(head_dim) folded into Q weights+bias at init time.
        "wq": (nrm(next(ks), (L, H, H)) * scale).astype(bf),
        "bq": jnp.zeros((L, 1, H), jnp.float32) * scale,
        "wk": nrm(next(ks), (L, H, H)).astype(bf),
        "bk": jnp.zeros((L, 1, H), jnp.float32),
        "wv": nrm(next(ks), (L, H, H)).astype(bf),
        "bv": jnp.zeros((L, 1, H), jnp.float32),
        "wo": nrm(next(ks), (L, H, H)).astype(bf),
        "bo": jnp.zeros((L, 1, H), jnp.float32),
        "ln1_g": jnp.ones((L, 1, H), jnp.float32),
        "ln1_b": jnp.zeros((L, 1, H), jnp.float32),
        "w1": nrm(next(ks), (L, H, I)).astype(bf),
        "b1": jnp.zeros((L, 1, I), jnp.float32),
        "w2": nrm(next(ks), (L, I, H)).astype(bf),
        "b2": jnp.zeros((L, 1, H), jnp.float32),
        "ln2_g": jnp.ones((L, 1, H), jnp.float32),
        "ln2_b": jnp.zeros((L, 1, H), jnp.float32),
        # regression head
        "head_w1": nrm(next(ks), (H, HEAD_HIDDEN)).astype(bf),
        "head_b1": jnp.zeros((1, HEAD_HIDDEN), jnp.float32),
        "head_w2": nrm(next(ks), (1, HEAD_HIDDEN)).astype(bf),   # row vector (see kernel)
        "head_b2": jnp.zeros((1, 1), jnp.float32),
    }


# ------------------------------ forward ------------------------------------ #
def single_head_longformer_forward(params, input_ids, attention_mask):
    B, S = input_ids.shape

    # --- embeddings (gather is glue; no checkpoint loading possible) ---
    # TODO(synk): pretrained allenai/longformer-base-4096 weights cannot be loaded
    # in-script; synthetic deterministically-initialized weights are used instead.
    x = (params["word_emb"][input_ids]
         + params["pos_emb"][jnp.arange(S)][None, :, :]
         + params["type_emb"][0][None, None, :]).astype(jnp.float32)   # (B, S, H)

    # --- key-padding mask as a tiny (B, 1, S) f32 row; band built in-kernel ---
    attn_mask_row = attention_mask.astype(jnp.float32)[:, None, :]

    # --- fully fused encoder + regression head (single pallas_call) ---
    return fused_forward(params, x, attn_mask_row)                      # (B,)


# -------------------------------- main -------------------------------------- #
if __name__ == "__main__":
    key = jax.random.PRNGKey(0)
    k_params, k_ids = jax.random.split(key)

    params = _init_params(k_params)

    input_ids = jax.random.randint(k_ids, (BATCH, SEQ), 0, VOCAB, dtype=jnp.int32)
    attention_mask = jnp.ones((BATCH, SEQ), dtype=jnp.int32)
    attention_mask = attention_mask.at[1, 100:].set(0)   # pad tail of 2nd example

    fwd = jax.jit(functools.partial(single_head_longformer_forward, params))
    decade_prediction = fwd(input_ids, attention_mask)
    jax.block_until_ready(decade_prediction)

    assert decade_prediction.shape == (BATCH,)
    assert bool(jnp.all(jnp.isfinite(decade_prediction)))
    print("KERNEL_OK")
</pallas_src>

<mosaic_0001>
module attributes {stable_mosaic.version = 11 : i64} {
  func.func @_fused_kernel(%arg0: i32, %arg1: memref<1x128x64xf32, #tpu.memory_space<vmem>>, %arg2: memref<1x1x128xf32, #tpu.memory_space<vmem>>, %arg3: memref<1x64xf32, #tpu.memory_space<vmem>>, %arg4: memref<1x64xf32, #tpu.memory_space<vmem>>, %arg5: memref<2x64x64xbf16, #tpu.memory_space<vmem>>, %arg6: memref<2x1x64xf32, #tpu.memory_space<vmem>>, %arg7: memref<2x64x64xbf16, #tpu.memory_space<vmem>>, %arg8: memref<2x1x64xf32, #tpu.memory_space<vmem>>, %arg9: memref<2x64x64xbf16, #tpu.memory_space<vmem>>, %arg10: memref<2x1x64xf32, #tpu.memory_space<vmem>>, %arg11: memref<2x64x64xbf16, #tpu.memory_space<vmem>>, %arg12: memref<2x1x64xf32, #tpu.memory_space<vmem>>, %arg13: memref<2x1x64xf32, #tpu.memory_space<vmem>>, %arg14: memref<2x1x64xf32, #tpu.memory_space<vmem>>, %arg15: memref<2x64x128xbf16, #tpu.memory_space<vmem>>, %arg16: memref<2x1x128xf32, #tpu.memory_space<vmem>>, %arg17: memref<2x128x64xbf16, #tpu.memory_space<vmem>>, %arg18: memref<2x1x64xf32, #tpu.memory_space<vmem>>, %arg19: memref<2x1x64xf32, #tpu.memory_space<vmem>>, %arg20: memref<2x1x64xf32, #tpu.memory_space<vmem>>, %arg21: memref<64x512xbf16, #tpu.memory_space<vmem>>, %arg22: memref<1x512xf32, #tpu.memory_space<vmem>>, %arg23: memref<1x512xbf16, #tpu.memory_space<vmem>>, %arg24: memref<1x1xf32, #tpu.memory_space<vmem>>, %arg25: memref<1x1x128xf32, #tpu.memory_space<vmem>>) attributes {dimension_semantics = [#tpu.dimension_semantics<parallel>], iteration_bounds = array<i64: 2>, scalar_prefetch = 0 : i64, scratch_operands = 0 : i64, tpu.core_type = #tpu.core_type<tc>, window_params = [{transform_indices = @transform_0, window_bounds = array<i64: 1, 128, 64>}, {transform_indices = @transform_1, window_bounds = array<i64: 1, 1, 128>}, {pipeline_mode = #tpu.pipeline_mode<synchronous>, transform_indices = @transform_2, window_bounds = array<i64: 1, 64>}, {pipeline_mode = #tpu.pipeline_mode<synchronous>, transform_indices = @transform_3, window_bounds = array<i64: 1, 64>}, {pipeline_mode = #tpu.pipeline_mode<synchronous>, transform_indices = @transform_4, window_bounds = array<i64: 2, 64, 64>}, {pipeline_mode = #tpu.pipeline_mode<synchronous>, transform_indices = @transform_5, window_bounds = array<i64: 2, 1, 64>}, {pipeline_mode = #tpu.pipeline_mode<synchronous>, transform_indices = @transform_6, window_bounds = array<i64: 2, 64, 64>}, {pipeline_mode = #tpu.pipeline_mode<synchronous>, transform_indices = @transform_7, window_bounds = array<i64: 2, 1, 64>}, {pipeline_mode = #tpu.pipeline_mode<synchronous>, transform_indices = @transform_8, window_bounds = array<i64: 2, 64, 64>}, {pipeline_mode = #tpu.pipeline_mode<synchronous>, transform_indices = @transform_9, window_bounds = array<i64: 2, 1, 64>}, {pipeline_mode = #tpu.pipeline_mode<synchronous>, transform_indices = @transform_10, window_bounds = array<i64: 2, 64, 64>}, {pipeline_mode = #tpu.pipeline_mode<synchronous>, transform_indices = @transform_11, window_bounds = array<i64: 2, 1, 64>}, {pipeline_mode = #tpu.pipeline_mode<synchronous>, transform_indices = @transform_12, window_bounds = array<i64: 2, 1, 64>}, {pipeline_mode = #tpu.pipeline_mode<synchronous>, transform_indices = @transform_13, window_bounds = array<i64: 2, 1, 64>}, {pipeline_mode = #tpu.pipeline_mode<synchronous>, transform_indices = @transform_14, window_bounds = array<i64: 2, 64, 128>}, {pipeline_mode = #tpu.pipeline_mode<synchronous>, transform_indices = @transform_15, window_bounds = array<i64: 2, 1, 128>}, {pipeline_mode = #tpu.pipeline_mode<synchronous>, transform_indices = @transform_16, window_bounds = array<i64: 2, 128, 64>}, {pipeline_mode = #tpu.pipeline_mode<synchronous>, transform_indices = @transform_17, window_bounds = array<i64: 2, 1, 64>}, {pipeline_mode = #tpu.pipeline_mode<synchronous>, transform_indices = @transform_18, window_bounds = array<i64: 2, 1, 64>}, {pipeline_mode = #tpu.pipeline_mode<synchronous>, transform_indices = @transform_19, window_bounds = array<i64: 2, 1, 64>}, {pipeline_mode = #tpu.pipeline_mode<synchronous>, transform_indices = @transform_20, window_bounds = array<i64: 64, 512>}, {pipeline_mode = #tpu.pipeline_mode<synchronous>, transform_indices = @transform_21, window_bounds = array<i64: 1, 512>}, {pipeline_mode = #tpu.pipeline_mode<synchronous>, transform_indices = @transform_22, window_bounds = array<i64: 1, 512>}, {pipeline_mode = #tpu.pipeline_mode<synchronous>, transform_indices = @transform_23, window_bounds = array<i64: 1, 1>}, {transform_indices = @transform_24, window_bounds = array<i64: 1, 1, 128>}]} {
    %c0 = arith.constant 0 : index
    %c0_0 = arith.constant 0 : index
    %c0_1 = arith.constant 0 : index
    %0 = vector.load %arg1[%c0, %c0_0, %c0_1] : memref<1x128x64xf32, #tpu.memory_space<vmem>>, vector<1x128x64xf32>
    %1 = vector.shape_cast %0 : vector<1x128x64xf32> to vector<128x64xf32>
    %c0_2 = arith.constant 0 : index
    %c0_3 = arith.constant 0 : index
    %2 = vector.load %arg3[%c0_2, %c0_3] : memref<1x64xf32, #tpu.memory_space<vmem>>, vector<1x64xf32>
    %c0_4 = arith.constant 0 : index
    %c0_5 = arith.constant 0 : index
    %3 = vector.load %arg4[%c0_4, %c0_5] : memref<1x64xf32, #tpu.memory_space<vmem>>, vector<1x64xf32>
    %cst = arith.constant dense<0.000000e+00> : vector<128xf32>
    %4 = vector.multi_reduction <add>, %1, %cst [1] : vector<128x64xf32> to vector<128xf32>
    %5 = vector.shape_cast %4 : vector<128xf32> to vector<128x1xf32>
    %cst_6 = arith.constant 6.400000e+01 : f32
    %6 = vector.broadcast %cst_6 : f32 to vector<128x1xf32>
    %7 = arith.divf %5, %6 : vector<128x1xf32>
    %8 = vector.broadcast %7 : vector<128x1xf32> to vector<128x64xf32>
    %9 = arith.subf %1, %8 : vector<128x64xf32>
    %10 = arith.mulf %9, %9 : vector<128x64xf32>
    %cst_7 = arith.constant dense<0.000000e+00> : vector<128xf32>
    %11 = vector.multi_reduction <add>, %10, %cst_7 [1] : vector<128x64xf32> to vector<128xf32>
    %12 = vector.shape_cast %11 : vector<128xf32> to vector<128x1xf32>
    %cst_8 = arith.constant 6.400000e+01 : f32
    %13 = vector.broadcast %cst_8 : f32 to vector<128x1xf32>
    %14 = arith.divf %12, %13 : vector<128x1xf32>
    %15 = vector.broadcast %7 : vector<128x1xf32> to vector<128x64xf32>
    %16 = arith.subf %1, %15 : vector<128x64xf32>
    %cst_9 = arith.constant 9.99999974E-6 : f32
    %17 = vector.broadcast %cst_9 : f32 to vector<128x1xf32>
    %18 = arith.addf %14, %17 : vector<128x1xf32>
    %19 = math.rsqrt %18 : vector<128x1xf32>
    %20 = vector.broadcast %19 : vector<128x1xf32> to vector<128x64xf32>
    %21 = arith.mulf %16, %20 : vector<128x64xf32>
    %22 = vector.broadcast %2 : vector<1x64xf32> to vector<128x64xf32>
    %23 = arith.mulf %21, %22 : vector<128x64xf32>
    %24 = vector.broadcast %3 : vector<1x64xf32> to vector<128x64xf32>
    %25 = arith.addf %23, %24 : vector<128x64xf32>
    %26 = tpu.iota {dimensions = array<i32: 0>} : vector<128x128xi32>
    %27 = tpu.iota {dimensions = array<i32: 1>} : vector<128x128xi32>
    %28 = arith.subi %26, %27 : vector<128x128xi32>
    %29 = math.absi %28 : vector<128x128xi32>
    %c16_i32 = arith.constant 16 : i32
    %30 = vector.broadcast %c16_i32 : i32 to vector<128x128xi32>
    %31 = arith.cmpi sle, %29, %30 : vector<128x128xi32>
    %c0_10 = arith.constant 0 : index
    %c0_11 = arith.constant 0 : index
    %c0_12 = arith.constant 0 : index
    %32 = vector.load %arg2[%c0_10, %c0_11, %c0_12] : memref<1x1x128xf32, #tpu.memory_space<vmem>>, vector<1x1x128xf32>
    %33 = vector.shape_cast %32 : vector<1x1x128xf32> to vector<1x128xf32>
    %cst_13 = arith.constant 5.000000e-01 : f32
    %34 = vector.broadcast %cst_13 : f32 to vector<1x128xf32>
    %35 = arith.cmpf ogt, %33, %34 : vector<1x128xf32>
    %36 = vector.broadcast %35 : vector<1x128xi1> to vector<128x128xi1>
    %37 = arith.andi %31, %36 : vector<128x128xi1>
    %cst_14 = arith.constant 0.000000e+00 : f32
    %cst_15 = arith.constant -1.000000e+09 : f32
    %38 = vector.broadcast %cst_14 : f32 to vector<128x128xf32>
    %39 = vector.broadcast %cst_15 : f32 to vector<128x128xf32>
    %40 = arith.select %37, %38, %39 : vector<128x128xi1>, vector<128x128xf32>
    %41 = arith.truncf %25 : vector<128x64xf32> to vector<128x64xbf16>
    %c0_16 = arith.constant 0 : index
    %c0_17 = arith.constant 0 : index
    %c0_18 = arith.constant 0 : index
    %42 = vector.load %arg5[%c0_16, %c0_17, %c0_18] : memref<2x64x64xbf16, #tpu.memory_space<vmem>>, vector<1x64x64xbf16>
    %43 = vector.shape_cast %42 : vector<1x64x64xbf16> to vector<64x64xbf16>
    %cst_19 = arith.constant dense<0.000000e+00> : vector<128x64xf32>
    %44 = tpu.matmul %41, %43, %cst_19 {dimension_numbers = #tpu.dot_dimension_numbers<[1], [0], [0], [1], [0, 0, 1, 1], [], []>} : vector<128x64xbf16>, vector<64x64xbf16>, vector<128x64xf32> -> vector<128x64xf32>
    %c0_20 = arith.constant 0 : index
    %c0_21 = arith.constant 0 : index
    %c0_22 = arith.constant 0 : index
    %45 = vector.load %arg6[%c0_20, %c0_21, %c0_22] : memref<2x1x64xf32, #tpu.memory_space<vmem>>, vector<1x1x64xf32>
    %46 = vector.shape_cast %45 : vector<1x1x64xf32> to vector<1x64xf32>
    %47 = vector.broadcast %46 : vector<1x64xf32> to vector<128x64xf32>
    %48 = arith.addf %44, %47 : vector<128x64xf32>
    %c0_23 = arith.constant 0 : index
    %c0_24 = arith.constant 0 : index
    %c0_25 = arith.constant 0 : index
    %49 = vector.load %arg7[%c0_23, %c0_24, %c0_25] : memref<2x64x64xbf16, #tpu.memory_space<vmem>>, vector<1x64x64xbf16>
    %50 = vector.shape_cast %49 : vector<1x64x64xbf16> to vector<64x64xbf16>
    %cst_26 = arith.constant dense<0.000000e+00> : vector<128x64xf32>
    %51 = tpu.matmul %41, %50, %cst_26 {dimension_numbers = #tpu.dot_dimension_numbers<[1], [0], [0], [1], [0, 0, 1, 1], [], []>} : vector<128x64xbf16>, vector<64x64xbf16>, vector<128x64xf32> -> vector<128x64xf32>
    %c0_27 = arith.constant 0 : index
    %c0_28 = arith.constant 0 : index
    %c0_29 = arith.constant 0 : index
    %52 = vector.load %arg8[%c0_27, %c0_28, %c0_29] : memref<2x1x64xf32, #tpu.memory_space<vmem>>, vector<1x1x64xf32>
    %53 = vector.shape_cast %52 : vector<1x1x64xf32> to vector<1x64xf32>
    %54 = vector.broadcast %53 : vector<1x64xf32> to vector<128x64xf32>
    %55 = arith.addf %51, %54 : vector<128x64xf32>
    %c0_30 = arith.constant 0 : index
    %c0_31 = arith.constant 0 : index
    %c0_32 = arith.constant 0 : index
    %56 = vector.load %arg9[%c0_30, %c0_31, %c0_32] : memref<2x64x64xbf16, #tpu.memory_space<vmem>>, vector<1x64x64xbf16>
    %57 = vector.shape_cast %56 : vector<1x64x64xbf16> to vector<64x64xbf16>
    %cst_33 = arith.constant dense<0.000000e+00> : vector<128x64xf32>
    %58 = tpu.matmul %41, %57, %cst_33 {dimension_numbers = #tpu.dot_dimension_numbers<[1], [0], [0], [1], [0, 0, 1, 1], [], []>} : vector<128x64xbf16>, vector<64x64xbf16>, vector<128x64xf32> -> vector<128x64xf32>
    %c0_34 = arith.constant 0 : index
    %c0_35 = arith.constant 0 : index
    %c0_36 = arith.constant 0 : index
    %59 = vector.load %arg10[%c0_34, %c0_35, %c0_36] : memref<2x1x64xf32, #tpu.memory_space<vmem>>, vector<1x1x64xf32>
    %60 = vector.shape_cast %59 : vector<1x1x64xf32> to vector<1x64xf32>
    %61 = vector.broadcast %60 : vector<1x64xf32> to vector<128x64xf32>
    %62 = arith.addf %58, %61 : vector<128x64xf32>
    %63 = arith.truncf %48 : vector<128x64xf32> to vector<128x64xbf16>
    %64 = arith.truncf %55 : vector<128x64xf32> to vector<128x64xbf16>
    %cst_37 = arith.constant dense<0.000000e+00> : vector<128x128xf32>
    %65 = tpu.matmul %63, %64, %cst_37 {dimension_numbers = #tpu.dot_dimension_numbers<[1], [1], [0], [0], [0, 0, 1, 0], [], []>} : vector<128x64xbf16>, vector<128x64xbf16>, vector<128x128xf32> -> vector<128x128xf32>
    %66 = arith.addf %65, %40 : vector<128x128xf32>
    %cst_38 = arith.constant dense<0xFF800000> : vector<128xf32>
    %67 = vector.multi_reduction <maximumf>, %66, %cst_38 [1] : vector<128x128xf32> to vector<128xf32>
    %68 = vector.shape_cast %67 : vector<128xf32> to vector<128x1xf32>
    %69 = vector.broadcast %68 : vector<128x1xf32> to vector<128x128xf32>
    %70 = arith.subf %66, %69 : vector<128x128xf32>
    %71 = math.exp %70 : vector<128x128xf32>
    %cst_39 = arith.constant dense<0.000000e+00> : vector<128xf32>
    %72 = vector.multi_reduction <add>, %71, %cst_39 [1] : vector<128x128xf32> to vector<128xf32>
    %73 = vector.shape_cast %72 : vector<128xf32> to vector<128x1xf32>
    %74 = tpu.reciprocal %73 {approx = true} : vector<128x1xf32> -> vector<128x1xf32>
    %75 = vector.broadcast %74 : vector<128x1xf32> to vector<128x128xf32>
    %76 = arith.mulf %71, %75 : vector<128x128xf32>
    %77 = arith.truncf %76 : vector<128x128xf32> to vector<128x128xbf16>
    %78 = arith.truncf %62 : vector<128x64xf32> to vector<128x64xbf16>
    %cst_40 = arith.constant dense<0.000000e+00> : vector<128x64xf32>
    %79 = tpu.matmul %77, %78, %cst_40 {dimension_numbers = #tpu.dot_dimension_numbers<[1], [0], [0], [1], [0, 0, 1, 1], [], []>} : vector<128x128xbf16>, vector<128x64xbf16>, vector<128x64xf32> -> vector<128x64xf32>
    %80 = arith.truncf %79 : vector<128x64xf32> to vector<128x64xbf16>
    %c0_41 = arith.constant 0 : index
    %c0_42 = arith.constant 0 : index
    %c0_43 = arith.constant 0 : index
    %81 = vector.load %arg11[%c0_41, %c0_42, %c0_43] : memref<2x64x64xbf16, #tpu.memory_space<vmem>>, vector<1x64x64xbf16>
    %82 = vector.shape_cast %81 : vector<1x64x64xbf16> to vector<64x64xbf16>
    %cst_44 = arith.constant dense<0.000000e+00> : vector<128x64xf32>
    %83 = tpu.matmul %80, %82, %cst_44 {dimension_numbers = #tpu.dot_dimension_numbers<[1], [0], [0], [1], [0, 0, 1, 1], [], []>} : vector<128x64xbf16>, vector<64x64xbf16>, vector<128x64xf32> -> vector<128x64xf32>
    %c0_45 = arith.constant 0 : index
    %c0_46 = arith.constant 0 : index
    %c0_47 = arith.constant 0 : index
    %84 = vector.load %arg12[%c0_45, %c0_46, %c0_47] : memref<2x1x64xf32, #tpu.memory_space<vmem>>, vector<1x1x64xf32>
    %85 = vector.shape_cast %84 : vector<1x1x64xf32> to vector<1x64xf32>
    %86 = vector.broadcast %85 : vector<1x64xf32> to vector<128x64xf32>
    %87 = arith.addf %83, %86 : vector<128x64xf32>
    %88 = arith.addf %25, %87 : vector<128x64xf32>
    %c0_48 = arith.constant 0 : index
    %c0_49 = arith.constant 0 : index
    %c0_50 = arith.constant 0 : index
    %89 = vector.load %arg13[%c0_48, %c0_49, %c0_50] : memref<2x1x64xf32, #tpu.memory_space<vmem>>, vector<1x1x64xf32>
    %90 = vector.shape_cast %89 : vector<1x1x64xf32> to vector<1x64xf32>
    %c0_51 = arith.constant 0 : index
    %c0_52 = arith.constant 0 : index
    %c0_53 = arith.constant 0 : index
    %91 = vector.load %arg14[%c0_51, %c0_52, %c0_53] : memref<2x1x64xf32, #tpu.memory_space<vmem>>, vector<1x1x64xf32>
    %92 = vector.shape_cast %91 : vector<1x1x64xf32> to vector<1x64xf32>
    %cst_54 = arith.constant dense<0.000000e+00> : vector<128xf32>
    %93 = vector.multi_reduction <add>, %88, %cst_54 [1] : vector<128x64xf32> to vector<128xf32>
    %94 = vector.shape_cast %93 : vector<128xf32> to vector<128x1xf32>
    %cst_55 = arith.constant 6.400000e+01 : f32
    %95 = vector.broadcast %cst_55 : f32 to vector<128x1xf32>
    %96 = arith.divf %94, %95 : vector<128x1xf32>
    %97 = vector.broadcast %96 : vector<128x1xf32> to vector<128x64xf32>
    %98 = arith.subf %88, %97 : vector<128x64xf32>
    %99 = arith.mulf %98, %98 : vector<128x64xf32>
    %cst_56 = arith.constant dense<0.000000e+00> : vector<128xf32>
    %100 = vector.multi_reduction <add>, %99, %cst_56 [1] : vector<128x64xf32> to vector<128xf32>
    %101 = vector.shape_cast %100 : vector<128xf32> to vector<128x1xf32>
    %cst_57 = arith.constant 6.400000e+01 : f32
    %102 = vector.broadcast %cst_57 : f32 to vector<128x1xf32>
    %103 = arith.divf %101, %102 : vector<128x1xf32>
    %104 = vector.broadcast %96 : vector<128x1xf32> to vector<128x64xf32>
    %105 = arith.subf %88, %104 : vector<128x64xf32>
    %cst_58 = arith.constant 9.99999974E-6 : f32
    %106 = vector.broadcast %cst_58 : f32 to vector<128x1xf32>
    %107 = arith.addf %103, %106 : vector<128x1xf32>
    %108 = math.rsqrt %107 : vector<128x1xf32>
    %109 = vector.broadcast %108 : vector<128x1xf32> to vector<128x64xf32>
    %110 = arith.mulf %105, %109 : vector<128x64xf32>
    %111 = vector.broadcast %90 : vector<1x64xf32> to vector<128x64xf32>
    %112 = arith.mulf %110, %111 : vector<128x64xf32>
    %113 = vector.broadcast %92 : vector<1x64xf32> to vector<128x64xf32>
    %114 = arith.addf %112, %113 : vector<128x64xf32>
    %115 = arith.truncf %114 : vector<128x64xf32> to vector<128x64xbf16>
    %c0_59 = arith.constant 0 : index
    %c0_60 = arith.constant 0 : index
    %c0_61 = arith.constant 0 : index
    %116 = vector.load %arg15[%c0_59, %c0_60, %c0_61] : memref<2x64x128xbf16, #tpu.memory_space<vmem>>, vector<1x64x128xbf16>
    %117 = vector.shape_cast %116 : vector<1x64x128xbf16> to vector<64x128xbf16>
    %cst_62 = arith.constant dense<0.000000e+00> : vector<128x128xf32>
    %118 = tpu.matmul %115, %117, %cst_62 {dimension_numbers = #tpu.dot_dimension_numbers<[1], [0], [0], [1], [0, 0, 1, 1], [], []>} : vector<128x64xbf16>, vector<64x128xbf16>, vector<128x128xf32> -> vector<128x128xf32>
    %c0_63 = arith.constant 0 : index
    %c0_64 = arith.constant 0 : index
    %c0_65 = arith.constant 0 : index
    %119 = vector.load %arg16[%c0_63, %c0_64, %c0_65] : memref<2x1x128xf32, #tpu.memory_space<vmem>>, vector<1x1x128xf32>
    %120 = vector.shape_cast %119 : vector<1x1x128xf32> to vector<1x128xf32>
    %121 = vector.broadcast %120 : vector<1x128xf32> to vector<128x128xf32>
    %122 = arith.addf %118, %121 : vector<128x128xf32>
    %cst_66 = arith.constant 5.000000e-01 : f32
    %123 = vector.broadcast %cst_66 : f32 to vector<128x128xf32>
    %124 = arith.mulf %123, %122 : vector<128x128xf32>
    %cst_67 = arith.constant 4.471500e-02 : f32
    %125 = vector.broadcast %cst_67 : f32 to vector<128x128xf32>
    %126 = arith.mulf %125, %122 : vector<128x128xf32>
    %127 = arith.mulf %126, %122 : vector<128x128xf32>
    %128 = arith.mulf %127, %122 : vector<128x128xf32>
    %129 = arith.addf %122, %128 : vector<128x128xf32>
    %cst_68 = arith.constant 0.797884583 : f32
    %130 = vector.broadcast %cst_68 : f32 to vector<128x128xf32>
    %131 = arith.mulf %130, %129 : vector<128x128xf32>
    %132 = math.tanh %131 : vector<128x128xf32>
    %cst_69 = arith.constant 1.000000e+00 : f32
    %133 = vector.broadcast %cst_69 : f32 to vector<128x128xf32>
    %134 = arith.addf %133, %132 : vector<128x128xf32>
    %135 = arith.mulf %124, %134 : vector<128x128xf32>
    %136 = arith.truncf %135 : vector<128x128xf32> to vector<128x128xbf16>
    %c0_70 = arith.constant 0 : index
    %c0_71 = arith.constant 0 : index
    %c0_72 = arith.constant 0 : index
    %137 = vector.load %arg17[%c0_70, %c0_71, %c0_72] : memref<2x128x64xbf16, #tpu.memory_space<vmem>>, vector<1x128x64xbf16>
    %138 = vector.shape_cast %137 : vector<1x128x64xbf16> to vector<128x64xbf16>
    %cst_73 = arith.constant dense<0.000000e+00> : vector<128x64xf32>
    %139 = tpu.matmul %136, %138, %cst_73 {dimension_numbers = #tpu.dot_dimension_numbers<[1], [0], [0], [1], [0, 0, 1, 1], [], []>} : vector<128x128xbf16>, vector<128x64xbf16>, vector<128x64xf32> -> vector<128x64xf32>
    %c0_74 = arith.constant 0 : index
    %c0_75 = arith.constant 0 : index
    %c0_76 = arith.constant 0 : index
    %140 = vector.load %arg18[%c0_74, %c0_75, %c0_76] : memref<2x1x64xf32, #tpu.memory_space<vmem>>, vector<1x1x64xf32>
    %141 = vector.shape_cast %140 : vector<1x1x64xf32> to vector<1x64xf32>
    %142 = vector.broadcast %141 : vector<1x64xf32> to vector<128x64xf32>
    %143 = arith.addf %139, %142 : vector<128x64xf32>
    %144 = arith.addf %114, %143 : vector<128x64xf32>
    %c0_77 = arith.constant 0 : index
    %c0_78 = arith.constant 0 : index
    %c0_79 = arith.constant 0 : index
    %145 = vector.load %arg19[%c0_77, %c0_78, %c0_79] : memref<2x1x64xf32, #tpu.memory_space<vmem>>, vector<1x1x64xf32>
    %146 = vector.shape_cast %145 : vector<1x1x64xf32> to vector<1x64xf32>
    %c0_80 = arith.constant 0 : index
    %c0_81 = arith.constant 0 : index
    %c0_82 = arith.constant 0 : index
    %147 = vector.load %arg20[%c0_80, %c0_81, %c0_82] : memref<2x1x64xf32, #tpu.memory_space<vmem>>, vector<1x1x64xf32>
    %148 = vector.shape_cast %147 : vector<1x1x64xf32> to vector<1x64xf32>
    %cst_83 = arith.constant dense<0.000000e+00> : vector<128xf32>
    %149 = vector.multi_reduction <add>, %144, %cst_83 [1] : vector<128x64xf32> to vector<128xf32>
    %150 = vector.shape_cast %149 : vector<128xf32> to vector<128x1xf32>
    %cst_84 = arith.constant 6.400000e+01 : f32
    %151 = vector.broadcast %cst_84 : f32 to vector<128x1xf32>
    %152 = arith.divf %150, %151 : vector<128x1xf32>
    %153 = vector.broadcast %152 : vector<128x1xf32> to vector<128x64xf32>
    %154 = arith.subf %144, %153 : vector<128x64xf32>
    %155 = arith.mulf %154, %154 : vector<128x64xf32>
    %cst_85 = arith.constant dense<0.000000e+00> : vector<128xf32>
    %156 = vector.multi_reduction <add>, %155, %cst_85 [1] : vector<128x64xf32> to vector<128xf32>
    %157 = vector.shape_cast %156 : vector<128xf32> to vector<128x1xf32>
    %cst_86 = arith.constant 6.400000e+01 : f32
    %158 = vector.broadcast %cst_86 : f32 to vector<128x1xf32>
    %159 = arith.divf %157, %158 : vector<128x1xf32>
    %160 = vector.broadcast %152 : vector<128x1xf32> to vector<128x64xf32>
    %161 = arith.subf %144, %160 : vector<128x64xf32>
    %cst_87 = arith.constant 9.99999974E-6 : f32
    %162 = vector.broadcast %cst_87 : f32 to vector<128x1xf32>
    %163 = arith.addf %159, %162 : vector<128x1xf32>
    %164 = math.rsqrt %163 : vector<128x1xf32>
    %165 = vector.broadcast %164 : vector<128x1xf32> to vector<128x64xf32>
    %166 = arith.mulf %161, %165 : vector<128x64xf32>
    %167 = vector.broadcast %146 : vector<1x64xf32> to vector<128x64xf32>
    %168 = arith.mulf %166, %167 : vector<128x64xf32>
    %169 = vector.broadcast %148 : vector<1x64xf32> to vector<128x64xf32>
    %170 = arith.addf %168, %169 : vector<128x64xf32>
    %171 = arith.truncf %170 : vector<128x64xf32> to vector<128x64xbf16>
    %c1 = arith.constant 1 : index
    %c0_88 = arith.constant 0 : index
    %c0_89 = arith.constant 0 : index
    %172 = vector.load %arg5[%c1, %c0_88, %c0_89] : memref<2x64x64xbf16, #tpu.memory_space<vmem>>, vector<1x64x64xbf16>
    %173 = vector.shape_cast %172 : vector<1x64x64xbf16> to vector<64x64xbf16>
    %cst_90 = arith.constant dense<0.000000e+00> : vector<128x64xf32>
    %174 = tpu.matmul %171, %173, %cst_90 {dimension_numbers = #tpu.dot_dimension_numbers<[1], [0], [0], [1], [0, 0, 1, 1], [], []>} : vector<128x64xbf16>, vector<64x64xbf16>, vector<128x64xf32> -> vector<128x64xf32>
    %c1_91 = arith.constant 1 : index
    %c0_92 = arith.constant 0 : index
    %c0_93 = arith.constant 0 : index
    %175 = vector.load %arg6[%c1_91, %c0_92, %c0_93] : memref<2x1x64xf32, #tpu.memory_space<vmem>>, vector<1x1x64xf32>
    %176 = vector.shape_cast %175 : vector<1x1x64xf32> to vector<1x64xf32>
    %177 = vector.broadcast %176 : vector<1x64xf32> to vector<128x64xf32>
    %178 = arith.addf %174, %177 : vector<128x64xf32>
    %c1_94 = arith.constant 1 : index
    %c0_95 = arith.constant 0 : index
    %c0_96 = arith.constant 0 : index
    %179 = vector.load %arg7[%c1_94, %c0_95, %c0_96] : memref<2x64x64xbf16, #tpu.memory_space<vmem>>, vector<1x64x64xbf16>
    %180 = vector.shape_cast %179 : vector<1x64x64xbf16> to vector<64x64xbf16>
    %cst_97 = arith.constant dense<0.000000e+00> : vector<128x64xf32>
    %181 = tpu.matmul %171, %180, %cst_97 {dimension_numbers = #tpu.dot_dimension_numbers<[1], [0], [0], [1], [0, 0, 1, 1], [], []>} : vector<128x64xbf16>, vector<64x64xbf16>, vector<128x64xf32> -> vector<128x64xf32>
    %c1_98 = arith.constant 1 : index
    %c0_99 = arith.constant 0 : index
    %c0_100 = arith.constant 0 : index
    %182 = vector.load %arg8[%c1_98, %c0_99, %c0_100] : memref<2x1x64xf32, #tpu.memory_space<vmem>>, vector<1x1x64xf32>
    %183 = vector.shape_cast %182 : vector<1x1x64xf32> to vector<1x64xf32>
    %184 = vector.broadcast %183 : vector<1x64xf32> to vector<128x64xf32>
    %185 = arith.addf %181, %184 : vector<128x64xf32>
    %c1_101 = arith.constant 1 : index
    %c0_102 = arith.constant 0 : index
    %c0_103 = arith.constant 0 : index
    %186 = vector.load %arg9[%c1_101, %c0_102, %c0_103] : memref<2x64x64xbf16, #tpu.memory_space<vmem>>, vector<1x64x64xbf16>
    %187 = vector.shape_cast %186 : vector<1x64x64xbf16> to vector<64x64xbf16>
    %cst_104 = arith.constant dense<0.000000e+00> : vector<128x64xf32>
    %188 = tpu.matmul %171, %187, %cst_104 {dimension_numbers = #tpu.dot_dimension_numbers<[1], [0], [0], [1], [0, 0, 1, 1], [], []>} : vector<128x64xbf16>, vector<64x64xbf16>, vector<128x64xf32> -> vector<128x64xf32>
    %c1_105 = arith.constant 1 : index
    %c0_106 = arith.constant 0 : index
    %c0_107 = arith.constant 0 : index
    %189 = vector.load %arg10[%c1_105, %c0_106, %c0_107] : memref<2x1x64xf32, #tpu.memory_space<vmem>>, vector<1x1x64xf32>
    %190 = vector.shape_cast %189 : vector<1x1x64xf32> to vector<1x64xf32>
    %191 = vector.broadcast %190 : vector<1x64xf32> to vector<128x64xf32>
    %192 = arith.addf %188, %191 : vector<128x64xf32>
    %193 = arith.truncf %178 : vector<128x64xf32> to vector<128x64xbf16>
    %194 = arith.truncf %185 : vector<128x64xf32> to vector<128x64xbf16>
    %cst_108 = arith.constant dense<0.000000e+00> : vector<128x128xf32>
    %195 = tpu.matmul %193, %194, %cst_108 {dimension_numbers = #tpu.dot_dimension_numbers<[1], [1], [0], [0], [0, 0, 1, 0], [], []>} : vector<128x64xbf16>, vector<128x64xbf16>, vector<128x128xf32> -> vector<128x128xf32>
    %196 = arith.addf %195, %40 : vector<128x128xf32>
    %cst_109 = arith.constant dense<0xFF800000> : vector<128xf32>
    %197 = vector.multi_reduction <maximumf>, %196, %cst_109 [1] : vector<128x128xf32> to vector<128xf32>
    %198 = vector.shape_cast %197 : vector<128xf32> to vector<128x1xf32>
    %199 = vector.broadcast %198 : vector<128x1xf32> to vector<128x128xf32>
    %200 = arith.subf %196, %199 : vector<128x128xf32>
    %201 = math.exp %200 : vector<128x128xf32>
    %cst_110 = arith.constant dense<0.000000e+00> : vector<128xf32>
    %202 = vector.multi_reduction <add>, %201, %cst_110 [1] : vector<128x128xf32> to vector<128xf32>
    %203 = vector.shape_cast %202 : vector<128xf32> to vector<128x1xf32>
    %204 = tpu.reciprocal %203 {approx = true} : vector<128x1xf32> -> vector<128x1xf32>
    %205 = vector.broadcast %204 : vector<128x1xf32> to vector<128x128xf32>
    %206 = arith.mulf %201, %205 : vector<128x128xf32>
    %207 = arith.truncf %206 : vector<128x128xf32> to vector<128x128xbf16>
    %208 = arith.truncf %192 : vector<128x64xf32> to vector<128x64xbf16>
    %cst_111 = arith.constant dense<0.000000e+00> : vector<128x64xf32>
    %209 = tpu.matmul %207, %208, %cst_111 {dimension_numbers = #tpu.dot_dimension_numbers<[1], [0], [0], [1], [0, 0, 1, 1], [], []>} : vector<128x128xbf16>, vector<128x64xbf16>, vector<128x64xf32> -> vector<128x64xf32>
    %210 = arith.truncf %209 : vector<128x64xf32> to vector<128x64xbf16>
    %c1_112 = arith.constant 1 : index
    %c0_113 = arith.constant 0 : index
    %c0_114 = arith.constant 0 : index
    %211 = vector.load %arg11[%c1_112, %c0_113, %c0_114] : memref<2x64x64xbf16, #tpu.memory_space<vmem>>, vector<1x64x64xbf16>
    %212 = vector.shape_cast %211 : vector<1x64x64xbf16> to vector<64x64xbf16>
    %cst_115 = arith.constant dense<0.000000e+00> : vector<128x64xf32>
    %213 = tpu.matmul %210, %212, %cst_115 {dimension_numbers = #tpu.dot_dimension_numbers<[1], [0], [0], [1], [0, 0, 1, 1], [], []>} : vector<128x64xbf16>, vector<64x64xbf16>, vector<128x64xf32> -> vector<128x64xf32>
    %c1_116 = arith.constant 1 : index
    %c0_117 = arith.constant 0 : index
    %c0_118 = arith.constant 0 : index
    %214 = vector.load %arg12[%c1_116, %c0_117, %c0_118] : memref<2x1x64xf32, #tpu.memory_space<vmem>>, vector<1x1x64xf32>
    %215 = vector.shape_cast %214 : vector<1x1x64xf32> to vector<1x64xf32>
    %216 = vector.broadcast %215 : vector<1x64xf32> to vector<128x64xf32>
    %217 = arith.addf %213, %216 : vector<128x64xf32>
    %218 = arith.addf %170, %217 : vector<128x64xf32>
    %c1_119 = arith.constant 1 : index
    %c0_120 = arith.constant 0 : index
    %c0_121 = arith.constant 0 : index
    %219 = vector.load %arg13[%c1_119, %c0_120, %c0_121] : memref<2x1x64xf32, #tpu.memory_space<vmem>>, vector<1x1x64xf32>
    %220 = vector.shape_cast %219 : vector<1x1x64xf32> to vector<1x64xf32>
    %c1_122 = arith.constant 1 : index
    %c0_123 = arith.constant 0 : index
    %c0_124 = arith.constant 0 : index
    %221 = vector.load %arg14[%c1_122, %c0_123, %c0_124] : memref<2x1x64xf32, #tpu.memory_space<vmem>>, vector<1x1x64xf32>
    %222 = vector.shape_cast %221 : vector<1x1x64xf32> to vector<1x64xf32>
    %cst_125 = arith.constant dense<0.000000e+00> : vector<128xf32>
    %223 = vector.multi_reduction <add>, %218, %cst_125 [1] : vector<128x64xf32> to vector<128xf32>
    %224 = vector.shape_cast %223 : vector<128xf32> to vector<128x1xf32>
    %cst_126 = arith.constant 6.400000e+01 : f32
    %225 = vector.broadcast %cst_126 : f32 to vector<128x1xf32>
    %226 = arith.divf %224, %225 : vector<128x1xf32>
    %227 = vector.broadcast %226 : vector<128x1xf32> to vector<128x64xf32>
    %228 = arith.subf %218, %227 : vector<128x64xf32>
    %229 = arith.mulf %228, %228 : vector<128x64xf32>
    %cst_127 = arith.constant dense<0.000000e+00> : vector<128xf32>
    %230 = vector.multi_reduction <add>, %229, %cst_127 [1] : vector<128x64xf32> to vector<128xf32>
    %231 = vector.shape_cast %230 : vector<128xf32> to vector<128x1xf32>
    %cst_128 = arith.constant 6.400000e+01 : f32
    %232 = vector.broadcast %cst_128 : f32 to vector<128x1xf32>
    %233 = arith.divf %231, %232 : vector<128x1xf32>
    %234 = vector.broadcast %226 : vector<128x1xf32> to vector<128x64xf32>
    %235 = arith.subf %218, %234 : vector<128x64xf32>
    %cst_129 = arith.constant 9.99999974E-6 : f32
    %236 = vector.broadcast %cst_129 : f32 to vector<128x1xf32>
    %237 = arith.addf %233, %236 : vector<128x1xf32>
    %238 = math.rsqrt %237 : vector<128x1xf32>
    %239 = vector.broadcast %238 : vector<128x1xf32> to vector<128x64xf32>
    %240 = arith.mulf %235, %239 : vector<128x64xf32>
    %241 = vector.broadcast %220 : vector<1x64xf32> to vector<128x64xf32>
    %242 = arith.mulf %240, %241 : vector<128x64xf32>
    %243 = vector.broadcast %222 : vector<1x64xf32> to vector<128x64xf32>
    %244 = arith.addf %242, %243 : vector<128x64xf32>
    %245 = arith.truncf %244 : vector<128x64xf32> to vector<128x64xbf16>
    %c1_130 = arith.constant 1 : index
    %c0_131 = arith.constant 0 : index
    %c0_132 = arith.constant 0 : index
    %246 = vector.load %arg15[%c1_130, %c0_131, %c0_132] : memref<2x64x128xbf16, #tpu.memory_space<vmem>>, vector<1x64x128xbf16>
    %247 = vector.shape_cast %246 : vector<1x64x128xbf16> to vector<64x128xbf16>
    %cst_133 = arith.constant dense<0.000000e+00> : vector<128x128xf32>
    %248 = tpu.matmul %245, %247, %cst_133 {dimension_numbers = #tpu.dot_dimension_numbers<[1], [0], [0], [1], [0, 0, 1, 1], [], []>} : vector<128x64xbf16>, vector<64x128xbf16>, vector<128x128xf32> -> vector<128x128xf32>
    %c1_134 = arith.constant 1 : index
    %c0_135 = arith.constant 0 : index
    %c0_136 = arith.constant 0 : index
    %249 = vector.load %arg16[%c1_134, %c0_135, %c0_136] : memref<2x1x128xf32, #tpu.memory_space<vmem>>, vector<1x1x128xf32>
    %250 = vector.shape_cast %249 : vector<1x1x128xf32> to vector<1x128xf32>
    %251 = vector.broadcast %250 : vector<1x128xf32> to vector<128x128xf32>
    %252 = arith.addf %248, %251 : vector<128x128xf32>
    %cst_137 = arith.constant 5.000000e-01 : f32
    %253 = vector.broadcast %cst_137 : f32 to vector<128x128xf32>
    %254 = arith.mulf %253, %252 : vector<128x128xf32>
    %cst_138 = arith.constant 4.471500e-02 : f32
    %255 = vector.broadcast %cst_138 : f32 to vector<128x128xf32>
    %256 = arith.mulf %255, %252 : vector<128x128xf32>
    %257 = arith.mulf %256, %252 : vector<128x128xf32>
    %258 = arith.mulf %257, %252 : vector<128x128xf32>
    %259 = arith.addf %252, %258 : vector<128x128xf32>
    %cst_139 = arith.constant 0.797884583 : f32
    %260 = vector.broadcast %cst_139 : f32 to vector<128x128xf32>
    %261 = arith.mulf %260, %259 : vector<128x128xf32>
    %262 = math.tanh %261 : vector<128x128xf32>
    %cst_140 = arith.constant 1.000000e+00 : f32
    %263 = vector.broadcast %cst_140 : f32 to vector<128x128xf32>
    %264 = arith.addf %263, %262 : vector<128x128xf32>
    %265 = arith.mulf %254, %264 : vector<128x128xf32>
    %266 = arith.truncf %265 : vector<128x128xf32> to vector<128x128xbf16>
    %c1_141 = arith.constant 1 : index
    %c0_142 = arith.constant 0 : index
    %c0_143 = arith.constant 0 : index
    %267 = vector.load %arg17[%c1_141, %c0_142, %c0_143] : memref<2x128x64xbf16, #tpu.memory_space<vmem>>, vector<1x128x64xbf16>
    %268 = vector.shape_cast %267 : vector<1x128x64xbf16> to vector<128x64xbf16>
    %cst_144 = arith.constant dense<0.000000e+00> : vector<128x64xf32>
    %269 = tpu.matmul %266, %268, %cst_144 {dimension_numbers = #tpu.dot_dimension_numbers<[1], [0], [0], [1], [0, 0, 1, 1], [], []>} : vector<128x128xbf16>, vector<128x64xbf16>, vector<128x64xf32> -> vector<128x64xf32>
    %c1_145 = arith.constant 1 : index
    %c0_146 = arith.constant 0 : index
    %c0_147 = arith.constant 0 : index
    %270 = vector.load %arg18[%c1_145, %c0_146, %c0_147] : memref<2x1x64xf32, #tpu.memory_space<vmem>>, vector<1x1x64xf32>
    %271 = vector.shape_cast %270 : vector<1x1x64xf32> to vector<1x64xf32>
    %272 = vector.broadcast %271 : vector<1x64xf32> to vector<128x64xf32>
    %273 = arith.addf %269, %272 : vector<128x64xf32>
    %274 = arith.addf %244, %273 : vector<128x64xf32>
    %c1_148 = arith.constant 1 : index
    %c0_149 = arith.constant 0 : index
    %c0_150 = arith.constant 0 : index
    %275 = vector.load %arg19[%c1_148, %c0_149, %c0_150] : memref<2x1x64xf32, #tpu.memory_space<vmem>>, vector<1x1x64xf32>
    %276 = vector.shape_cast %275 : vector<1x1x64xf32> to vector<1x64xf32>
    %c1_151 = arith.constant 1 : index
    %c0_152 = arith.constant 0 : index
    %c0_153 = arith.constant 0 : index
    %277 = vector.load %arg20[%c1_151, %c0_152, %c0_153] : memref<2x1x64xf32, #tpu.memory_space<vmem>>, vector<1x1x64xf32>
    %278 = vector.shape_cast %277 : vector<1x1x64xf32> to vector<1x64xf32>
    %cst_154 = arith.constant dense<0.000000e+00> : vector<128xf32>
    %279 = vector.multi_reduction <add>, %274, %cst_154 [1] : vector<128x64xf32> to vector<128xf32>
    %280 = vector.shape_cast %279 : vector<128xf32> to vector<128x1xf32>
    %cst_155 = arith.constant 6.400000e+01 : f32
    %281 = vector.broadcast %cst_155 : f32 to vector<128x1xf32>
    %282 = arith.divf %280, %281 : vector<128x1xf32>
    %283 = vector.broadcast %282 : vector<128x1xf32> to vector<128x64xf32>
    %284 = arith.subf %274, %283 : vector<128x64xf32>
    %285 = arith.mulf %284, %284 : vector<128x64xf32>
    %cst_156 = arith.constant dense<0.000000e+00> : vector<128xf32>
    %286 = vector.multi_reduction <add>, %285, %cst_156 [1] : vector<128x64xf32> to vector<128xf32>
    %287 = vector.shape_cast %286 : vector<128xf32> to vector<128x1xf32>
    %cst_157 = arith.constant 6.400000e+01 : f32
    %288 = vector.broadcast %cst_157 : f32 to vector<128x1xf32>
    %289 = arith.divf %287, %288 : vector<128x1xf32>
    %290 = vector.broadcast %282 : vector<128x1xf32> to vector<128x64xf32>
    %291 = arith.subf %274, %290 : vector<128x64xf32>
    %cst_158 = arith.constant 9.99999974E-6 : f32
    %292 = vector.broadcast %cst_158 : f32 to vector<128x1xf32>
    %293 = arith.addf %289, %292 : vector<128x1xf32>
    %294 = math.rsqrt %293 : vector<128x1xf32>
    %295 = vector.broadcast %294 : vector<128x1xf32> to vector<128x64xf32>
    %296 = arith.mulf %291, %295 : vector<128x64xf32>
    %297 = vector.broadcast %276 : vector<1x64xf32> to vector<128x64xf32>
    %298 = arith.mulf %296, %297 : vector<128x64xf32>
    %299 = vector.broadcast %278 : vector<1x64xf32> to vector<128x64xf32>
    %300 = arith.addf %298, %299 : vector<128x64xf32>
    %301 = vector.extract_strided_slice %300 {offsets = [0, 0], sizes = [1, 64], strides = [1, 1]} : vector<128x64xf32> to vector<1x64xf32>
    %302 = arith.truncf %301 : vector<1x64xf32> to vector<1x64xbf16>
    %c0_159 = arith.constant 0 : index
    %c0_160 = arith.constant 0 : index
    %303 = vector.load %arg21[%c0_159, %c0_160] : memref<64x512xbf16, #tpu.memory_space<vmem>>, vector<64x512xbf16>
    %cst_161 = arith.constant dense<0.000000e+00> : vector<1x512xf32>
    %304 = tpu.matmul %302, %303, %cst_161 {dimension_numbers = #tpu.dot_dimension_numbers<[1], [0], [0], [1], [0, 0, 1, 1], [], []>} : vector<1x64xbf16>, vector<64x512xbf16>, vector<1x512xf32> -> vector<1x512xf32>
    %c0_162 = arith.constant 0 : index
    %c0_163 = arith.constant 0 : index
    %305 = vector.load %arg22[%c0_162, %c0_163] : memref<1x512xf32, #tpu.memory_space<vmem>>, vector<1x512xf32>
    %306 = arith.addf %304, %305 : vector<1x512xf32>
    %cst_164 = arith.constant 0.000000e+00 : f32
    %307 = vector.broadcast %cst_164 : f32 to vector<1x512xf32>
    %308 = arith.maximumf %306, %307 : vector<1x512xf32>
    %c0_165 = arith.constant 0 : index
    %c0_166 = arith.constant 0 : index
    %309 = vector.load %arg23[%c0_165, %c0_166] : memref<1x512xbf16, #tpu.memory_space<vmem>>, vector<1x512xbf16>
    %310 = arith.extf %309 : vector<1x512xbf16> to vector<1x512xf32>
    %311 = arith.mulf %308, %310 : vector<1x512xf32>
    %cst_167 = arith.constant dense<0.000000e+00> : vector<1xf32>
    %312 = vector.multi_reduction <add>, %311, %cst_167 [1] : vector<1x512xf32> to vector<1xf32>
    %313 = vector.shape_cast %312 : vector<1xf32> to vector<1x1xf32>
    %c0_168 = arith.constant 0 : index
    %c0_169 = arith.constant 0 : index
    %314 = vector.load %arg24[%c0_168, %c0_169] : memref<1x1xf32, #tpu.memory_space<vmem>>, vector<1x1xf32>
    %315 = arith.addf %313, %314 : vector<1x1xf32>
    %316 = vector.shape_cast %315 : vector<1x1xf32> to vector<1x1xf32>
    %317 = vector.broadcast %316 : vector<1x1xf32> to vector<1x128xf32>
    %c0_170 = arith.constant 0 : index
    %c0_171 = arith.constant 0 : index
    %c0_172 = arith.constant 0 : index
    %318 = vector.load %arg25[%c0_170, %c0_171, %c0_172] : memref<1x1x128xf32, #tpu.memory_space<vmem>>, vector<1x1x128xf32>
    %319 = vector.shape_cast %318 : vector<1x1x128xf32> to vector<1x128xf32>
    %320 = vector.shape_cast %317 : vector<1x128xf32> to vector<1x1x128xf32>
    tpu.vector_store %arg25[%c0_170, %c0_171, %c0_172], %320 {strides = array<i32>} : memref<1x1x128xf32, #tpu.memory_space<vmem>>, vector<1x1x128xf32>,
    return
  }
  func.func @transform_0(%arg0: i32) -> (i32, i32, i32) {
    %c0_i32 = arith.constant 0 : i32
    %c0_i32_0 = arith.constant 0 : i32
    %c0_i32_1 = arith.constant 0 : i32
    return %arg0, %c0_i32, %c0_i32_0 : i32, i32, i32
  }
  func.func @transform_1(%arg0: i32) -> (i32, i32, i32) {
    %c0_i32 = arith.constant 0 : i32
    %c0_i32_0 = arith.constant 0 : i32
    %c0_i32_1 = arith.constant 0 : i32
    return %arg0, %c0_i32, %c0_i32_0 : i32, i32, i32
  }
  func.func @transform_2(%arg0: i32) -> (i32, i32) {
    %c0_i32 = arith.constant 0 : i32
    %c0_i32_0 = arith.constant 0 : i32
    %c0_i32_1 = arith.constant 0 : i32
    return %c0_i32, %c0_i32_0 : i32, i32
  }
  func.func @transform_3(%arg0: i32) -> (i32, i32) {
    %c0_i32 = arith.constant 0 : i32
    %c0_i32_0 = arith.constant 0 : i32
    %c0_i32_1 = arith.constant 0 : i32
    return %c0_i32, %c0_i32_0 : i32, i32
  }
  func.func @transform_4(%arg0: i32) -> (i32, i32, i32) {
    %c0_i32 = arith.constant 0 : i32
    %c0_i32_0 = arith.constant 0 : i32
    %c0_i32_1 = arith.constant 0 : i32
    %c0_i32_2 = arith.constant 0 : i32
    return %c0_i32, %c0_i32_0, %c0_i32_1 : i32, i32, i32
  }
  func.func @transform_5(%arg0: i32) -> (i32, i32, i32) {
    %c0_i32 = arith.constant 0 : i32
    %c0_i32_0 = arith.constant 0 : i32
    %c0_i32_1 = arith.constant 0 : i32
    %c0_i32_2 = arith.constant 0 : i32
    return %c0_i32, %c0_i32_0, %c0_i32_1 : i32, i32, i32
  }
  func.func @transform_6(%arg0: i32) -> (i32, i32, i32) {
    %c0_i32 = arith.constant 0 : i32
    %c0_i32_0 = arith.constant 0 : i32
    %c0_i32_1 = arith.constant 0 : i32
    %c0_i32_2 = arith.constant 0 : i32
    return %c0_i32, %c0_i32_0, %c0_i32_1 : i32, i32, i32
  }
  func.func @transform_7(%arg0: i32) -> (i32, i32, i32) {
    %c0_i32 = arith.constant 0 : i32
    %c0_i32_0 = arith.constant 0 : i32
    %c0_i32_1 = arith.constant 0 : i32
    %c0_i32_2 = arith.constant 0 : i32
    return %c0_i32, %c0_i32_0, %c0_i32_1 : i32, i32, i32
  }
  func.func @transform_8(%arg0: i32) -> (i32, i32, i32) {
    %c0_i32 = arith.constant 0 : i32
    %c0_i32_0 = arith.constant 0 : i32
    %c0_i32_1 = arith.constant 0 : i32
    %c0_i32_2 = arith.constant 0 : i32
    return %c0_i32, %c0_i32_0, %c0_i32_1 : i32, i32, i32
  }
  func.func @transform_9(%arg0: i32) -> (i32, i32, i32) {
    %c0_i32 = arith.constant 0 : i32
    %c0_i32_0 = arith.constant 0 : i32
    %c0_i32_1 = arith.constant 0 : i32
    %c0_i32_2 = arith.constant 0 : i32
    return %c0_i32, %c0_i32_0, %c0_i32_1 : i32, i32, i32
  }
  func.func @transform_10(%arg0: i32) -> (i32, i32, i32) {
    %c0_i32 = arith.constant 0 : i32
    %c0_i32_0 = arith.constant 0 : i32
    %c0_i32_1 = arith.constant 0 : i32
    %c0_i32_2 = arith.constant 0 : i32
    return %c0_i32, %c0_i32_0, %c0_i32_1 : i32, i32, i32
  }
  func.func @transform_11(%arg0: i32) -> (i32, i32, i32) {
    %c0_i32 = arith.constant 0 : i32
    %c0_i32_0 = arith.constant 0 : i32
    %c0_i32_1 = arith.constant 0 : i32
    %c0_i32_2 = arith.constant 0 : i32
    return %c0_i32, %c0_i32_0, %c0_i32_1 : i32, i32, i32
  }
  func.func @transform_12(%arg0: i32) -> (i32, i32, i32) {
    %c0_i32 = arith.constant 0 : i32
    %c0_i32_0 = arith.constant 0 : i32
    %c0_i32_1 = arith.constant 0 : i32
    %c0_i32_2 = arith.constant 0 : i32
    return %c0_i32, %c0_i32_0, %c0_i32_1 : i32, i32, i32
  }
  func.func @transform_13(%arg0: i32) -> (i32, i32, i32) {
    %c0_i32 = arith.constant 0 : i32
    %c0_i32_0 = arith.constant 0 : i32
    %c0_i32_1 = arith.constant 0 : i32
    %c0_i32_2 = arith.constant 0 : i32
    return %c0_i32, %c0_i32_0, %c0_i32_1 : i32, i32, i32
  }
  func.func @transform_14(%arg0: i32) -> (i32, i32, i32) {
    %c0_i32 = arith.constant 0 : i32
    %c0_i32_0 = arith.constant 0 : i32
    %c0_i32_1 = arith.constant 0 : i32
    %c0_i32_2 = arith.constant 0 : i32
    return %c0_i32, %c0_i32_0, %c0_i32_1 : i32, i32, i32
  }
  func.func @transform_15(%arg0: i32) -> (i32, i32, i32) {
    %c0_i32 = arith.constant 0 : i32
    %c0_i32_0 = arith.constant 0 : i32
    %c0_i32_1 = arith.constant 0 : i32
    %c0_i32_2 = arith.constant 0 : i32
    return %c0_i32, %c0_i32_0, %c0_i32_1 : i32, i32, i32
  }
  func.func @transform_16(%arg0: i32) -> (i32, i32, i32) {
    %c0_i32 = arith.constant 0 : i32
    %c0_i32_0 = arith.constant 0 : i32
    %c0_i32_1 = arith.constant 0 : i32
    %c0_i32_2 = arith.constant 0 : i32
    return %c0_i32, %c0_i32_0, %c0_i32_1 : i32, i32, i32
  }
  func.func @transform_17(%arg0: i32) -> (i32, i32, i32) {
    %c0_i32 = arith.constant 0 : i32
    %c0_i32_0 = arith.constant 0 : i32
    %c0_i32_1 = arith.constant 0 : i32
    %c0_i32_2 = arith.constant 0 : i32
    return %c0_i32, %c0_i32_0, %c0_i32_1 : i32, i32, i32
  }
  func.func @transform_18(%arg0: i32) -> (i32, i32, i32) {
    %c0_i32 = arith.constant 0 : i32
    %c0_i32_0 = arith.constant 0 : i32
    %c0_i32_1 = arith.constant 0 : i32
    %c0_i32_2 = arith.constant 0 : i32
    return %c0_i32, %c0_i32_0, %c0_i32_1 : i32, i32, i32
  }
  func.func @transform_19(%arg0: i32) -> (i32, i32, i32) {
    %c0_i32 = arith.constant 0 : i32
    %c0_i32_0 = arith.constant 0 : i32
    %c0_i32_1 = arith.constant 0 : i32
    %c0_i32_2 = arith.constant 0 : i32
    return %c0_i32, %c0_i32_0, %c0_i32_1 : i32, i32, i32
  }
  func.func @transform_20(%arg0: i32) -> (i32, i32) {
    %c0_i32 = arith.constant 0 : i32
    %c0_i32_0 = arith.constant 0 : i32
    %c0_i32_1 = arith.constant 0 : i32
    return %c0_i32, %c0_i32_0 : i32, i32
  }
  func.func @transform_21(%arg0: i32) -> (i32, i32) {
    %c0_i32 = arith.constant 0 : i32
    %c0_i32_0 = arith.constant 0 : i32
    %c0_i32_1 = arith.constant 0 : i32
    return %c0_i32, %c0_i32_0 : i32, i32
  }
  func.func @transform_22(%arg0: i32) -> (i32, i32) {
    %c0_i32 = arith.constant 0 : i32
    %c0_i32_0 = arith.constant 0 : i32
    %c0_i32_1 = arith.constant 0 : i32
    return %c0_i32, %c0_i32_0 : i32, i32
  }
  func.func @transform_23(%arg0: i32) -> (i32, i32) {
    %c0_i32 = arith.constant 0 : i32
    %c0_i32_0 = arith.constant 0 : i32
    %c0_i32_1 = arith.constant 0 : i32
    return %c0_i32, %c0_i32_0 : i32, i32
  }
  func.func @transform_24(%arg0: i32) -> (i32, i32, i32) {
    %c0_i32 = arith.constant 0 : i32
    %c0_i32_0 = arith.constant 0 : i32
    %c0_i32_1 = arith.constant 0 : i32
    return %arg0, %c0_i32, %c0_i32_0 : i32, i32, i32
  }
}

</mosaic_0001>

<llo_original>
// kernel: single_head_longformer_forward.1
$region0: #{single_head_longformer_forward.1}
  #allocation0 [shape = 'u32[]', space=smem, size = 0x4, offset = 0x4, fixed_abs, tag = 'smem constant byte address 0x4 - core index']
  #allocation1 [shape = 'u32[144,128]{1,0:T(1,128)}', space=vmem, size = 0x12000, scoped, tag = 'internal scratch']
  #allocation2 [shape = 'f32[1,1]{1,0:T(1,128)S(1)}', space=vmem, size = 0x200, scoped, tag = 'scoped memory for single_head_longformer_forward.1']
  %s0 = inlined_call_operand.vmem [shape: f32[2,128,64], index: 0, kind: input, shape index: {}]
  %s1 = inlined_call_operand.vmem [shape: f32[2,1,128], index: 1, kind: input, shape index: {}]
  %s2 = inlined_call_operand.vmem [shape: f32[1,64], index: 2, kind: input, shape index: {}]
  %s3 = inlined_call_operand.vmem [shape: f32[1,64], index: 3, kind: input, shape index: {}]
  %s4 = inlined_call_operand.vmem [shape: bf16[2,64,64], index: 4, kind: input, shape index: {}]
  %s5 = inlined_call_operand.vmem [shape: f32[2,1,64], index: 5, kind: input, shape index: {}, may-alias: {5,7,9,11,13,17,19}]
  %s6 = inlined_call_operand.vmem [shape: bf16[2,64,64], index: 6, kind: input, shape index: {}]
  %s7 = inlined_call_operand.vmem [shape: f32[2,1,64], index: 7, kind: input, shape index: {}, may-alias: {5,7,9,11,13,17,19}]
  %s8 = inlined_call_operand.vmem [shape: bf16[2,64,64], index: 8, kind: input, shape index: {}]
  %s9 = inlined_call_operand.vmem [shape: f32[2,1,64], index: 9, kind: input, shape index: {}, may-alias: {5,7,9,11,13,17,19}]
  %s10 = inlined_call_operand.vmem [shape: bf16[2,64,64], index: 10, kind: input, shape index: {}]
  %s11 = inlined_call_operand.vmem [shape: f32[2,1,64], index: 11, kind: input, shape index: {}, may-alias: {5,7,9,11,13,17,19}]
  %s12 = inlined_call_operand.vmem [shape: f32[2,1,64], index: 12, kind: input, shape index: {}, may-alias: {12,18}]
  %s13 = inlined_call_operand.vmem [shape: f32[2,1,64], index: 13, kind: input, shape index: {}, may-alias: {5,7,9,11,13,17,19}]
  %s14 = inlined_call_operand.vmem [shape: bf16[2,64,128], index: 14, kind: input, shape index: {}]
  %s15 = inlined_call_operand.vmem [shape: f32[2,1,128], index: 15, kind: input, shape index: {}]
  %s16 = inlined_call_operand.vmem [shape: bf16[2,128,64], index: 16, kind: input, shape index: {}]
  %s17 = inlined_call_operand.vmem [shape: f32[2,1,64], index: 17, kind: input, shape index: {}, may-alias: {5,7,9,11,13,17,19}]
  %s18 = inlined_call_operand.vmem [shape: f32[2,1,64], index: 18, kind: input, shape index: {}, may-alias: {12,18}]
  %s19 = inlined_call_operand.vmem [shape: f32[2,1,64], index: 19, kind: input, shape index: {}, may-alias: {5,7,9,11,13,17,19}]
  %s20 = inlined_call_operand.vmem [shape: bf16[64,512], index: 20, kind: input, shape index: {}]
  %s21 = inlined_call_operand.vmem [shape: f32[1,512], index: 21, kind: input, shape index: {}]
  %s22 = inlined_call_operand.vmem [shape: bf16[1,512], index: 22, kind: input, shape index: {}]
  %s23 = inlined_call_operand.<no memory space> [shape: f32[1,1], index: 23, kind: input, shape index: {}]
  %s24 = inlined_call_operand.vmem [shape: f32[2,1,128], index: 24, kind: output, shape index: {}]
  %s25 = sld [smem:[#allocation0]]
  $region129: #{single_head_longformer_forward.1} parent=0
    _
  %s27 = ssub.s32 1, %s25
  %s28 = scalar_select 0, %s27, %s25
  %v29 = vstv %s23
  %30 = vst [vmem:[#allocation2] sm:$0x1] %v29
  loop: start=0, step=1, limit=4
  $region2: #{single_head_longformer_forward.1} parent=0 // loop_pre_header
    _
  $region3: #{single_head_longformer_forward.1} parent=0 // loop_header
    %s32 = sphi 0, %s36
    %p33 = scmp.ge.s32.totalorder %s32, 4
    %s42 = sphi 0, %s44
    %s45 = sphi 0, %s42
    %s46 = sphi 0, %s45
    %s62 = sphi 0, %s46
    %s68 = sphi 0, %s70
    %s71 = sphi 0, %s68
    %s72 = sphi 0, %s71
    %s88 = sphi 0, %s72
    %s92 = sphi 0, %s92
    %s94 = sphi 0, %s92
    %s95 = sphi 0, %s94
    %s109 = sphi 0, %s95
    %s113 = sphi 0, %s113
    %s115 = sphi 0, %s113
    %s116 = sphi 0, %s115
    %s130 = sphi 0, %s116
    %s134 = sphi 0, %s134
    %s136 = sphi 0, %s134
    %s137 = sphi 0, %s136
    %s151 = sphi 0, %s137
    %s155 = sphi 0, %s155
    %s157 = sphi 0, %s155
    %s158 = sphi 0, %s157
    %s172 = sphi 0, %s158
    %s176 = sphi 0, %s176
    %s178 = sphi 0, %s176
    %s179 = sphi 0, %s178
    %s193 = sphi 0, %s179
    %s197 = sphi 0, %s197
    %s199 = sphi 0, %s197
    %s200 = sphi 0, %s199
    %s214 = sphi 0, %s200
    %s218 = sphi 0, %s218
    %s220 = sphi 0, %s218
    %s221 = sphi 0, %s220
    %s235 = sphi 0, %s221
    %s239 = sphi 0, %s239
    %s241 = sphi 0, %s239
    %s242 = sphi 0, %s241
    %s256 = sphi 0, %s242
    %s260 = sphi 0, %s260
    %s262 = sphi 0, %s260
    %s263 = sphi 0, %s262
    %s277 = sphi 0, %s263
    %s281 = sphi 0, %s281
    %s283 = sphi 0, %s281
    %s284 = sphi 0, %s283
    %s298 = sphi 0, %s284
    %s302 = sphi 0, %s302
    %s304 = sphi 0, %s302
    %s305 = sphi 0, %s304
    %s319 = sphi 0, %s305
    %s323 = sphi 0, %s323
    %s325 = sphi 0, %s323
    %s326 = sphi 0, %s325
    %s340 = sphi 0, %s326
    %s344 = sphi 0, %s344
    %s346 = sphi 0, %s344
    %s347 = sphi 0, %s346
    %s361 = sphi 0, %s347
    %s365 = sphi 0, %s365
    %s367 = sphi 0, %s365
    %s368 = sphi 0, %s367
    %s382 = sphi 0, %s368
    %s386 = sphi 0, %s386
    %s388 = sphi 0, %s386
    %s389 = sphi 0, %s388
    %s403 = sphi 0, %s389
    %s407 = sphi 0, %s407
    %s409 = sphi 0, %s407
    %s410 = sphi 0, %s409
    %s424 = sphi 0, %s410
    %s428 = sphi 0, %s428
    %s430 = sphi 0, %s428
    %s431 = sphi 0, %s430
    %s445 = sphi 0, %s431
    %s449 = sphi 0, %s449
    %s451 = sphi 0, %s449
    %s452 = sphi 0, %s451
    %s466 = sphi 0, %s452
    %s470 = sphi 0, %s470
    %s472 = sphi 0, %s470
    %s473 = sphi 0, %s472
    %s487 = sphi 0, %s473
    %s491 = sphi 0, %s491
    %s493 = sphi 0, %s491
    %s494 = sphi 0, %s493
    %s508 = sphi 0, %s494
    %s512 = sphi 0, %s512
    %s514 = sphi 0, %s512
    %s515 = sphi 0, %s514
    %s529 = sphi 0, %s515
    %s533 = sphi 0, %s533
    %s535 = sphi 0, %s533
    %s536 = sphi 0, %s535
    %s550 = sphi 0, %s536
    %s556 = sphi 0, %s558
    %s559 = sphi 0, %s556
    %s560 = sphi 0, %s559
    %s576 = sphi 0, %s560
  $region4: #{single_head_longformer_forward.1} parent=0 // loop_header_branch
    %35 = sbr.rel (%p33) target = $region8
  $region5: #{single_head_longformer_forward.1} parent=0 // loop_body
    %s37 = ssub.s32 %s32, 1
    %s38 = ssub.s32 %s32, 2
    %s39 = sadd.s32 %s32, 1
    %s40 = ssub.s32 %s32, %s39
    %p41 = scmp.eq.s32.totalorder %s40, 0
    %s43 = sadd.s32 %s42, 1
    %s44 = scalar_select %p41, %s42, %s43
    %p47 = pneg %p41
    %p48 = scmp.eq.s32.totalorder %s32, 1
    %p49 = por %p47, %p48
    %p50 = scmp.ne.s32.totalorder %s42, %s45
    %p51 = scmp.eq.s32.totalorder %s32, 0
    %p52 = por %p50, %p51
    %p53 = scmp.ne.s32.totalorder %s42, %s45
    %p54 = scmp.eq.s32.totalorder %s37, 1
    %p55 = por %p53, %p54
    %p56 = scmp.ne.s32.totalorder %s45, %s46
    %p57 = scmp.eq.s32.totalorder %s37, 0
    %p58 = por %p56, %p57
    %p59 = scmp.ne.s32.totalorder %s45, %s46
    %p60 = scmp.eq.s32.totalorder %s38, 1
    %p61 = por %p59, %p60
    %p63 = scmp.ne.s32.totalorder %s46, %s62
    %p64 = scmp.eq.s32.totalorder %s38, 0
    %p65 = por %p63, %p64
    %s66 = ssub.s32 %s32, %s39
    %p67 = scmp.eq.s32.totalorder %s66, 0
    %s69 = sadd.s32 %s68, 1
    %s70 = scalar_select %p67, %s68, %s69
    %p73 = pneg %p67
    %p74 = scmp.eq.s32.totalorder %s32, 1
    %p75 = por %p73, %p74
    %p76 = scmp.ne.s32.totalorder %s68, %s71
    %p77 = scmp.eq.s32.totalorder %s32, 0
    %p78 = por %p76, %p77
    %p79 = scmp.ne.s32.totalorder %s68, %s71
    %p80 = scmp.eq.s32.totalorder %s37, 1
    %p81 = por %p79, %p80
    %p82 = scmp.ne.s32.totalorder %s71, %s72
    %p83 = scmp.eq.s32.totalorder %s37, 0
    %p84 = por %p82, %p83
    %p85 = scmp.ne.s32.totalorder %s71, %s72
    %p86 = scmp.eq.s32.totalorder %s38, 1
    %p87 = por %p85, %p86
    %p89 = scmp.ne.s32.totalorder %s72, %s88
    %p90 = scmp.eq.s32.totalorder %s38, 0
    %p91 = por %p89, %p90
    %s93 = sadd.s32 %s92, 1
    %p96 = scmp.eq.s32.totalorder %s32, 1
    %p97 = scmp.ne.s32.totalorder %s92, %s94
    %p98 = scmp.eq.s32.totalorder %s32, 0
    %p99 = por %p97, %p98
    %p100 = scmp.ne.s32.totalorder %s92, %s94
    %p101 = scmp.eq.s32.totalorder %s37, 1
    %p102 = por %p100, %p101
    %p103 = scmp.ne.s32.totalorder %s94, %s95
    %p104 = scmp.eq.s32.totalorder %s37, 0
    %p105 = por %p103, %p104
    %p106 = scmp.ne.s32.totalorder %s94, %s95
    %p107 = scmp.eq.s32.totalorder %s38, 1
    %p108 = por %p106, %p107
    %p110 = scmp.ne.s32.totalorder %s95, %s109
    %p111 = scmp.eq.s32.totalorder %s38, 0
    %p112 = por %p110, %p111
    %s114 = sadd.s32 %s113, 1
    %p117 = scmp.eq.s32.totalorder %s32, 1
    %p118 = scmp.ne.s32.totalorder %s113, %s115
    %p119 = scmp.eq.s32.totalorder %s32, 0
    %p120 = por %p118, %p119
    %p121 = scmp.ne.s32.totalorder %s113, %s115
    %p122 = scmp.eq.s32.totalorder %s37, 1
    %p123 = por %p121, %p122
    %p124 = scmp.ne.s32.totalorder %s115, %s116
    %p125 = scmp.eq.s32.totalorder %s37, 0
    %p126 = por %p124, %p125
    %p127 = scmp.ne.s32.totalorder %s115, %s116
    %p128 = scmp.eq.s32.totalorder %s38, 1
    %p129 = por %p127, %p128
    %p131 = scmp.ne.s32.totalorder %s116, %s130
    %p132 = scmp.eq.s32.totalorder %s38, 0
    %p133 = por %p131, %p132
    %s135 = sadd.s32 %s134, 1
    %p138 = scmp.eq.s32.totalorder %s32, 1
    %p139 = scmp.ne.s32.totalorder %s134, %s136
    %p140 = scmp.eq.s32.totalorder %s32, 0
    %p141 = por %p139, %p140
    %p142 = scmp.ne.s32.totalorder %s134, %s136
    %p143 = scmp.eq.s32.totalorder %s37, 1
    %p144 = por %p142, %p143
    %p145 = scmp.ne.s32.totalorder %s136, %s137
    %p146 = scmp.eq.s32.totalorder %s37, 0
    %p147 = por %p145, %p146
    %p148 = scmp.ne.s32.totalorder %s136, %s137
    %p149 = scmp.eq.s32.totalorder %s38, 1
    %p150 = por %p148, %p149
    %p152 = scmp.ne.s32.totalorder %s137, %s151
    %p153 = scmp.eq.s32.totalorder %s38, 0
    %p154 = por %p152, %p153
    %s156 = sadd.s32 %s155, 1
    %p159 = scmp.eq.s32.totalorder %s32, 1
    %p160 = scmp.ne.s32.totalorder %s155, %s157
    %p161 = scmp.eq.s32.totalorder %s32, 0
    %p162 = por %p160, %p161
    %p163 = scmp.ne.s32.totalorder %s155, %s157
    %p164 = scmp.eq.s32.totalorder %s37, 1
    %p165 = por %p163, %p164
    %p166 = scmp.ne.s32.totalorder %s157, %s158
    %p167 = scmp.eq.s32.totalorder %s37, 0
    %p168 = por %p166, %p167
    %p169 = scmp.ne.s32.totalorder %s157, %s158
    %p170 = scmp.eq.s32.totalorder %s38, 1
    %p171 = por %p169, %p170
    %p173 = scmp.ne.s32.totalorder %s158, %s172
    %p174 = scmp.eq.s32.totalorder %s38, 0
    %p175 = por %p173, %p174
    %s177 = sadd.s32 %s176, 1
    %p180 = scmp.eq.s32.totalorder %s32, 1
    %p181 = scmp.ne.s32.totalorder %s176, %s178
    %p182 = scmp.eq.s32.totalorder %s32, 0
    %p183 = por %p181, %p182
    %p184 = scmp.ne.s32.totalorder %s176, %s178
    %p185 = scmp.eq.s32.totalorder %s37, 1
    %p186 = por %p184, %p185
    %p187 = scmp.ne.s32.totalorder %s178, %s179
    %p188 = scmp.eq.s32.totalorder %s37, 0
    %p189 = por %p187, %p188
    %p190 = scmp.ne.s32.totalorder %s178, %s179
    %p191 = scmp.eq.s32.totalorder %s38, 1
    %p192 = por %p190, %p191
    %p194 = scmp.ne.s32.totalorder %s179, %s193
    %p195 = scmp.eq.s32.totalorder %s38, 0
    %p196 = por %p194, %p195
    %s198 = sadd.s32 %s197, 1
    %p201 = scmp.eq.s32.totalorder %s32, 1
    %p202 = scmp.ne.s32.totalorder %s197, %s199
    %p203 = scmp.eq.s32.totalorder %s32, 0
    %p204 = por %p202, %p203
    %p205 = scmp.ne.s32.totalorder %s197, %s199
    %p206 = scmp.eq.s32.totalorder %s37, 1
    %p207 = por %p205, %p206
    %p208 = scmp.ne.s32.totalorder %s199, %s200
    %p209 = scmp.eq.s32.totalorder %s37, 0
    %p210 = por %p208, %p209
    %p211 = scmp.ne.s32.totalorder %s199, %s200
    %p212 = scmp.eq.s32.totalorder %s38, 1
    %p213 = por %p211, %p212
    %p215 = scmp.ne.s32.totalorder %s200, %s214
    %p216 = scmp.eq.s32.totalorder %s38, 0
    %p217 = por %p215, %p216
    %s219 = sadd.s32 %s218, 1
    %p222 = scmp.eq.s32.totalorder %s32, 1
    %p223 = scmp.ne.s32.totalorder %s218, %s220
    %p224 = scmp.eq.s32.totalorder %s32, 0
    %p225 = por %p223, %p224
    %p226 = scmp.ne.s32.totalorder %s218, %s220
    %p227 = scmp.eq.s32.totalorder %s37, 1
    %p228 = por %p226, %p227
    %p229 = scmp.ne.s32.totalorder %s220, %s221
    %p230 = scmp.eq.s32.totalorder %s37, 0
    %p231 = por %p229, %p230
    %p232 = scmp.ne.s32.totalorder %s220, %s221
    %p233 = scmp.eq.s32.totalorder %s38, 1
    %p234 = por %p232, %p233
    %p236 = scmp.ne.s32.totalorder %s221, %s235
    %p237 = scmp.eq.s32.totalorder %s38, 0
    %p238 = por %p236, %p237
    %s240 = sadd.s32 %s239, 1
    %p243 = scmp.eq.s32.totalorder %s32, 1
    %p244 = scmp.ne.s32.totalorder %s239, %s241
    %p245 = scmp.eq.s32.totalorder %s32, 0
    %p246 = por %p244, %p245
    %p247 = scmp.ne.s32.totalorder %s239, %s241
    %p248 = scmp.eq.s32.totalorder %s37, 1
    %p249 = por %p247, %p248
    %p250 = scmp.ne.s32.totalorder %s241, %s242
    %p251 = scmp.eq.s32.totalorder %s37, 0
    %p252 = por %p250, %p251
    %p253 = scmp.ne.s32.totalorder %s241, %s242
    %p254 = scmp.eq.s32.totalorder %s38, 1
    %p255 = por %p253, %p254
    %p257 = scmp.ne.s32.totalorder %s242, %s256
    %p258 = scmp.eq.s32.totalorder %s38, 0
    %p259 = por %p257, %p258
    %s261 = sadd.s32 %s260, 1
    %p264 = scmp.eq.s32.totalorder %s32, 1
    %p265 = scmp.ne.s32.totalorder %s260, %s262
    %p266 = scmp.eq.s32.totalorder %s32, 0
    %p267 = por %p265, %p266
    %p268 = scmp.ne.s32.totalorder %s260, %s262
    %p269 = scmp.eq.s32.totalorder %s37, 1
    %p270 = por %p268, %p269
    %p271 = scmp.ne.s32.totalorder %s262, %s263
    %p272 = scmp.eq.s32.totalorder %s37, 0
    %p273 = por %p271, %p272
    %p274 = scmp.ne.s32.totalorder %s262, %s263
    %p275 = scmp.eq.s32.totalorder %s38, 1
    %p276 = por %p274, %p275
    %p278 = scmp.ne.s32.totalorder %s263, %s277
    %p279 = scmp.eq.s32.totalorder %s38, 0
    %p280 = por %p278, %p279
    %s282 = sadd.s32 %s281, 1
    %p285 = scmp.eq.s32.totalorder %s32, 1
    %p286 = scmp.ne.s32.totalorder %s281, %s283
    %p287 = scmp.eq.s32.totalorder %s32, 0
    %p288 = por %p286, %p287
    %p289 = scmp.ne.s32.totalorder %s281, %s283
    %p290 = scmp.eq.s32.totalorder %s37, 1
    %p291 = por %p289, %p290
    %p292 = scmp.ne.s32.totalorder %s283, %s284
    %p293 = scmp.eq.s32.totalorder %s37, 0
    %p294 = por %p292, %p293
    %p295 = scmp.ne.s32.totalorder %s283, %s284
    %p296 = scmp.eq.s32.totalorder %s38, 1
    %p297 = por %p295, %p296
    %p299 = scmp.ne.s32.totalorder %s284, %s298
    %p300 = scmp.eq.s32.totalorder %s38, 0
    %p301 = por %p299, %p300
    %s303 = sadd.s32 %s302, 1
    %p306 = scmp.eq.s32.totalorder %s32, 1
    %p307 = scmp.ne.s32.totalorder %s302, %s304
    %p308 = scmp.eq.s32.totalorder %s32, 0
    %p309 = por %p307, %p308
    %p310 = scmp.ne.s32.totalorder %s302, %s304
    %p311 = scmp.eq.s32.totalorder %s37, 1
    %p312 = por %p310, %p311
    %p313 = scmp.ne.s32.totalorder %s304, %s305
    %p314 = scmp.eq.s32.totalorder %s37, 0
    %p315 = por %p313, %p314
    %p316 = scmp.ne.s32.totalorder %s304, %s305
    %p317 = scmp.eq.s32.totalorder %s38, 1
    %p318 = por %p316, %p317
    %p320 = scmp.ne.s32.totalorder %s305, %s319
    %p321 = scmp.eq.s32.totalorder %s38, 0
    %p322 = por %p320, %p321
    %s324 = sadd.s32 %s323, 1
    %p327 = scmp.eq.s32.totalorder %s32, 1
    %p328 = scmp.ne.s32.totalorder %s323, %s325
    %p329 = scmp.eq.s32.totalorder %s32, 0
    %p330 = por %p328, %p329
    %p331 = scmp.ne.s32.totalorder %s323, %s325
    %p332 = scmp.eq.s32.totalorder %s37, 1
    %p333 = por %p331, %p332
    %p334 = scmp.ne.s32.totalorder %s325, %s326
    %p335 = scmp.eq.s32.totalorder %s37, 0
    %p336 = por %p334, %p335
    %p337 = scmp.ne.s32.totalorder %s325, %s326
    %p338 = scmp.eq.s32.totalorder %s38, 1
    %p339 = por %p337, %p338
    %p341 = scmp.ne.s32.totalorder %s326, %s340
    %p342 = scmp.eq.s32.totalorder %s38, 0
    %p343 = por %p341, %p342
    %s345 = sadd.s32 %s344, 1
    %p348 = scmp.eq.s32.totalorder %s32, 1
    %p349 = scmp.ne.s32.totalorder %s344, %s346
    %p350 = scmp.eq.s32.totalorder %s32, 0
    %p351 = por %p349, %p350
    %p352 = scmp.ne.s32.totalorder %s344, %s346
    %p353 = scmp.eq.s32.totalorder %s37, 1
    %p354 = por %p352, %p353
    %p355 = scmp.ne.s32.totalorder %s346, %s347
    %p356 = scmp.eq.s32.totalorder %s37, 0
    %p357 = por %p355, %p356
    %p358 = scmp.ne.s32.totalorder %s346, %s347
    %p359 = scmp.eq.s32.totalorder %s38, 1
    %p360 = por %p358, %p359
    %p362 = scmp.ne.s32.totalorder %s347, %s361
    %p363 = scmp.eq.s32.totalorder %s38, 0
    %p364 = por %p362, %p363
    %s366 = sadd.s32 %s365, 1
    %p369 = scmp.eq.s32.totalorder %s32, 1
    %p370 = scmp.ne.s32.totalorder %s365, %s367
    %p371 = scmp.eq.s32.totalorder %s32, 0
    %p372 = por %p370, %p371
    %p373 = scmp.ne.s32.totalorder %s365, %s367
    %p374 = scmp.eq.s32.totalorder %s37, 1
    %p375 = por %p373, %p374
    %p376 = scmp.ne.s32.totalorder %s367, %s368
    %p377 = scmp.eq.s32.totalorder %s37, 0
    %p378 = por %p376, %p377
    %p379 = scmp.ne.s32.totalorder %s367, %s368
    %p380 = scmp.eq.s32.totalorder %s38, 1
    %p381 = por %p379, %p380
    %p383 = scmp.ne.s32.totalorder %s368, %s382
    %p384 = scmp.eq.s32.totalorder %s38, 0
    %p385 = por %p383, %p384
    %s387 = sadd.s32 %s386, 1
    %p390 = scmp.eq.s32.totalorder %s32, 1
    %p391 = scmp.ne.s32.totalorder %s386, %s388
    %p392 = scmp.eq.s32.totalorder %s32, 0
    %p393 = por %p391, %p392
    %p394 = scmp.ne.s32.totalorder %s386, %s388
    %p395 = scmp.eq.s32.totalorder %s37, 1
    %p396 = por %p394, %p395
    %p397 = scmp.ne.s32.totalorder %s388, %s389
    %p398 = scmp.eq.s32.totalorder %s37, 0
    %p399 = por %p397, %p398
    %p400 = scmp.ne.s32.totalorder %s388, %s389
    %p401 = scmp.eq.s32.totalorder %s38, 1
    %p402 = por %p400, %p401
    %p404 = scmp.ne.s32.totalorder %s389, %s403
    %p405 = scmp.eq.s32.totalorder %s38, 0
    %p406 = por %p404, %p405
    %s408 = sadd.s32 %s407, 1
    %p411 = scmp.eq.s32.totalorder %s32, 1
    %p412 = scmp.ne.s32.totalorder %s407, %s409
    %p413 = scmp.eq.s32.totalorder %s32, 0
    %p414 = por %p412, %p413
    %p415 = scmp.ne.s32.totalorder %s407, %s409
    %p416 = scmp.eq.s32.totalorder %s37, 1
    %p417 = por %p415, %p416
    %p418 = scmp.ne.s32.totalorder %s409, %s410
    %p419 = scmp.eq.s32.totalorder %s37, 0
    %p420 = por %p418, %p419
    %p421 = scmp.ne.s32.totalorder %s409, %s410
    %p422 = scmp.eq.s32.totalorder %s38, 1
    %p423 = por %p421, %p422
    %p425 = scmp.ne.s32.totalorder %s410, %s424
    %p426 = scmp.eq.s32.totalorder %s38, 0
    %p427 = por %p425, %p426
    %s429 = sadd.s32 %s428, 1
    %p432 = scmp.eq.s32.totalorder %s32, 1
    %p433 = scmp.ne.s32.totalorder %s428, %s430
    %p434 = scmp.eq.s32.totalorder %s32, 0
    %p435 = por %p433, %p434
    %p436 = scmp.ne.s32.totalorder %s428, %s430
    %p437 = scmp.eq.s32.totalorder %s37, 1
    %p438 = por %p436, %p437
    %p439 = scmp.ne.s32.totalorder %s430, %s431
    %p440 = scmp.eq.s32.totalorder %s37, 0
    %p441 = por %p439, %p440
    %p442 = scmp.ne.s32.totalorder %s430, %s431
    %p443 = scmp.eq.s32.totalorder %s38, 1
    %p444 = por %p442, %p443
    %p446 = scmp.ne.s32.totalorder %s431, %s445
    %p447 = scmp.eq.s32.totalorder %s38, 0
    %p448 = por %p446, %p447
    %s450 = sadd.s32 %s449, 1
    %p453 = scmp.eq.s32.totalorder %s32, 1
    %p454 = scmp.ne.s32.totalorder %s449, %s451
    %p455 = scmp.eq.s32.totalorder %s32, 0
    %p456 = por %p454, %p455
    %p457 = scmp.ne.s32.totalorder %s449, %s451
    %p458 = scmp.eq.s32.totalorder %s37, 1
    %p459 = por %p457, %p458
    %p460 = scmp.ne.s32.totalorder %s451, %s452
    %p461 = scmp.eq.s32.totalorder %s37, 0
    %p462 = por %p460, %p461
    %p463 = scmp.ne.s32.totalorder %s451, %s452
    %p464 = scmp.eq.s32.totalorder %s38, 1
    %p465 = por %p463, %p464
    %p467 = scmp.ne.s32.totalorder %s452, %s466
    %p468 = scmp.eq.s32.totalorder %s38, 0
    %p469 = por %p467, %p468
    %s471 = sadd.s32 %s470, 1
    %p474 = scmp.eq.s32.totalorder %s32, 1
    %p475 = scmp.ne.s32.totalorder %s470, %s472
    %p476 = scmp.eq.s32.totalorder %s32, 0
    %p477 = por %p475, %p476
    %p478 = scmp.ne.s32.totalorder %s470, %s472
    %p479 = scmp.eq.s32.totalorder %s37, 1
    %p480 = por %p478, %p479
    %p481 = scmp.ne.s32.totalorder %s472, %s473
    %p482 = scmp.eq.s32.totalorder %s37, 0
    %p483 = por %p481, %p482
    %p484 = scmp.ne.s32.totalorder %s472, %s473
    %p485 = scmp.eq.s32.totalorder %s38, 1
    %p486 = por %p484, %p485
    %p488 = scmp.ne.s32.totalorder %s473, %s487
    %p489 = scmp.eq.s32.totalorder %s38, 0
    %p490 = por %p488, %p489
    %s492 = sadd.s32 %s491, 1
    %p495 = scmp.eq.s32.totalorder %s32, 1
    %p496 = scmp.ne.s32.totalorder %s491, %s493
    %p497 = scmp.eq.s32.totalorder %s32, 0
    %p498 = por %p496, %p497
    %p499 = scmp.ne.s32.totalorder %s491, %s493
    %p500 = scmp.eq.s32.totalorder %s37, 1
    %p501 = por %p499, %p500
    %p502 = scmp.ne.s32.totalorder %s493, %s494
    %p503 = scmp.eq.s32.totalorder %s37, 0
    %p504 = por %p502, %p503
    %p505 = scmp.ne.s32.totalorder %s493, %s494
    %p506 = scmp.eq.s32.totalorder %s38, 1
    %p507 = por %p505, %p506
    %p509 = scmp.ne.s32.totalorder %s494, %s508
    %p510 = scmp.eq.s32.totalorder %s38, 0
    %p511 = por %p509, %p510
    %s513 = sadd.s32 %s512, 1
    %p516 = scmp.eq.s32.totalorder %s32, 1
    %p517 = scmp.ne.s32.totalorder %s512, %s514
    %p518 = scmp.eq.s32.totalorder %s32, 0
    %p519 = por %p517, %p518
    %p520 = scmp.ne.s32.totalorder %s512, %s514
    %p521 = scmp.eq.s32.totalorder %s37, 1
    %p522 = por %p520, %p521
    %p523 = scmp.ne.s32.totalorder %s514, %s515
    %p524 = scmp.eq.s32.totalorder %s37, 0
    %p525 = por %p523, %p524
    %p526 = scmp.ne.s32.totalorder %s514, %s515
    %p527 = scmp.eq.s32.totalorder %s38, 1
    %p528 = por %p526, %p527
    %p530 = scmp.ne.s32.totalorder %s515, %s529
    %p531 = scmp.eq.s32.totalorder %s38, 0
    %p532 = por %p530, %p531
    %s534 = sadd.s32 %s533, 1
    %p537 = scmp.eq.s32.totalorder %s32, 1
    %p538 = scmp.ne.s32.totalorder %s533, %s535
    %p539 = scmp.eq.s32.totalorder %s32, 0
    %p540 = por %p538, %p539
    %p541 = scmp.ne.s32.totalorder %s533, %s535
    %p542 = scmp.eq.s32.totalorder %s37, 1
    %p543 = por %p541, %p542
    %p544 = scmp.ne.s32.totalorder %s535, %s536
    %p545 = scmp.eq.s32.totalorder %s37, 0
    %p546 = por %p544, %p545
    %p547 = scmp.ne.s32.totalorder %s535, %s536
    %p548 = scmp.eq.s32.totalorder %s38, 1
    %p549 = por %p547, %p548
    %p551 = scmp.ne.s32.totalorder %s536, %s550
    %p552 = scmp.eq.s32.totalorder %s38, 0
    %p553 = por %p551, %p552
    %s554 = ssub.s32 %s32, %s39
    %p555 = scmp.eq.s32.totalorder %s554, 0
    %s557 = sadd.s32 %s556, 1
    %s558 = scalar_select %p555, %s556, %s557
    %p561 = pneg %p555
    %p562 = scmp.eq.s32.totalorder %s32, 1
    %p563 = por %p561, %p562
    %p564 = scmp.ne.s32.totalorder %s556, %s559
    %p565 = scmp.eq.s32.totalorder %s32, 0
    %p566 = por %p564, %p565
    %p567 = scmp.ne.s32.totalorder %s556, %s559
    %p568 = scmp.eq.s32.totalorder %s37, 1
    %p569 = por %p567, %p568
    %p570 = scmp.ne.s32.totalorder %s559, %s560
    %p571 = scmp.eq.s32.totalorder %s37, 0
    %p572 = por %p570, %p571
    %p573 = scmp.ne.s32.totalorder %s559, %s560
    %p574 = scmp.eq.s32.totalorder %s38, 1
    %p575 = por %p573, %p574
    %p577 = scmp.ne.s32.totalorder %s560, %s576
    %p578 = scmp.eq.s32.totalorder %s38, 0
    %p579 = por %p577, %p578
    %p580 = scmp.le.s32.totalorder 1, %s32
    %p581 = scmp.lt.s32.totalorder %s32, 3
    %p582 = pnand %p580, %p581
    %p583 = pneg %p582
    // Predicated region
    $region9: #{single_head_longformer_forward.1} parent=5 // pred_check
      _
    $region10: #{single_head_longformer_forward.1} parent=5 // pred_check_branch
      %585 = sbr.rel (%p582) target = $region12
    $region11: #{single_head_longformer_forward.1} parent=5 // pred_region
      %s586 = ssub.s32 %s32, 1
      // Predicated region
      $region13: #{single_head_longformer_forward.1} parent=11 // pred_check
        %p587 = pneg %p105
      $region14: #{single_head_longformer_forward.1} parent=11 // pred_check_branch
        %589 = sbr.rel (%p587) target = $region16
      $region15: #{single_head_longformer_forward.1} parent=11 // pred_region
        _
      $region16: #{single_head_longformer_forward.1} parent=11 // pred_fallthru
        _
      // Predicated region
      $region17: #{single_head_longformer_forward.1} parent=11 // pred_check
        %p590 = pneg %p126
      $region18: #{single_head_longformer_forward.1} parent=11 // pred_check_branch
        %592 = sbr.rel (%p590) target = $region20
      $region19: #{single_head_longformer_forward.1} parent=11 // pred_region
        _
      $region20: #{single_head_longformer_forward.1} parent=11 // pred_fallthru
        _
      // Predicated region
      $region21: #{single_head_longformer_forward.1} parent=11 // pred_check
        %p593 = pneg %p147
      $region22: #{single_head_longformer_forward.1} parent=11 // pred_check_branch
        %595 = sbr.rel (%p593) target = $region24
      $region23: #{single_head_longformer_forward.1} parent=11 // pred_region
        _
      $region24: #{single_head_longformer_forward.1} parent=11 // pred_fallthru
        _
      // Predicated region
      $region25: #{single_head_longformer_forward.1} parent=11 // pred_check
        %p596 = pneg %p168
      $region26: #{single_head_longformer_forward.1} parent=11 // pred_check_branch
        %598 = sbr.rel (%p596) target = $region28
      $region27: #{single_head_longformer_forward.1} parent=11 // pred_region
        _
      $region28: #{single_head_longformer_forward.1} parent=11 // pred_fallthru
        _
      // Predicated region
      $region29: #{single_head_longformer_forward.1} parent=11 // pred_check
        %p599 = pneg %p189
      $region30: #{single_head_longformer_forward.1} parent=11 // pred_check_branch
        %601 = sbr.rel (%p599) target = $region32
      $region31: #{single_head_longformer_forward.1} parent=11 // pred_region
        _
      $region32: #{single_head_longformer_forward.1} parent=11 // pred_fallthru
        _
      // Predicated region
      $region33: #{single_head_longformer_forward.1} parent=11 // pred_check
        %p602 = pneg %p210
      $region34: #{single_head_longformer_forward.1} parent=11 // pred_check_branch
        %604 = sbr.rel (%p602) target = $region36
      $region35: #{single_head_longformer_forward.1} parent=11 // pred_region
        _
      $region36: #{single_head_longformer_forward.1} parent=11 // pred_fallthru
        _
      // Predicated region
      $region37: #{single_head_longformer_forward.1} parent=11 // pred_check
        %p605 = pneg %p231
      $region38: #{single_head_longformer_forward.1} parent=11 // pred_check_branch
        %607 = sbr.rel (%p605) target = $region40
      $region39: #{single_head_longformer_forward.1} parent=11 // pred_region
        _
      $region40: #{single_head_longformer_forward.1} parent=11 // pred_fallthru
        _
      // Predicated region
      $region41: #{single_head_longformer_forward.1} parent=11 // pred_check
        %p608 = pneg %p252
      $region42: #{single_head_longformer_forward.1} parent=11 // pred_check_branch
        %610 = sbr.rel (%p608) target = $region44
      $region43: #{single_head_longformer_forward.1} parent=11 // pred_region
        _
      $region44: #{single_head_longformer_forward.1} parent=11 // pred_fallthru
        _
      // Predicated region
      $region45: #{single_head_longformer_forward.1} parent=11 // pred_check
        %p611 = pneg %p273
      $region46: #{single_head_longformer_forward.1} parent=11 // pred_check_branch
        %613 = sbr.rel (%p611) target = $region48
      $region47: #{single_head_longformer_forward.1} parent=11 // pred_region
        _
      $region48: #{single_head_longformer_forward.1} parent=11 // pred_fallthru
        _
      // Predicated region
      $region49: #{single_head_longformer_forward.1} parent=11 // pred_check
        %p614 = pneg %p294
      $region50: #{single_head_longformer_forward.1} parent=11 // pred_check_branch
        %616 = sbr.rel (%p614) target = $region52
      $region51: #{single_head_longformer_forward.1} parent=11 // pred_region
        _
      $region52: #{single_head_longformer_forward.1} parent=11 // pred_fallthru
        _
      // Predicated region
      $region53: #{single_head_longformer_forward.1} parent=11 // pred_check
        %p617 = pneg %p315
      $region54: #{single_head_longformer_forward.1} parent=11 // pred_check_branch
        %619 = sbr.rel (%p617) target = $region56
      $region55: #{single_head_longformer_forward.1} parent=11 // pred_region
        _
      $region56: #{single_head_longformer_forward.1} parent=11 // pred_fallthru
        _
      // Predicated region
      $region57: #{single_head_longformer_forward.1} parent=11 // pred_check
        %p620 = pneg %p336
      $region58: #{single_head_longformer_forward.1} parent=11 // pred_check_branch
        %622 = sbr.rel (%p620) target = $region60
      $region59: #{single_head_longformer_forward.1} parent=11 // pred_region
        _
      $region60: #{single_head_longformer_forward.1} parent=11 // pred_fallthru
        _
      // Predicated region
      $region61: #{single_head_longformer_forward.1} parent=11 // pred_check
        %p623 = pneg %p357
      $region62: #{single_head_longformer_forward.1} parent=11 // pred_check_branch
        %625 = sbr.rel (%p623) target = $region64
      $region63: #{single_head_longformer_forward.1} parent=11 // pred_region
        _
      $region64: #{single_head_longformer_forward.1} parent=11 // pred_fallthru
        _
      // Predicated region
      $region65: #{single_head_longformer_forward.1} parent=11 // pred_check
        %p626 = pneg %p378
      $region66: #{single_head_longformer_forward.1} parent=11 // pred_check_branch
        %628 = sbr.rel (%p626) target = $region68
      $region67: #{single_head_longformer_forward.1} parent=11 // pred_region
        _
      $region68: #{single_head_longformer_forward.1} parent=11 // pred_fallthru
        _
      // Predicated region
      $region69: #{single_head_longformer_forward.1} parent=11 // pred_check
        %p629 = pneg %p399
      $region70: #{single_head_longformer_forward.1} parent=11 // pred_check_branch
        %631 = sbr.rel (%p629) target = $region72
      $region71: #{single_head_longformer_forward.1} parent=11 // pred_region
        _
      $region72: #{single_head_longformer_forward.1} parent=11 // pred_fallthru
        _
      // Predicated region
      $region73: #{single_head_longformer_forward.1} parent=11 // pred_check
        %p632 = pneg %p420
      $region74: #{single_head_longformer_forward.1} parent=11 // pred_check_branch
        %634 = sbr.rel (%p632) target = $region76
      $region75: #{single_head_longformer_forward.1} parent=11 // pred_region
        _
      $region76: #{single_head_longformer_forward.1} parent=11 // pred_fallthru
        _
      // Predicated region
      $region77: #{single_head_longformer_forward.1} parent=11 // pred_check
        %p635 = pneg %p441
      $region78: #{single_head_longformer_forward.1} parent=11 // pred_check_branch
        %637 = sbr.rel (%p635) target = $region80
      $region79: #{single_head_longformer_forward.1} parent=11 // pred_region
        _
      $region80: #{single_head_longformer_forward.1} parent=11 // pred_fallthru
        _
      // Predicated region
      $region81: #{single_head_longformer_forward.1} parent=11 // pred_check
        %p638 = pneg %p462
      $region82: #{single_head_longformer_forward.1} parent=11 // pred_check_branch
        %640 = sbr.rel (%p638) target = $region84
      $region83: #{single_head_longformer_forward.1} parent=11 // pred_region
        _
      $region84: #{single_head_longformer_forward.1} parent=11 // pred_fallthru
        _
      // Predicated region
      $region85: #{single_head_longformer_forward.1} parent=11 // pred_check
        %p641 = pneg %p483
      $region86: #{single_head_longformer_forward.1} parent=11 // pred_check_branch
        %643 = sbr.rel (%p641) target = $region88
      $region87: #{single_head_longformer_forward.1} parent=11 // pred_region
        _
      $region88: #{single_head_longformer_forward.1} parent=11 // pred_fallthru
        _
      // Predicated region
      $region89: #{single_head_longformer_forward.1} parent=11 // pred_check
        %p644 = pneg %p504
      $region90: #{single_head_longformer_forward.1} parent=11 // pred_check_branch
        %646 = sbr.rel (%p644) target = $region92
      $region91: #{single_head_longformer_forward.1} parent=11 // pred_region
        _
      $region92: #{single_head_longformer_forward.1} parent=11 // pred_fallthru
        _
      // Predicated region
      $region93: #{single_head_longformer_forward.1} parent=11 // pred_check
        %p647 = pneg %p525
      $region94: #{single_head_longformer_forward.1} parent=11 // pred_check_branch
        %649 = sbr.rel (%p647) target = $region96
      $region95: #{single_head_longformer_forward.1} parent=11 // pred_region
        _
      $region96: #{single_head_longformer_forward.1} parent=11 // pred_fallthru
        _
      // Predicated region
      $region97: #{single_head_longformer_forward.1} parent=11 // pred_check
        %p650 = pneg %p546
      $region98: #{single_head_longformer_forward.1} parent=11 // pred_check_branch
        %652 = sbr.rel (%p650) target = $region100
      $region99: #{single_head_longformer_forward.1} parent=11 // pred_region
        _
      $region100: #{single_head_longformer_forward.1} parent=11 // pred_fallthru
        _
    $region12: #{single_head_longformer_forward.1} parent=5 // pred_fallthru
      _
    %p653 = scmp.lt.s32.totalorder %s32, 2
    // Predicated region
    $region101: #{single_head_longformer_forward.1} parent=5 // pred_check
      %p654 = pneg %p653
    $region102: #{single_head_longformer_forward.1} parent=5 // pred_check_branch
      %656 = sbr.rel (%p654) target = $region104
    $region103: #{single_head_longformer_forward.1} parent=5 // pred_region
      // Predicated region
      $region105: #{single_head_longformer_forward.1} parent=103 // pred_check
        %p657 = pneg %p52
      $region106: #{single_head_longformer_forward.1} parent=103 // pred_check_branch
        %659 = sbr.rel (%p657) target = $region108
      $region107: #{single_head_longformer_forward.1} parent=103 // pred_region
        %p660 = scmp.lt.s32.totalorder %s32, 1
        %s661 = scalar_select %p660, %s32, 1
        %s662 = smul.addr %s661, 16
        %s663 = smul.addr %s662, 8
        %s664 = scalar_lea.vmem %s0, %s663
      $region108: #{single_head_longformer_forward.1} parent=103 // pred_fallthru
        _
      // Predicated region
      $region109: #{single_head_longformer_forward.1} parent=103 // pred_check
        %p665 = pneg %p78
      $region110: #{single_head_longformer_forward.1} parent=103 // pred_check_branch
        %667 = sbr.rel (%p665) target = $region112
      $region111: #{single_head_longformer_forward.1} parent=103 // pred_region
        %p668 = scmp.lt.s32.totalorder %s32, 1
        %s669 = scalar_select %p668, %s32, 1
        %s670 = scalar_lea.vmem %s1, %s669
      $region112: #{single_head_longformer_forward.1} parent=103 // pred_fallthru
        _
    $region104: #{single_head_longformer_forward.1} parent=5 // pred_fallthru
      _
    %p671 = scmp.le.s32.totalorder 1, %s32
    %p672 = scmp.lt.s32.totalorder %s32, 3
    %p673 = pnand %p671, %p672
    %p674 = pneg %p673
    // Predicated region
    $region113: #{single_head_longformer_forward.1} parent=5 // pred_check
      _
    $region114: #{single_head_longformer_forward.1} parent=5 // pred_check_branch
      %676 = sbr.rel (%p673) target = $region116
    $region115: #{single_head_longformer_forward.1} parent=5 // pred_region
      %s677 = ssub.s32 %s32, 1
      %p678 = scmp.lt.s32.totalorder %s37, 1
      %s679 = scalar_select %p678, %s37, 1
      %s680 = smul.addr %s679, 16
      %s681 = smul.addr %s680, 8
      %s682 = scalar_lea.vmem %s0, %s681
      %p683 = pneg %p58
      %p684 = pneg %p55
      %p685 = scmp.lt.s32.totalorder %s37, 1
      %s686 = scalar_select %p685, %s37, 1
      %s687 = scalar_lea.vmem %s1, %s686
      %p688 = pneg %p84
      %p689 = pneg %p81
      %p690 = pneg %p105
      %p691 = pneg %p102
      %p692 = pneg %p126
      %p693 = pneg %p123
      %p694 = pneg %p147
      %p695 = pneg %p144
      %p696 = pneg %p168
      %p697 = pneg %p165
      %p698 = pneg %p189
      %p699 = pneg %p186
      %p700 = pneg %p210
      %p701 = pneg %p207
      %p702 = pneg %p231
      %p703 = pneg %p228
      %p704 = pneg %p252
      %p705 = pneg %p249
      %p706 = pneg %p273
      %p707 = pneg %p270
      %p708 = pneg %p294
      %p709 = pneg %p291
      %p710 = pneg %p315
      %p711 = pneg %p312
      %p712 = pneg %p336
      %p713 = pneg %p333
      %p714 = pneg %p357
      %p715 = pneg %p354
      %p716 = pneg %p378
      %p717 = pneg %p375
      %p718 = pneg %p399
      %p719 = pneg %p396
      %p720 = pneg %p420
      %p721 = pneg %p417
      %p722 = pneg %p441
      %p723 = pneg %p438
      %p724 = pneg %p462
      %p725 = pneg %p459
      %p726 = pneg %p483
      %p727 = pneg %p480
      %p728 = pneg %p504
      %p729 = pneg %p501
      %p730 = pneg %p525
      %p731 = pneg %p522
      %p732 = pneg %p546
      %p733 = pneg %p543
      %p734 = pneg %p572
      %p735 = pneg %p569
      %p736 = scmp.lt.s32.totalorder %s37, 1
      %s737 = scalar_select %p736, %s37, 1
      %s738 = scalar_lea.vmem %s24, %s737
      %p739 = scmp.lt.s32.totalorder %s37, 1
      %s740 = scalar_select %p739, %s37, 1
      %s741 = smul.addr %s740, 16
      %s742 = smul.addr %s741, 8
      %s743 = scalar_lea.vmem %s0, %s742
      %p744 = scmp.lt.s32.totalorder %s37, 1
      %s745 = scalar_select %p744, %s37, 1
      %s746 = scalar_lea.vmem %s1, %s745
      %p747 = scmp.lt.s32.totalorder %s37, 1
      %s748 = scalar_select %p747, %s37, 1
      %s749 = scalar_lea.vmem %s24, %s748
      %v751 = vld [vmem:[%s743] sm:$0xff]
      %v752 = vld [vmem:[%s743 + $0x8] sm:$0xff]
      %v753 = vld [vmem:[%s743 + $0x10] sm:$0xff]
      %v754 = vld [vmem:[%s743 + $0x18] sm:$0xff]
      %v755 = vld [vmem:[%s743 + $0x20] sm:$0xff]
      %v756 = vld [vmem:[%s743 + $0x28] sm:$0xff]
      %v757 = vld [vmem:[%s743 + $0x30] sm:$0xff]
      %v758 = vld [vmem:[%s743 + $0x38] sm:$0xff]
      %v759 = vld [vmem:[%s743 + $0x40] sm:$0xff]
      %v760 = vld [vmem:[%s743 + $0x48] sm:$0xff]
      %v761 = vld [vmem:[%s743 + $0x50] sm:$0xff]
      %v762 = vld [vmem:[%s743 + $0x58] sm:$0xff]
      %v763 = vld [vmem:[%s743 + $0x60] sm:$0xff]
      %v764 = vld [vmem:[%s743 + $0x68] sm:$0xff]
      %v765 = vld [vmem:[%s743 + $0x70] sm:$0xff]
      %v766 = vld [vmem:[%s743 + $0x78] sm:$0xff]
      %v767 = vld [vmem:[%s2] sm:$0x1]
      %v768 = vld [vmem:[%s3] sm:$0x1]
      %vm769 = vcmask 523264
      %v770 = vsel %vm769, %v751, 0.0
      %771 = vadd.xlane.f32.xlu0 %v770
      %v772 = vpop.xlane.xlu0 %771
      %v773 = vsel %vm769, %v752, 0.0
      %774 = vadd.xlane.f32.xlu0 %v773
      %v775 = vpop.xlane.xlu0 %774
      %v776 = vsel %vm769, %v753, 0.0
      %777 = vadd.xlane.f32.xlu0 %v776
      %v778 = vpop.xlane.xlu0 %777
      %v779 = vsel %vm769, %v754, 0.0
      %780 = vadd.xlane.f32.xlu0 %v779
      %v781 = vpop.xlane.xlu0 %780
      %v782 = vsel %vm769, %v755, 0.0
      %783 = vadd.xlane.f32.xlu0 %v782
      %v784 = vpop.xlane.xlu0 %783
      %v785 = vsel %vm769, %v756, 0.0
      %786 = vadd.xlane.f32.xlu0 %v785
      %v787 = vpop.xlane.xlu0 %786
      %v788 = vsel %vm769, %v757, 0.0
      %789 = vadd.xlane.f32.xlu0 %v788
      %v790 = vpop.xlane.xlu0 %789
      %v791 = vsel %vm769, %v758, 0.0
      %792 = vadd.xlane.f32.xlu0 %v791
      %v793 = vpop.xlane.xlu0 %792
      %v794 = vsel %vm769, %v759, 0.0
      %795 = vadd.xlane.f32.xlu0 %v794
      %v796 = vpop.xlane.xlu0 %795
      %v797 = vsel %vm769, %v760, 0.0
      %798 = vadd.xlane.f32.xlu0 %v797
      %v799 = vpop.xlane.xlu0 %798
      %v800 = vsel %vm769, %v761, 0.0
      %801 = vadd.xlane.f32.xlu0 %v800
      %v802 = vpop.xlane.xlu0 %801
      %v803 = vsel %vm769, %v762, 0.0
      %804 = vadd.xlane.f32.xlu0 %v803
      %v805 = vpop.xlane.xlu0 %804
      %v806 = vsel %vm769, %v763, 0.0
      %807 = vadd.xlane.f32.xlu0 %v806
      %v808 = vpop.xlane.xlu0 %807
      %v809 = vsel %vm769, %v764, 0.0
      %810 = vadd.xlane.f32.xlu0 %v809
      %v811 = vpop.xlane.xlu0 %810
      %v812 = vsel %vm769, %v765, 0.0
      %813 = vadd.xlane.f32.xlu0 %v812
      %v814 = vpop.xlane.xlu0 %813
      %v815 = vsel %vm769, %v766, 0.0
      %816 = vadd.xlane.f32.xlu0 %v815
      %v817 = vpop.xlane.xlu0 %816
      %v818 = vrcp.pop 64.0
      %v819 = vmul.f32 %v772, %v818
      %v820 = vmul.f32 %v775, %v818
      %v821 = vmul.f32 %v778, %v818
      %v822 = vmul.f32 %v781, %v818
      %v823 = vmul.f32 %v784, %v818
      %v824 = vmul.f32 %v787, %v818
      %v825 = vmul.f32 %v790, %v818
      %v826 = vmul.f32 %v793, %v818
      %v827 = vmul.f32 %v796, %v818
      %v828 = vmul.f32 %v799, %v818
      %v829 = vmul.f32 %v802, %v818
      %v830 = vmul.f32 %v805, %v818
      %v831 = vmul.f32 %v808, %v818
      %v832 = vmul.f32 %v811, %v818
      %v833 = vmul.f32 %v814, %v818
      %v834 = vmul.f32 %v817, %v818
      %v835 = vsub.f32 %v751, %v819
      %v836 = vsub.f32 %v752, %v820
      %v837 = vsub.f32 %v753, %v821
      %v838 = vsub.f32 %v754, %v822
      %v839 = vsub.f32 %v755, %v823
      %v840 = vsub.f32 %v756, %v824
      %v841 = vsub.f32 %v757, %v825
      %v842 = vsub.f32 %v758, %v826
      %v843 = vsub.f32 %v759, %v827
      %v844 = vsub.f32 %v760, %v828
      %v845 = vsub.f32 %v761, %v829
      %v846 = vsub.f32 %v762, %v830
      %v847 = vsub.f32 %v763, %v831
      %v848 = vsub.f32 %v764, %v832
      %v849 = vsub.f32 %v765, %v833
      %v850 = vsub.f32 %v766, %v834
      %v851 = vmul.f32 %v835, %v835
      %v852 = vmul.f32 %v836, %v836
      %v853 = vmul.f32 %v837, %v837
      %v854 = vmul.f32 %v838, %v838
      %v855 = vmul.f32 %v839, %v839
      %v856 = vmul.f32 %v840, %v840
      %v857 = vmul.f32 %v841, %v841
      %v858 = vmul.f32 %v842, %v842
      %v859 = vmul.f32 %v843, %v843
      %v860 = vmul.f32 %v844, %v844
      %v861 = vmul.f32 %v845, %v845
      %v862 = vmul.f32 %v846, %v846
      %v863 = vmul.f32 %v847, %v847
      %v864 = vmul.f32 %v848, %v848
      %v865 = vmul.f32 %v849, %v849
      %v866 = vmul.f32 %v850, %v850
      %v867 = vsel %vm769, %v851, 0.0
      %868 = vadd.xlane.f32.xlu0 %v867
      %v869 = vpop.xlane.xlu0 %868
      %v870 = vsel %vm769, %v852, 0.0
      %871 = vadd.xlane.f32.xlu0 %v870
      %v872 = vpop.xlane.xlu0 %871
      %v873 = vsel %vm769, %v853, 0.0
      %874 = vadd.xlane.f32.xlu0 %v873
      %v875 = vpop.xlane.xlu0 %874
      %v876 = vsel %vm769, %v854, 0.0
      %877 = vadd.xlane.f32.xlu0 %v876
      %v878 = vpop.xlane.xlu0 %877
      %v879 = vsel %vm769, %v855, 0.0
      %880 = vadd.xlane.f32.xlu0 %v879
      %v881 = vpop.xlane.xlu0 %880
      %v882 = vsel %vm769, %v856, 0.0
      %883 = vadd.xlane.f32.xlu0 %v882
      %v884 = vpop.xlane.xlu0 %883
      %v885 = vsel %vm769, %v857, 0.0
      %886 = vadd.xlane.f32.xlu0 %v885
      %v887 = vpop.xlane.xlu0 %886
      %v888 = vsel %vm769, %v858, 0.0
      %889 = vadd.xlane.f32.xlu0 %v888
      %v890 = vpop.xlane.xlu0 %889
      %v891 = vsel %vm769, %v859, 0.0
      %892 = vadd.xlane.f32.xlu0 %v891
      %v893 = vpop.xlane.xlu0 %892
      %v894 = vsel %vm769, %v860, 0.0
      %895 = vadd.xlane.f32.xlu0 %v894
      %v896 = vpop.xlane.xlu0 %895
      %v897 = vsel %vm769, %v861, 0.0
      %898 = vadd.xlane.f32.xlu0 %v897
      %v899 = vpop.xlane.xlu0 %898
      %v900 = vsel %vm769, %v862, 0.0
      %901 = vadd.xlane.f32.xlu0 %v900
      %v902 = vpop.xlane.xlu0 %901
      %v903 = vsel %vm769, %v863, 0.0
      %904 = vadd.xlane.f32.xlu0 %v903
      %v905 = vpop.xlane.xlu0 %904
      %v906 = vsel %vm769, %v864, 0.0
      %907 = vadd.xlane.f32.xlu0 %v906
      %v908 = vpop.xlane.xlu0 %907
      %v909 = vsel %vm769, %v865, 0.0
      %910 = vadd.xlane.f32.xlu0 %v909
      %v911 = vpop.xlane.xlu0 %910
      %v912 = vsel %vm769, %v866, 0.0
      %913 = vadd.xlane.f32.xlu0 %v912
      %v914 = vpop.xlane.xlu0 %913
      %v915 = vmul.f32 %v869, %v818
      %v916 = vmul.f32 %v872, %v818
      %v917 = vmul.f32 %v875, %v818
      %v918 = vmul.f32 %v878, %v818
      %v919 = vmul.f32 %v881, %v818
      %v920 = vmul.f32 %v884, %v818
      %v921 = vmul.f32 %v887, %v818
      %v922 = vmul.f32 %v890, %v818
      %v923 = vmul.f32 %v893, %v818
      %v924 = vmul.f32 %v896, %v818
      %v925 = vmul.f32 %v899, %v818
      %v926 = vmul.f32 %v902, %v818
      %v927 = vmul.f32 %v905, %v818
      %v928 = vmul.f32 %v908, %v818
      %v929 = vmul.f32 %v911, %v818
      %v930 = vmul.f32 %v914, %v818
      %v931 = vadd.f32 %v915, 1e-05
      %v932 = vadd.f32 %v916, 1e-05
      %v933 = vadd.f32 %v917, 1e-05
      %v934 = vadd.f32 %v918, 1e-05
      %v935 = vadd.f32 %v919, 1e-05
      %v936 = vadd.f32 %v920, 1e-05
      %v937 = vadd.f32 %v921, 1e-05
      %v938 = vadd.f32 %v922, 1e-05
      %v939 = vadd.f32 %v923, 1e-05
      %v940 = vadd.f32 %v924, 1e-05
      %v941 = vadd.f32 %v925, 1e-05
      %v942 = vadd.f32 %v926, 1e-05
      %v943 = vadd.f32 %v927, 1e-05
      %v944 = vadd.f32 %v928, 1e-05
      %v945 = vadd.f32 %v929, 1e-05
      %v946 = vadd.f32 %v930, 1e-05
      %v947 = vrsqrt.pop %v931
      %v948 = vrsqrt.pop %v932
      %v949 = vrsqrt.pop %v933
      %v950 = vrsqrt.pop %v934
      %v951 = vrsqrt.pop %v935
      %v952 = vrsqrt.pop %v936
      %v953 = vrsqrt.pop %v937
      %v954 = vrsqrt.pop %v938
      %v955 = vrsqrt.pop %v939
      %v956 = vrsqrt.pop %v940
      %v957 = vrsqrt.pop %v941
      %v958 = vrsqrt.pop %v942
      %v959 = vrsqrt.pop %v943
      %v960 = vrsqrt.pop %v944
      %v961 = vrsqrt.pop %v945
      %v962 = vrsqrt.pop %v946
      %v963 = vmul.f32 %v835, %v947
      %v964 = vmul.f32 %v836, %v948
      %v965 = vmul.f32 %v837, %v949
      %v966 = vmul.f32 %v838, %v950
      %v967 = vmul.f32 %v839, %v951
      %v968 = vmul.f32 %v840, %v952
      %v969 = vmul.f32 %v841, %v953
      %v970 = vmul.f32 %v842, %v954
      %v971 = vmul.f32 %v843, %v955
      %v972 = vmul.f32 %v844, %v956
      %v973 = vmul.f32 %v845, %v957
      %v974 = vmul.f32 %v846, %v958
      %v975 = vmul.f32 %v847, %v959
      %v976 = vmul.f32 %v848, %v960
      %v977 = vmul.f32 %v849, %v961
      %v978 = vmul.f32 %v850, %v962
      %v980 = vlaneseq
      %v981 = vshrl.u32 %v980, 7
      %v982 = vsub.s32 0, %v981
      %v983 = vrot.slane %v767, %v982
      %v985 = vmul.f32 %v963, %v983
      %v986 = vmul.f32 %v964, %v983
      %v987 = vmul.f32 %v965, %v983
      %v988 = vmul.f32 %v966, %v983
      %v989 = vmul.f32 %v967, %v983
      %v990 = vmul.f32 %v968, %v983
      %v991 = vmul.f32 %v969, %v983
      %v992 = vmul.f32 %v970, %v983
      %v993 = vmul.f32 %v971, %v983
      %v994 = vmul.f32 %v972, %v983
      %v995 = vmul.f32 %v973, %v983
      %v996 = vmul.f32 %v974, %v983
      %v997 = vmul.f32 %v975, %v983
      %v998 = vmul.f32 %v976, %v983
      %v999 = vmul.f32 %v977, %v983
      %v1000 = vmul.f32 %v978, %v983
      %v1002 = vlaneseq
      %v1003 = vshrl.u32 %v1002, 7
      %v1004 = vsub.s32 0, %v1003
      %v1005 = vrot.slane %v768, %v1004
      %v1007 = vadd.f32 %v985, %v1005
      %v1008 = vadd.f32 %v986, %v1005
      %v1009 = vadd.f32 %v987, %v1005
      %v1010 = vadd.f32 %v988, %v1005
      %v1011 = vadd.f32 %v989, %v1005
      %v1012 = vadd.f32 %v990, %v1005
      %v1013 = vadd.f32 %v991, %v1005
      %v1014 = vadd.f32 %v992, %v1005
      %v1015 = vadd.f32 %v993, %v1005
      %v1016 = vadd.f32 %v994, %v1005
      %v1017 = vadd.f32 %v995, %v1005
      %v1018 = vadd.f32 %v996, %v1005
      %v1019 = vadd.f32 %v997, %v1005
      %v1020 = vadd.f32 %v998, %v1005
      %v1021 = vadd.f32 %v999, %v1005
      %v1022 = vadd.f32 %v1000, %v1005
      %v1023 = vlaneseq
      %v1024 = vshrl.u32 %v1023, 7
      %v1025 = vadd.s32 %v1024, 8
      %v1026 = vadd.s32 %v1024, 16
      %v1027 = vadd.s32 %v1024, 24
      %v1028 = vadd.s32 %v1024, 32
      %v1029 = vadd.s32 %v1024, 40
      %v1030 = vadd.s32 %v1024, 48
      %v1031 = vadd.s32 %v1024, 56
      %v1032 = vadd.s32 %v1024, 64
      %v1033 = vadd.s32 %v1024, 72
      %v1034 = vadd.s32 %v1024, 80
      %v1035 = vadd.s32 %v1024, 88
      %v1036 = vadd.s32 %v1024, 96
      %v1037 = vadd.s32 %v1024, 104
      %v1038 = vadd.s32 %v1024, 112
      %v1039 = vadd.s32 %v1024, 120
      %v1040 = vlaneseq
      %v1041 = vand.u32 %v1040, 127
      %v1042 = vsub.s32 %v1024, %v1041
      %v1043 = vsub.s32 %v1025, %v1041
      %v1044 = vsub.s32 %v1026, %v1041
      %v1045 = vsub.s32 %v1027, %v1041
      %v1046 = vsub.s32 %v1028, %v1041
      %v1047 = vsub.s32 %v1029, %v1041
      %v1048 = vsub.s32 %v1030, %v1041
      %v1049 = vsub.s32 %v1031, %v1041
      %v1050 = vsub.s32 %v1032, %v1041
      %v1051 = vsub.s32 %v1033, %v1041
      %v1052 = vsub.s32 %v1034, %v1041
      %v1053 = vsub.s32 %v1035, %v1041
      %v1054 = vsub.s32 %v1036, %v1041
      %v1055 = vsub.s32 %v1037, %v1041
      %v1056 = vsub.s32 %v1038, %v1041
      %v1057 = vsub.s32 %v1039, %v1041
      %vm1058 = vcmp.lt.s32.totalorder %v1042, 0
      %v1059 = vsub.s32 0, %v1042
      %v1060 = vsel %vm1058, %v1059, %v1042
      %vm1061 = vcmp.lt.s32.totalorder %v1043, 0
      %v1062 = vsub.s32 0, %v1043
      %v1063 = vsel %vm1061, %v1062, %v1043
      %vm1064 = vcmp.lt.s32.totalorder %v1044, 0
      %v1065 = vsub.s32 0, %v1044
      %v1066 = vsel %vm1064, %v1065, %v1044
      %vm1067 = vcmp.lt.s32.totalorder %v1045, 0
      %v1068 = vsub.s32 0, %v1045
      %v1069 = vsel %vm1067, %v1068, %v1045
      %vm1070 = vcmp.lt.s32.totalorder %v1046, 0
      %v1071 = vsub.s32 0, %v1046
      %v1072 = vsel %vm1070, %v1071, %v1046
      %vm1073 = vcmp.lt.s32.totalorder %v1047, 0
      %v1074 = vsub.s32 0, %v1047
      %v1075 = vsel %vm1073, %v1074, %v1047
      %vm1076 = vcmp.lt.s32.totalorder %v1048, 0
      %v1077 = vsub.s32 0, %v1048
      %v1078 = vsel %vm1076, %v1077, %v1048
      %vm1079 = vcmp.lt.s32.totalorder %v1049, 0
      %v1080 = vsub.s32 0, %v1049
      %v1081 = vsel %vm1079, %v1080, %v1049
      %vm1082 = vcmp.lt.s32.totalorder %v1050, 0
      %v1083 = vsub.s32 0, %v1050
      %v1084 = vsel %vm1082, %v1083, %v1050
      %vm1085 = vcmp.lt.s32.totalorder %v1051, 0
      %v1086 = vsub.s32 0, %v1051
      %v1087 = vsel %vm1085, %v1086, %v1051
      %vm1088 = vcmp.lt.s32.totalorder %v1052, 0
      %v1089 = vsub.s32 0, %v1052
      %v1090 = vsel %vm1088, %v1089, %v1052
      %vm1091 = vcmp.lt.s32.totalorder %v1053, 0
      %v1092 = vsub.s32 0, %v1053
      %v1093 = vsel %vm1091, %v1092, %v1053
      %vm1094 = vcmp.lt.s32.totalorder %v1054, 0
      %v1095 = vsub.s32 0, %v1054
      %v1096 = vsel %vm1094, %v1095, %v1054
      %vm1097 = vcmp.lt.s32.totalorder %v1055, 0
      %v1098 = vsub.s32 0, %v1055
      %v1099 = vsel %vm1097, %v1098, %v1055
      %vm1100 = vcmp.lt.s32.totalorder %v1056, 0
      %v1101 = vsub.s32 0, %v1056
      %v1102 = vsel %vm1100, %v1101, %v1056
      %vm1103 = vcmp.lt.s32.totalorder %v1057, 0
      %v1104 = vsub.s32 0, %v1057
      %v1105 = vsel %vm1103, %v1104, %v1057
      %vm1106 = vcmp.le.s32.totalorder %v1060, 16
      %vm1107 = vcmp.le.s32.totalorder %v1063, 16
      %vm1108 = vcmp.le.s32.totalorder %v1066, 16
      %vm1109 = vcmp.le.s32.totalorder %v1069, 16
      %vm1110 = vcmp.le.s32.totalorder %v1072, 16
      %vm1111 = vcmp.le.s32.totalorder %v1075, 16
      %vm1112 = vcmp.le.s32.totalorder %v1078, 16
      %vm1113 = vcmp.le.s32.totalorder %v1081, 16
      %vm1114 = vcmp.le.s32.totalorder %v1084, 16
      %vm1115 = vcmp.le.s32.totalorder %v1087, 16
      %vm1116 = vcmp.le.s32.totalorder %v1090, 16
      %vm1117 = vcmp.le.s32.totalorder %v1093, 16
      %vm1118 = vcmp.le.s32.totalorder %v1096, 16
      %vm1119 = vcmp.le.s32.totalorder %v1099, 16
      %vm1120 = vcmp.le.s32.totalorder %v1102, 16
      %vm1121 = vcmp.le.s32.totalorder %v1105, 16
      %v1122 = vld [vmem:[%s746] sm:$0x1]
      %vm1123 = vcmp.gt.f32.partialorder %v1122, 0.5
      %v1124 = vsel %vm1123, 1, 0
      %v1125 = vlaneseq
      %v1126 = vshrl.u32 %v1125, 7
      %v1127 = vsub.s32 0, %v1126
      %v1128 = vrot.slane %v1124, %v1127
      %vm1129 = vcmp.eq.s32.totalorder %v1128, 1
      %vm1130 = vmand %vm1106, %vm1129
      %vm1131 = vmand %vm1107, %vm1129
      %vm1132 = vmand %vm1108, %vm1129
      %vm1133 = vmand %vm1109, %vm1129
      %vm1134 = vmand %vm1110, %vm1129
      %vm1135 = vmand %vm1111, %vm1129
      %vm1136 = vmand %vm1112, %vm1129
      %vm1137 = vmand %vm1113, %vm1129
      %vm1138 = vmand %vm1114, %vm1129
      %vm1139 = vmand %vm1115, %vm1129
      %vm1140 = vmand %vm1116, %vm1129
      %vm1141 = vmand %vm1117, %vm1129
      %vm1142 = vmand %vm1118, %vm1129
      %vm1143 = vmand %vm1119, %vm1129
      %vm1144 = vmand %vm1120, %vm1129
      %vm1145 = vmand %vm1121, %vm1129
      %v1146 = vsel %vm1130, 0.0, -1e+09
      %v1147 = vsel %vm1131, 0.0, -1e+09
      %v1148 = vsel %vm1132, 0.0, -1e+09
      %v1149 = vsel %vm1133, 0.0, -1e+09
      %v1150 = vsel %vm1134, 0.0, -1e+09
      %v1151 = vsel %vm1135, 0.0, -1e+09
      %v1152 = vsel %vm1136, 0.0, -1e+09
      %v1153 = vsel %vm1137, 0.0, -1e+09
      %v1154 = vsel %vm1138, 0.0, -1e+09
      %v1155 = vsel %vm1139, 0.0, -1e+09
      %v1156 = vsel %vm1140, 0.0, -1e+09
      %v1157 = vsel %vm1141, 0.0, -1e+09
      %v1158 = vsel %vm1142, 0.0, -1e+09
      %v1159 = vsel %vm1143, 0.0, -1e+09
      %v1160 = vsel %vm1144, 0.0, -1e+09
      %v1161 = vsel %vm1145, 0.0, -1e+09
      %v1162 = vpack.c.bf16 %v1008, %v1007
      %v1163 = vpack.c.bf16 %v1010, %v1009
      %v1164 = vpack.c.bf16 %v1012, %v1011
      %v1165 = vpack.c.bf16 %v1014, %v1013
      %v1166 = vpack.c.bf16 %v1016, %v1015
      %v1167 = vpack.c.bf16 %v1018, %v1017
      %v1168 = vpack.c.bf16 %v1020, %v1019
      %v1169 = vpack.c.bf16 %v1022, %v1021
      %v1170 = vld [vmem:[%s4] sm:$0xf]
      %v1171 = vld [vmem:[%s4 + $0x4] sm:$0xf]
      %v1172 = vld [vmem:[%s4 + $0x8] sm:$0xf]
      %v1173 = vld [vmem:[%s4 + $0xc] sm:$0xf]
      %v1174 = vld [vmem:[%s4 + $0x10] sm:$0xf]
      %v1175 = vld [vmem:[%s4 + $0x14] sm:$0xf]
      %v1176 = vld [vmem:[%s4 + $0x18] sm:$0xf]
      %v1177 = vld [vmem:[%s4 + $0x1c] sm:$0xf]
      %v1178 = vld [vmem:[%s5] sm:$0x1]
      %v1180 = vlaneseq
      %v1181 = vshrl.u32 %v1180, 7
      %v1182 = vsub.s32 0, %v1181
      %v1183 = vrot.slane %v1178, %v1182
      %v1193 = vunpack.c.l.b16 %v1170
      %v1194 = vunpack.c.l.b16 %v1171
      %v1195 = vunpack.c.l.b16 %v1172
      %v1196 = vunpack.c.l.b16 %v1173
      %v1197 = vunpack.c.l.b16 %v1174
      %v1198 = vunpack.c.l.b16 %v1175
      %v1199 = vunpack.c.l.b16 %v1176
      %v1200 = vunpack.c.l.b16 %v1177
      %v1201 = vpack.c.b16 %v1194, %v1193
      %v1202 = vpack.c.b16 %v1196, %v1195
      %v1203 = vpack.c.b16 %v1198, %v1197
      %v1204 = vpack.c.b16 %v1200, %v1199
      %v1210 = vsel %vm769, %v1162, 0
      %v1213 = vsel %vm769, %v1163, 0
      %v1216 = vsel %vm769, %v1164, 0
      %v1219 = vsel %vm769, %v1165, 0
      %v1222 = vsel %vm769, %v1166, 0
      %v1225 = vsel %vm769, %v1167, 0
      %v1228 = vsel %vm769, %v1168, 0
      %v1231 = vsel %vm769, %v1169, 0
      %1233 = vmatprep.subr.bf16.mxu0 0
      %1234 = vmatpush1.bf16.msra.mxu0 0
      %1235 = vmatprep.subr.bf16.mxu0 0
      %1236 = vmatpush1.bf16.msra.mxu0 0
      %1237 = vmatprep.subr.bf16.mxu0 0
      %1238 = vmatpush1.bf16.msra.mxu0 0
      %1239 = vmatprep.subr.bf16.mxu0 0
      %1240 = vmatpush1.bf16.msra.mxu0 0
      %1241 = vmatprep.subr.bf16.mxu0 0
      %1242 = vmatpush1.bf16.msra.mxu0 %v1204
      %1243 = vmatprep.subr.bf16.mxu0 0
      %1244 = vmatpush1.bf16.msra.mxu0 %v1203
      %1245 = vmatprep.subr.bf16.mxu0 0
      %1246 = vmatpush1.bf16.msra.mxu0 %v1202
      %1247 = vmatprep.subr.bf16.mxu0 0
      %1248 = vmatpush1.bf16.msra.mxu0 %v1201
      %1249 = vmatprep.subr.bf16.mxu0 0
      %1250 = vmatpush2.bf16.msra.mxu0 0
      %1251 = vmatprep.subr.bf16.mxu0 0
      %1252 = vmatpush2.bf16.msra.mxu0 0
      %1253 = vmatprep.subr.bf16.mxu0 0
      %1254 = vmatpush2.bf16.msra.mxu0 0
      %1255 = vmatprep.subr.bf16.mxu0 0
      %1256 = vmatpush2.bf16.msra.mxu0 0
      %1257 = vmatprep.subr.bf16.mxu0 0
      %1258 = vmatpush2.bf16.msra.mxu0 0
      %1259 = vmatprep.subr.bf16.mxu0 0
      %1260 = vmatpush2.bf16.msra.mxu0 0
      %1261 = vmatprep.subr.bf16.mxu0 0
      %1262 = vmatpush2.bf16.msra.mxu0 0
      %1263 = vmatprep.subr.bf16.mxu0 0
      %1264 = vmatpush2.bf16.msra.mxu0 0
      %1265 = vmatprep.mubr.bf16.mxu0 0
      %1266 = vmatmul.mubr.bf16.gmra.mxu0 %v1210
      %v1267 = vpop.f32.mrf.mxu0
      %v1268 = vadd.f32 %v1183, %v1267
      %v1269 = vpop.f32.mrf.mxu0
      %v1270 = vpop.f32.mrf.mxu0
      %v1271 = vadd.f32 %v1183, %v1270
      %v1272 = vpop.f32.mrf.mxu0
      %1273 = vmatprep.mubr.bf16.mxu0 0
      %1274 = vmatmul.mubr.bf16.gmra.mxu0 %v1213
      %v1275 = vpop.f32.mrf.mxu0
      %v1276 = vadd.f32 %v1183, %v1275
      %v1277 = vpop.f32.mrf.mxu0
      %v1278 = vpop.f32.mrf.mxu0
      %v1279 = vadd.f32 %v1183, %v1278
      %v1280 = vpop.f32.mrf.mxu0
      %1281 = vmatprep.mubr.bf16.mxu0 0
      %1282 = vmatmul.mubr.bf16.gmra.mxu0 %v1216
      %v1283 = vpop.f32.mrf.mxu0
      %v1284 = vadd.f32 %v1183, %v1283
      %v1285 = vpop.f32.mrf.mxu0
      %v1286 = vpop.f32.mrf.mxu0
      %v1287 = vadd.f32 %v1183, %v1286
      %v1288 = vpop.f32.mrf.mxu0
      %1289 = vmatprep.mubr.bf16.mxu0 0
      %1290 = vmatmul.mubr.bf16.gmra.mxu0 %v1219
      %v1291 = vpop.f32.mrf.mxu0
      %v1292 = vadd.f32 %v1183, %v1291
      %v1293 = vpop.f32.mrf.mxu0
      %v1294 = vpop.f32.mrf.mxu0
      %v1295 = vadd.f32 %v1183, %v1294
      %v1296 = vpop.f32.mrf.mxu0
      %1297 = vmatprep.mubr.bf16.mxu0 0
      %1298 = vmatmul.mubr.bf16.gmra.mxu0 %v1222
      %v1299 = vpop.f32.mrf.mxu0
      %v1300 = vadd.f32 %v1183, %v1299
      %v1301 = vpop.f32.mrf.mxu0
      %v1302 = vpop.f32.mrf.mxu0
      %v1303 = vadd.f32 %v1183, %v1302
      %v1304 = vpop.f32.mrf.mxu0
      %1305 = vmatprep.mubr.bf16.mxu0 0
      %1306 = vmatmul.mubr.bf16.gmra.mxu0 %v1225
      %v1307 = vpop.f32.mrf.mxu0
      %v1308 = vadd.f32 %v1183, %v1307
      %v1309 = vpop.f32.mrf.mxu0
      %v1310 = vpop.f32.mrf.mxu0
      %v1311 = vadd.f32 %v1183, %v1310
      %v1312 = vpop.f32.mrf.mxu0
      %1313 = vmatprep.mubr.bf16.mxu0 0
      %1314 = vmatmul.mubr.bf16.gmra.mxu0 %v1228
      %v1315 = vpop.f32.mrf.mxu0
      %v1316 = vadd.f32 %v1183, %v1315
      %v1317 = vpop.f32.mrf.mxu0
      %v1318 = vpop.f32.mrf.mxu0
      %v1319 = vadd.f32 %v1183, %v1318
      %v1320 = vpop.f32.mrf.mxu0
      %1321 = vmatprep.mubr.bf16.mxu0 0
      %1322 = vmatmul.mubr.bf16.gmra.mxu0 %v1231
      %v1323 = vpop.f32.mrf.mxu0
      %v1324 = vadd.f32 %v1183, %v1323
      %v1325 = vpop.f32.mrf.mxu0
      %v1326 = vpop.f32.mrf.mxu0
      %v1327 = vadd.f32 %v1183, %v1326
      %v1328 = vpop.f32.mrf.mxu0
      %1329 = vdwg.mxu0
      %v1330 = vld [vmem:[%s6] sm:$0xf]
      %v1331 = vld [vmem:[%s6 + $0x4] sm:$0xf]
      %v1332 = vld [vmem:[%s6 + $0x8] sm:$0xf]
      %v1333 = vld [vmem:[%s6 + $0xc] sm:$0xf]
      %v1334 = vld [vmem:[%s6 + $0x10] sm:$0xf]
      %v1335 = vld [vmem:[%s6 + $0x14] sm:$0xf]
      %v1336 = vld [vmem:[%s6 + $0x18] sm:$0xf]
      %v1337 = vld [vmem:[%s6 + $0x1c] sm:$0xf]
      %v1338 = vld [vmem:[%s7] sm:$0x1]
      %v1340 = vlaneseq
      %v1341 = vshrl.u32 %v1340, 7
      %v1342 = vsub.s32 0, %v1341
      %v1343 = vrot.slane %v1338, %v1342
      %v1353 = vunpack.c.l.b16 %v1330
      %v1354 = vunpack.c.l.b16 %v1331
      %v1355 = vunpack.c.l.b16 %v1332
      %v1356 = vunpack.c.l.b16 %v1333
      %v1357 = vunpack.c.l.b16 %v1334
      %v1358 = vunpack.c.l.b16 %v1335
      %v1359 = vunpack.c.l.b16 %v1336
      %v1360 = vunpack.c.l.b16 %v1337
      %v1361 = vpack.c.b16 %v1354, %v1353
      %v1362 = vpack.c.b16 %v1356, %v1355
      %v1363 = vpack.c.b16 %v1358, %v1357
      %v1364 = vpack.c.b16 %v1360, %v1359
      %1369 = vmatprep.subr.bf16.mxu0 0
      %1370 = vmatpush1.bf16.msra.mxu0 0
      %1371 = vmatprep.subr.bf16.mxu0 0
      %1372 = vmatpush1.bf16.msra.mxu0 0
      %1373 = vmatprep.subr.bf16.mxu0 0
      %1374 = vmatpush1.bf16.msra.mxu0 0
      %1375 = vmatprep.subr.bf16.mxu0 0
      %1376 = vmatpush1.bf16.msra.mxu0 0
      %1377 = vmatprep.subr.bf16.mxu0 0
      %1378 = vmatpush1.bf16.msra.mxu0 %v1364
      %1379 = vmatprep.subr.bf16.mxu0 0
      %1380 = vmatpush1.bf16.msra.mxu0 %v1363
      %1381 = vmatprep.subr.bf16.mxu0 0
      %1382 = vmatpush1.bf16.msra.mxu0 %v1362
      %1383 = vmatprep.subr.bf16.mxu0 0
      %1384 = vmatpush1.bf16.msra.mxu0 %v1361
      %1385 = vmatprep.subr.bf16.mxu0 0
      %1386 = vmatpush2.bf16.msra.mxu0 0
      %1387 = vmatprep.subr.bf16.mxu0 0
      %1388 = vmatpush2.bf16.msra.mxu0 0
      %1389 = vmatprep.subr.bf16.mxu0 0
      %1390 = vmatpush2.bf16.msra.mxu0 0
      %1391 = vmatprep.subr.bf16.mxu0 0
      %1392 = vmatpush2.bf16.msra.mxu0 0
      %1393 = vmatprep.subr.bf16.mxu0 0
      %1394 = vmatpush2.bf16.msra.mxu0 0
      %1395 = vmatprep.subr.bf16.mxu0 0
      %1396 = vmatpush2.bf16.msra.mxu0 0
      %1397 = vmatprep.subr.bf16.mxu0 0
      %1398 = vmatpush2.bf16.msra.mxu0 0
      %1399 = vmatprep.subr.bf16.mxu0 0
      %1400 = vmatpush2.bf16.msra.mxu0 0
      %1401 = vmatprep.mubr.bf16.mxu0 0
      %1402 = vmatmul.mubr.bf16.gmra.mxu0 %v1210
      %v1403 = vpop.f32.mrf.mxu0
      %v1404 = vadd.f32 %v1343, %v1403
      %v1405 = vpop.f32.mrf.mxu0
      %v1406 = vpop.f32.mrf.mxu0
      %v1407 = vadd.f32 %v1343, %v1406
      %v1408 = vpop.f32.mrf.mxu0
      %1409 = vmatprep.mubr.bf16.mxu0 0
      %1410 = vmatmul.mubr.bf16.gmra.mxu0 %v1213
      %v1411 = vpop.f32.mrf.mxu0
      %v1412 = vadd.f32 %v1343, %v1411
      %v1413 = vpop.f32.mrf.mxu0
      %v1414 = vpop.f32.mrf.mxu0
      %v1415 = vadd.f32 %v1343, %v1414
      %v1416 = vpop.f32.mrf.mxu0
      %1417 = vmatprep.mubr.bf16.mxu0 0
      %1418 = vmatmul.mubr.bf16.gmra.mxu0 %v1216
      %v1419 = vpop.f32.mrf.mxu0
      %v1420 = vadd.f32 %v1343, %v1419
      %v1421 = vpop.f32.mrf.mxu0
      %v1422 = vpop.f32.mrf.mxu0
      %v1423 = vadd.f32 %v1343, %v1422
      %v1424 = vpop.f32.mrf.mxu0
      %1425 = vmatprep.mubr.bf16.mxu0 0
      %1426 = vmatmul.mubr.bf16.gmra.mxu0 %v1219
      %v1427 = vpop.f32.mrf.mxu0
      %v1428 = vadd.f32 %v1343, %v1427
      %v1429 = vpop.f32.mrf.mxu0
      %v1430 = vpop.f32.mrf.mxu0
      %v1431 = vadd.f32 %v1343, %v1430
      %v1432 = vpop.f32.mrf.mxu0
      %1433 = vmatprep.mubr.bf16.mxu0 0
      %1434 = vmatmul.mubr.bf16.gmra.mxu0 %v1222
      %v1435 = vpop.f32.mrf.mxu0
      %v1436 = vadd.f32 %v1343, %v1435
      %v1437 = vpop.f32.mrf.mxu0
      %v1438 = vpop.f32.mrf.mxu0
      %v1439 = vadd.f32 %v1343, %v1438
      %v1440 = vpop.f32.mrf.mxu0
      %1441 = vmatprep.mubr.bf16.mxu0 0
      %1442 = vmatmul.mubr.bf16.gmra.mxu0 %v1225
      %v1443 = vpop.f32.mrf.mxu0
      %v1444 = vadd.f32 %v1343, %v1443
      %v1445 = vpop.f32.mrf.mxu0
      %v1446 = vpop.f32.mrf.mxu0
      %v1447 = vadd.f32 %v1343, %v1446
      %v1448 = vpop.f32.mrf.mxu0
      %1449 = vmatprep.mubr.bf16.mxu0 0
      %1450 = vmatmul.mubr.bf16.gmra.mxu0 %v1228
      %v1451 = vpop.f32.mrf.mxu0
      %v1452 = vadd.f32 %v1343, %v1451
      %v1453 = vpop.f32.mrf.mxu0
      %v1454 = vpop.f32.mrf.mxu0
      %v1455 = vadd.f32 %v1343, %v1454
      %v1456 = vpop.f32.mrf.mxu0
      %1457 = vmatprep.mubr.bf16.mxu0 0
      %1458 = vmatmul.mubr.bf16.gmra.mxu0 %v1231
      %v1459 = vpop.f32.mrf.mxu0
      %v1460 = vadd.f32 %v1343, %v1459
      %v1461 = vpop.f32.mrf.mxu0
      %v1462 = vpop.f32.mrf.mxu0
      %v1463 = vadd.f32 %v1343, %v1462
      %v1464 = vpop.f32.mrf.mxu0
      %1465 = vdwg.mxu0
      %v1466 = vld [vmem:[%s8] sm:$0xf]
      %v1467 = vld [vmem:[%s8 + $0x4] sm:$0xf]
      %v1468 = vld [vmem:[%s8 + $0x8] sm:$0xf]
      %v1469 = vld [vmem:[%s8 + $0xc] sm:$0xf]
      %v1470 = vld [vmem:[%s8 + $0x10] sm:$0xf]
      %v1471 = vld [vmem:[%s8 + $0x14] sm:$0xf]
      %v1472 = vld [vmem:[%s8 + $0x18] sm:$0xf]
      %v1473 = vld [vmem:[%s8 + $0x1c] sm:$0xf]
      %v1474 = vld [vmem:[%s9] sm:$0x1]
      %v1476 = vlaneseq
      %v1477 = vshrl.u32 %v1476, 7
      %v1478 = vsub.s32 0, %v1477
      %v1479 = vrot.slane %v1474, %v1478
      %v1489 = vunpack.c.l.b16 %v1466
      %v1490 = vunpack.c.l.b16 %v1467
      %v1491 = vunpack.c.l.b16 %v1468
      %v1492 = vunpack.c.l.b16 %v1469
      %v1493 = vunpack.c.l.b16 %v1470
      %v1494 = vunpack.c.l.b16 %v1471
      %v1495 = vunpack.c.l.b16 %v1472
      %v1496 = vunpack.c.l.b16 %v1473
      %v1497 = vpack.c.b16 %v1490, %v1489
      %v1498 = vpack.c.b16 %v1492, %v1491
      %v1499 = vpack.c.b16 %v1494, %v1493
      %v1500 = vpack.c.b16 %v1496, %v1495
      %1505 = vmatprep.subr.bf16.mxu0 0
      %1506 = vmatpush1.bf16.msra.mxu0 0
      %1507 = vmatprep.subr.bf16.mxu0 0
      %1508 = vmatpush1.bf16.msra.mxu0 0
      %1509 = vmatprep.subr.bf16.mxu0 0
      %1510 = vmatpush1.bf16.msra.mxu0 0
      %1511 = vmatprep.subr.bf16.mxu0 0
      %1512 = vmatpush1.bf16.msra.mxu0 0
      %1513 = vmatprep.subr.bf16.mxu0 0
      %1514 = vmatpush1.bf16.msra.mxu0 %v1500
      %1515 = vmatprep.subr.bf16.mxu0 0
      %1516 = vmatpush1.bf16.msra.mxu0 %v1499
      %1517 = vmatprep.subr.bf16.mxu0 0
      %1518 = vmatpush1.bf16.msra.mxu0 %v1498
      %1519 = vmatprep.subr.bf16.mxu0 0
      %1520 = vmatpush1.bf16.msra.mxu0 %v1497
      %1521 = vmatprep.subr.bf16.mxu0 0
      %1522 = vmatpush2.bf16.msra.mxu0 0
      %1523 = vmatprep.subr.bf16.mxu0 0
      %1524 = vmatpush2.bf16.msra.mxu0 0
      %1525 = vmatprep.subr.bf16.mxu0 0
      %1526 = vmatpush2.bf16.msra.mxu0 0
      %1527 = vmatprep.subr.bf16.mxu0 0
      %1528 = vmatpush2.bf16.msra.mxu0 0
      %1529 = vmatprep.subr.bf16.mxu0 0
      %1530 = vmatpush2.bf16.msra.mxu0 0
      %1531 = vmatprep.subr.bf16.mxu0 0
      %1532 = vmatpush2.bf16.msra.mxu0 0
      %1533 = vmatprep.subr.bf16.mxu0 0
      %1534 = vmatpush2.bf16.msra.mxu0 0
      %1535 = vmatprep.subr.bf16.mxu0 0
      %1536 = vmatpush2.bf16.msra.mxu0 0
      %1537 = vmatprep.mubr.bf16.mxu0 0
      %1538 = vmatmul.mubr.bf16.gmra.mxu0 %v1210
      %v1539 = vpop.f32.mrf.mxu0
      %v1540 = vadd.f32 %v1479, %v1539
      %v1541 = vpop.f32.mrf.mxu0
      %v1542 = vpop.f32.mrf.mxu0
      %v1543 = vadd.f32 %v1479, %v1542
      %v1544 = vpop.f32.mrf.mxu0
      %1545 = vmatprep.mubr.bf16.mxu0 0
      %1546 = vmatmul.mubr.bf16.gmra.mxu0 %v1213
      %v1547 = vpop.f32.mrf.mxu0
      %v1548 = vadd.f32 %v1479, %v1547
      %v1549 = vpop.f32.mrf.mxu0
      %v1550 = vpop.f32.mrf.mxu0
      %v1551 = vadd.f32 %v1479, %v1550
      %v1552 = vpop.f32.mrf.mxu0
      %1553 = vmatprep.mubr.bf16.mxu0 0
      %1554 = vmatmul.mubr.bf16.gmra.mxu0 %v1216
      %v1555 = vpop.f32.mrf.mxu0
      %v1556 = vadd.f32 %v1479, %v1555
      %v1557 = vpop.f32.mrf.mxu0
      %v1558 = vpop.f32.mrf.mxu0
      %v1559 = vadd.f32 %v1479, %v1558
      %v1560 = vpop.f32.mrf.mxu0
      %1561 = vmatprep.mubr.bf16.mxu0 0
      %1562 = vmatmul.mubr.bf16.gmra.mxu0 %v1219
      %v1563 = vpop.f32.mrf.mxu0
      %v1564 = vadd.f32 %v1479, %v1563
      %v1565 = vpop.f32.mrf.mxu0
      %v1566 = vpop.f32.mrf.mxu0
      %v1567 = vadd.f32 %v1479, %v1566
      %v1568 = vpop.f32.mrf.mxu0
      %1569 = vmatprep.mubr.bf16.mxu0 0
      %1570 = vmatmul.mubr.bf16.gmra.mxu0 %v1222
      %v1571 = vpop.f32.mrf.mxu0
      %v1572 = vadd.f32 %v1479, %v1571
      %v1573 = vpop.f32.mrf.mxu0
      %v1574 = vpop.f32.mrf.mxu0
      %v1575 = vadd.f32 %v1479, %v1574
      %v1576 = vpop.f32.mrf.mxu0
      %1577 = vmatprep.mubr.bf16.mxu0 0
      %1578 = vmatmul.mubr.bf16.gmra.mxu0 %v1225
      %v1579 = vpop.f32.mrf.mxu0
      %v1580 = vadd.f32 %v1479, %v1579
      %v1581 = vpop.f32.mrf.mxu0
      %v1582 = vpop.f32.mrf.mxu0
      %v1583 = vadd.f32 %v1479, %v1582
      %v1584 = vpop.f32.mrf.mxu0
      %1585 = vmatprep.mubr.bf16.mxu0 0
      %1586 = vmatmul.mubr.bf16.gmra.mxu0 %v1228
      %v1587 = vpop.f32.mrf.mxu0
      %v1588 = vadd.f32 %v1479, %v1587
      %v1589 = vpop.f32.mrf.mxu0
      %v1590 = vpop.f32.mrf.mxu0
      %v1591 = vadd.f32 %v1479, %v1590
      %v1592 = vpop.f32.mrf.mxu0
      %1593 = vmatprep.mubr.bf16.mxu0 0
      %1594 = vmatmul.mubr.bf16.gmra.mxu0 %v1231
      %v1595 = vpop.f32.mrf.mxu0
      %v1596 = vadd.f32 %v1479, %v1595
      %v1597 = vpop.f32.mrf.mxu0
      %v1598 = vpop.f32.mrf.mxu0
      %v1599 = vadd.f32 %v1479, %v1598
      %v1600 = vpop.f32.mrf.mxu0
      %1601 = vdwg.mxu0
      %v1602 = vpack.c.bf16 %v1271, %v1268
      %v1603 = vpack.c.bf16 %v1279, %v1276
      %v1604 = vpack.c.bf16 %v1287, %v1284
      %v1605 = vpack.c.bf16 %v1295, %v1292
      %v1606 = vpack.c.bf16 %v1303, %v1300
      %v1607 = vpack.c.bf16 %v1311, %v1308
      %v1608 = vpack.c.bf16 %v1319, %v1316
      %v1609 = vpack.c.bf16 %v1327, %v1324
      %v1610 = vpack.c.bf16 %v1407, %v1404
      %v1611 = vpack.c.bf16 %v1415, %v1412
      %v1612 = vpack.c.bf16 %v1423, %v1420
      %v1613 = vpack.c.bf16 %v1431, %v1428
      %v1614 = vpack.c.bf16 %v1439, %v1436
      %v1615 = vpack.c.bf16 %v1447, %v1444
      %v1616 = vpack.c.bf16 %v1455, %v1452
      %v1617 = vpack.c.bf16 %v1463, %v1460
      %v1619 = vsel %vm769, %v1602, 0
      %v1622 = vsel %vm769, %v1603, 0
      %v1625 = vsel %vm769, %v1604, 0
      %v1628 = vsel %vm769, %v1605, 0
      %v1631 = vsel %vm769, %v1606, 0
      %v1634 = vsel %vm769, %v1607, 0
      %v1637 = vsel %vm769, %v1608, 0
      %v1640 = vsel %vm769, %v1609, 0
      %v1643 = vsel %vm769, %v1610, 0
      %v1646 = vsel %vm769, %v1611, 0
      %v1649 = vsel %vm769, %v1612, 0
      %v1652 = vsel %vm769, %v1613, 0
      %v1655 = vsel %vm769, %v1614, 0
      %v1658 = vsel %vm769, %v1615, 0
      %v1661 = vsel %vm769, %v1616, 0
      %v1664 = vsel %vm769, %v1617, 0
      %1666 = vmatprep.subr.bf16.mxu0 0
      %1667 = vmatpush1.bf16.xpose.msra.mxu0 %v1664
      %1668 = vmatprep.subr.bf16.mxu0 0
      %1669 = vmatpush1.bf16.xpose.msra.mxu0 %v1661
      %1670 = vmatprep.subr.bf16.mxu0 0
      %1671 = vmatpush1.bf16.xpose.msra.mxu0 %v1658
      %1672 = vmatprep.subr.bf16.mxu0 0
      %1673 = vmatpush1.bf16.xpose.msra.mxu0 %v1655
      %1674 = vmatprep.subr.bf16.mxu0 0
      %1675 = vmatpush1.bf16.xpose.msra.mxu0 %v1652
      %1676 = vmatprep.subr.bf16.mxu0 0
      %1677 = vmatpush1.bf16.xpose.msra.mxu0 %v1649
      %1678 = vmatprep.subr.bf16.mxu0 0
      %1679 = vmatpush1.bf16.xpose.msra.mxu0 %v1646
      %1680 = vmatprep.subr.bf16.mxu0 0
      %1681 = vmatpush1.bf16.xpose.msra.mxu0 %v1643
      %1682 = vmatprep.subr.bf16.mxu0 0
      %1683 = vmatpush2.bf16.xpose.msra.mxu0 0
      %1684 = vmatprep.subr.bf16.mxu0 0
      %1685 = vmatpush2.bf16.xpose.msra.mxu0 0
      %1686 = vmatprep.subr.bf16.mxu0 0
      %1687 = vmatpush2.bf16.xpose.msra.mxu0 0
      %1688 = vmatprep.subr.bf16.mxu0 0
      %1689 = vmatpush2.bf16.xpose.msra.mxu0 0
      %1690 = vmatprep.subr.bf16.mxu0 0
      %1691 = vmatpush2.bf16.xpose.msra.mxu0 0
      %1692 = vmatprep.subr.bf16.mxu0 0
      %1693 = vmatpush2.bf16.xpose.msra.mxu0 0
      %1694 = vmatprep.subr.bf16.mxu0 0
      %1695 = vmatpush2.bf16.xpose.msra.mxu0 0
      %1696 = vmatprep.subr.bf16.mxu0 0
      %1697 = vmatpush2.bf16.xpose.msra.mxu0 0
      %1698 = vmatprep.mubr.bf16.mxu0 0
      %1699 = vmatmul.mubr.bf16.gmra.mxu0 %v1619
      %v1700 = vpop.f32.mrf.mxu0
      %v1701 = vadd.f32 %v1146, %v1700
      %v1702 = vpop.f32.mrf.mxu0
      %v1703 = vpop.f32.mrf.mxu0
      %v1704 = vadd.f32 %v1147, %v1703
      %v1705 = vpop.f32.mrf.mxu0
      %1706 = vmatprep.mubr.bf16.mxu0 0
      %1707 = vmatmul.mubr.bf16.gmra.mxu0 %v1622
      %v1708 = vpop.f32.mrf.mxu0
      %v1709 = vadd.f32 %v1148, %v1708
      %v1710 = vpop.f32.mrf.mxu0
      %v1711 = vpop.f32.mrf.mxu0
      %v1712 = vadd.f32 %v1149, %v1711
      %v1713 = vpop.f32.mrf.mxu0
      %1714 = vmatprep.mubr.bf16.mxu0 0
      %1715 = vmatmul.mubr.bf16.gmra.mxu0 %v1625
      %v1716 = vpop.f32.mrf.mxu0
      %v1717 = vadd.f32 %v1150, %v1716
      %v1718 = vpop.f32.mrf.mxu0
      %v1719 = vpop.f32.mrf.mxu0
      %v1720 = vadd.f32 %v1151, %v1719
      %v1721 = vpop.f32.mrf.mxu0
      %1722 = vmatprep.mubr.bf16.mxu0 0
      %1723 = vmatmul.mubr.bf16.gmra.mxu0 %v1628
      %v1724 = vpop.f32.mrf.mxu0
      %v1725 = vadd.f32 %v1152, %v1724
      %v1726 = vpop.f32.mrf.mxu0
      %v1727 = vpop.f32.mrf.mxu0
      %v1728 = vadd.f32 %v1153, %v1727
      %v1729 = vpop.f32.mrf.mxu0
      %1730 = vmatprep.mubr.bf16.mxu0 0
      %1731 = vmatmul.mubr.bf16.gmra.mxu0 %v1631
      %v1732 = vpop.f32.mrf.mxu0
      %v1733 = vadd.f32 %v1154, %v1732
      %v1734 = vpop.f32.mrf.mxu0
      %v1735 = vpop.f32.mrf.mxu0
      %v1736 = vadd.f32 %v1155, %v1735
      %v1737 = vpop.f32.mrf.mxu0
      %1738 = vmatprep.mubr.bf16.mxu0 0
      %1739 = vmatmul.mubr.bf16.gmra.mxu0 %v1634
      %v1740 = vpop.f32.mrf.mxu0
      %v1741 = vadd.f32 %v1156, %v1740
      %v1742 = vpop.f32.mrf.mxu0
      %v1743 = vpop.f32.mrf.mxu0
      %v1744 = vadd.f32 %v1157, %v1743
      %v1745 = vpop.f32.mrf.mxu0
      %1746 = vmatprep.mubr.bf16.mxu0 0
      %1747 = vmatmul.mubr.bf16.gmra.mxu0 %v1637
      %v1748 = vpop.f32.mrf.mxu0
      %v1749 = vadd.f32 %v1158, %v1748
      %v1750 = vpop.f32.mrf.mxu0
      %v1751 = vpop.f32.mrf.mxu0
      %v1752 = vadd.f32 %v1159, %v1751
      %v1753 = vpop.f32.mrf.mxu0
      %1754 = vmatprep.mubr.bf16.mxu0 0
      %1755 = vmatmul.mubr.bf16.gmra.mxu0 %v1640
      %v1756 = vpop.f32.mrf.mxu0
      %v1757 = vadd.f32 %v1160, %v1756
      %v1758 = vpop.f32.mrf.mxu0
      %v1759 = vpop.f32.mrf.mxu0
      %v1760 = vadd.f32 %v1161, %v1759
      %v1761 = vpop.f32.mrf.mxu0
      %1762 = vdwg.mxu0
      %1763 = vmax.xlane.f32.xlu0 %v1701
      %v1764 = vpop.xlane.xlu0 %1763
      %1765 = vmax.xlane.f32.xlu0 %v1704
      %v1766 = vpop.xlane.xlu0 %1765
      %1767 = vmax.xlane.f32.xlu0 %v1709
      %v1768 = vpop.xlane.xlu0 %1767
      %1769 = vmax.xlane.f32.xlu0 %v1712
      %v1770 = vpop.xlane.xlu0 %1769
      %1771 = vmax.xlane.f32.xlu0 %v1717
      %v1772 = vpop.xlane.xlu0 %1771
      %1773 = vmax.xlane.f32.xlu0 %v1720
      %v1774 = vpop.xlane.xlu0 %1773
      %1775 = vmax.xlane.f32.xlu0 %v1725
      %v1776 = vpop.xlane.xlu0 %1775
      %1777 = vmax.xlane.f32.xlu0 %v1728
      %v1778 = vpop.xlane.xlu0 %1777
      %1779 = vmax.xlane.f32.xlu0 %v1733
      %v1780 = vpop.xlane.xlu0 %1779
      %1781 = vmax.xlane.f32.xlu0 %v1736
      %v1782 = vpop.xlane.xlu0 %1781
      %1783 = vmax.xlane.f32.xlu0 %v1741
      %v1784 = vpop.xlane.xlu0 %1783
      %1785 = vmax.xlane.f32.xlu0 %v1744
      %v1786 = vpop.xlane.xlu0 %1785
      %1787 = vmax.xlane.f32.xlu0 %v1749
      %v1788 = vpop.xlane.xlu0 %1787
      %1789 = vmax.xlane.f32.xlu0 %v1752
      %v1790 = vpop.xlane.xlu0 %1789
      %1791 = vmax.xlane.f32.xlu0 %v1757
      %v1792 = vpop.xlane.xlu0 %1791
      %1793 = vmax.xlane.f32.xlu0 %v1760
      %v1794 = vpop.xlane.xlu0 %1793
      %v1795 = vsub.f32 %v1701, %v1764
      %v1796 = vsub.f32 %v1704, %v1766
      %v1797 = vsub.f32 %v1709, %v1768
      %v1798 = vsub.f32 %v1712, %v1770
      %v1799 = vsub.f32 %v1717, %v1772
      %v1800 = vsub.f32 %v1720, %v1774
      %v1801 = vsub.f32 %v1725, %v1776
      %v1802 = vsub.f32 %v1728, %v1778
      %v1803 = vsub.f32 %v1733, %v1780
      %v1804 = vsub.f32 %v1736, %v1782
      %v1805 = vsub.f32 %v1741, %v1784
      %v1806 = vsub.f32 %v1744, %v1786
      %v1807 = vsub.f32 %v1749, %v1788
      %v1808 = vsub.f32 %v1752, %v1790
      %v1809 = vsub.f32 %v1757, %v1792
      %v1810 = vsub.f32 %v1760, %v1794
      %v1811 = vmul.f32 %v1795, 1.442695
      %v1812 = vpow.pop %v1811
      %v1813 = vmul.f32 %v1796, 1.442695
      %v1814 = vpow.pop %v1813
      %v1815 = vmul.f32 %v1797, 1.442695
      %v1816 = vpow.pop %v1815
      %v1817 = vmul.f32 %v1798, 1.442695
      %v1818 = vpow.pop %v1817
      %v1819 = vmul.f32 %v1799, 1.442695
      %v1820 = vpow.pop %v1819
      %v1821 = vmul.f32 %v1800, 1.442695
      %v1822 = vpow.pop %v1821
      %v1823 = vmul.f32 %v1801, 1.442695
      %v1824 = vpow.pop %v1823
      %v1825 = vmul.f32 %v1802, 1.442695
      %v1826 = vpow.pop %v1825
      %v1827 = vmul.f32 %v1803, 1.442695
      %v1828 = vpow.pop %v1827
      %v1829 = vmul.f32 %v1804, 1.442695
      %v1830 = vpow.pop %v1829
      %v1831 = vmul.f32 %v1805, 1.442695
      %v1832 = vpow.pop %v1831
      %v1833 = vmul.f32 %v1806, 1.442695
      %v1834 = vpow.pop %v1833
      %v1835 = vmul.f32 %v1807, 1.442695
      %v1836 = vpow.pop %v1835
      %v1837 = vmul.f32 %v1808, 1.442695
      %v1838 = vpow.pop %v1837
      %v1839 = vmul.f32 %v1809, 1.442695
      %v1840 = vpow.pop %v1839
      %v1841 = vmul.f32 %v1810, 1.442695
      %v1842 = vpow.pop %v1841
      %1843 = vadd.xlane.f32.xlu0 %v1812
      %v1844 = vpop.xlane.xlu0 %1843
      %1845 = vadd.xlane.f32.xlu0 %v1814
      %v1846 = vpop.xlane.xlu0 %1845
      %1847 = vadd.xlane.f32.xlu0 %v1816
      %v1848 = vpop.xlane.xlu0 %1847
      %1849 = vadd.xlane.f32.xlu0 %v1818
      %v1850 = vpop.xlane.xlu0 %1849
      %1851 = vadd.xlane.f32.xlu0 %v1820
      %v1852 = vpop.xlane.xlu0 %1851
      %1853 = vadd.xlane.f32.xlu0 %v1822
      %v1854 = vpop.xlane.xlu0 %1853
      %1855 = vadd.xlane.f32.xlu0 %v1824
      %v1856 = vpop.xlane.xlu0 %1855
      %1857 = vadd.xlane.f32.xlu0 %v1826
      %v1858 = vpop.xlane.xlu0 %1857
      %1859 = vadd.xlane.f32.xlu0 %v1828
      %v1860 = vpop.xlane.xlu0 %1859
      %1861 = vadd.xlane.f32.xlu0 %v1830
      %v1862 = vpop.xlane.xlu0 %1861
      %1863 = vadd.xlane.f32.xlu0 %v1832
      %v1864 = vpop.xlane.xlu0 %1863
      %1865 = vadd.xlane.f32.xlu0 %v1834
      %v1866 = vpop.xlane.xlu0 %1865
      %1867 = vadd.xlane.f32.xlu0 %v1836
      %v1868 = vpop.xlane.xlu0 %1867
      %1869 = vadd.xlane.f32.xlu0 %v1838
      %v1870 = vpop.xlane.xlu0 %1869
      %1871 = vadd.xlane.f32.xlu0 %v1840
      %v1872 = vpop.xlane.xlu0 %1871
      %1873 = vadd.xlane.f32.xlu0 %v1842
      %v1874 = vpop.xlane.xlu0 %1873
      %v1875 = vrcp.pop %v1844
      %v1876 = vrcp.pop %v1846
      %v1877 = vrcp.pop %v1848
      %v1878 = vrcp.pop %v1850
      %v1879 = vrcp.pop %v1852
      %v1880 = vrcp.pop %v1854
      %v1881 = vrcp.pop %v1856
      %v1882 = vrcp.pop %v1858
      %v1883 = vrcp.pop %v1860
      %v1884 = vrcp.pop %v1862
      %v1885 = vrcp.pop %v1864
      %v1886 = vrcp.pop %v1866
      %v1887 = vrcp.pop %v1868
      %v1888 = vrcp.pop %v1870
      %v1889 = vrcp.pop %v1872
      %v1890 = vrcp.pop %v1874
      %v1891 = vmul.f32 %v1812, %v1875
      %v1892 = vmul.f32 %v1814, %v1876
      %v1893 = vmul.f32 %v1816, %v1877
      %v1894 = vmul.f32 %v1818, %v1878
      %v1895 = vmul.f32 %v1820, %v1879
      %v1896 = vmul.f32 %v1822, %v1880
      %v1897 = vmul.f32 %v1824, %v1881
      %v1898 = vmul.f32 %v1826, %v1882
      %v1899 = vmul.f32 %v1828, %v1883
      %v1900 = vmul.f32 %v1830, %v1884
      %v1901 = vmul.f32 %v1832, %v1885
      %v1902 = vmul.f32 %v1834, %v1886
      %v1903 = vmul.f32 %v1836, %v1887
      %v1904 = vmul.f32 %v1838, %v1888
      %v1905 = vmul.f32 %v1840, %v1889
      %v1906 = vmul.f32 %v1842, %v1890
      %v1907 = vpack.c.bf16 %v1892, %v1891
      %v1908 = vpack.c.bf16 %v1894, %v1893
      %v1909 = vpack.c.bf16 %v1896, %v1895
      %v1910 = vpack.c.bf16 %v1898, %v1897
      %v1911 = vpack.c.bf16 %v1900, %v1899
      %v1912 = vpack.c.bf16 %v1902, %v1901
      %v1913 = vpack.c.bf16 %v1904, %v1903
      %v1914 = vpack.c.bf16 %v1906, %v1905
      %v1915 = vpack.c.bf16 %v1543, %v1540
      %v1916 = vpack.c.bf16 %v1551, %v1548
      %v1917 = vpack.c.bf16 %v1559, %v1556
      %v1918 = vpack.c.bf16 %v1567, %v1564
      %v1919 = vpack.c.bf16 %v1575, %v1572
      %v1920 = vpack.c.bf16 %v1583, %v1580
      %v1921 = vpack.c.bf16 %v1591, %v1588
      %v1922 = vpack.c.bf16 %v1599, %v1596
      %1923 = vmatprep.subr.bf16.mxu0 0
      %1924 = vmatpush1.bf16.msra.mxu0 %v1922
      %1925 = vmatprep.subr.bf16.mxu0 0
      %1926 = vmatpush1.bf16.msra.mxu0 %v1921
      %1927 = vmatprep.subr.bf16.mxu0 0
      %1928 = vmatpush1.bf16.msra.mxu0 %v1920
      %1929 = vmatprep.subr.bf16.mxu0 0
      %1930 = vmatpush1.bf16.msra.mxu0 %v1919
      %1931 = vmatprep.subr.bf16.mxu0 0
      %1932 = vmatpush1.bf16.msra.mxu0 %v1918
      %1933 = vmatprep.subr.bf16.mxu0 0
      %1934 = vmatpush1.bf16.msra.mxu0 %v1917
      %1935 = vmatprep.subr.bf16.mxu0 0
      %1936 = vmatpush1.bf16.msra.mxu0 %v1916
      %1937 = vmatprep.subr.bf16.mxu0 0
      %1938 = vmatpush1.bf16.msra.mxu0 %v1915
      %1939 = vmatprep.subr.bf16.mxu0 0
      %1940 = vmatpush2.bf16.msra.mxu0 0
      %1941 = vmatprep.subr.bf16.mxu0 0
      %1942 = vmatpush2.bf16.msra.mxu0 0
      %1943 = vmatprep.subr.bf16.mxu0 0
      %1944 = vmatpush2.bf16.msra.mxu0 0
      %1945 = vmatprep.subr.bf16.mxu0 0
      %1946 = vmatpush2.bf16.msra.mxu0 0
      %1947 = vmatprep.subr.bf16.mxu0 0
      %1948 = vmatpush2.bf16.msra.mxu0 0
      %1949 = vmatprep.subr.bf16.mxu0 0
      %1950 = vmatpush2.bf16.msra.mxu0 0
      %1951 = vmatprep.subr.bf16.mxu0 0
      %1952 = vmatpush2.bf16.msra.mxu0 0
      %1953 = vmatprep.subr.bf16.mxu0 0
      %1954 = vmatpush2.bf16.msra.mxu0 0
      %1955 = vmatprep.mubr.bf16.mxu0 0
      %1956 = vmatmul.mubr.bf16.gmra.mxu0 %v1907
      %v1957 = vpop.f32.mrf.mxu0
      %v1958 = vadd.f32 0.0, %v1957
      %v1959 = vpop.f32.mrf.mxu0
      %v1960 = vpop.f32.mrf.mxu0
      %v1961 = vadd.f32 0.0, %v1960
      %v1962 = vpop.f32.mrf.mxu0
      %1963 = vmatprep.mubr.bf16.mxu0 0
      %1964 = vmatmul.mubr.bf16.gmra.mxu0 %v1908
      %v1965 = vpop.f32.mrf.mxu0
      %v1966 = vadd.f32 0.0, %v1965
      %v1967 = vpop.f32.mrf.mxu0
      %v1968 = vpop.f32.mrf.mxu0
      %v1969 = vadd.f32 0.0, %v1968
      %v1970 = vpop.f32.mrf.mxu0
      %1971 = vmatprep.mubr.bf16.mxu0 0
      %1972 = vmatmul.mubr.bf16.gmra.mxu0 %v1909
      %v1973 = vpop.f32.mrf.mxu0
      %v1974 = vadd.f32 0.0, %v1973
      %v1975 = vpop.f32.mrf.mxu0
      %v1976 = vpop.f32.mrf.mxu0
      %v1977 = vadd.f32 0.0, %v1976
      %v1978 = vpop.f32.mrf.mxu0
      %1979 = vmatprep.mubr.bf16.mxu0 0
      %1980 = vmatmul.mubr.bf16.gmra.mxu0 %v1910
      %v1981 = vpop.f32.mrf.mxu0
      %v1982 = vadd.f32 0.0, %v1981
      %v1983 = vpop.f32.mrf.mxu0
      %v1984 = vpop.f32.mrf.mxu0
      %v1985 = vadd.f32 0.0, %v1984
      %v1986 = vpop.f32.mrf.mxu0
      %1987 = vmatprep.mubr.bf16.mxu0 0
      %1988 = vmatmul.mubr.bf16.gmra.mxu0 %v1911
      %v1989 = vpop.f32.mrf.mxu0
      %v1990 = vadd.f32 0.0, %v1989
      %v1991 = vpop.f32.mrf.mxu0
      %v1992 = vpop.f32.mrf.mxu0
      %v1993 = vadd.f32 0.0, %v1992
      %v1994 = vpop.f32.mrf.mxu0
      %1995 = vmatprep.mubr.bf16.mxu0 0
      %1996 = vmatmul.mubr.bf16.gmra.mxu0 %v1912
      %v1997 = vpop.f32.mrf.mxu0
      %v1998 = vadd.f32 0.0, %v1997
      %v1999 = vpop.f32.mrf.mxu0
      %v2000 = vpop.f32.mrf.mxu0
      %v2001 = vadd.f32 0.0, %v2000
      %v2002 = vpop.f32.mrf.mxu0
      %2003 = vmatprep.mubr.bf16.mxu0 0
      %2004 = vmatmul.mubr.bf16.gmra.mxu0 %v1913
      %v2005 = vpop.f32.mrf.mxu0
      %v2006 = vadd.f32 0.0, %v2005
      %v2007 = vpop.f32.mrf.mxu0
      %v2008 = vpop.f32.mrf.mxu0
      %v2009 = vadd.f32 0.0, %v2008
      %v2010 = vpop.f32.mrf.mxu0
      %2011 = vmatprep.mubr.bf16.mxu0 0
      %2012 = vmatmul.mubr.bf16.gmra.mxu0 %v1914
      %v2013 = vpop.f32.mrf.mxu0
      %v2014 = vadd.f32 0.0, %v2013
      %v2015 = vpop.f32.mrf.mxu0
      %v2016 = vpop.f32.mrf.mxu0
      %v2017 = vadd.f32 0.0, %v2016
      %v2018 = vpop.f32.mrf.mxu0
      %2019 = vdwg.mxu0
      %v2020 = vpack.c.bf16 %v1961, %v1958
      %v2021 = vpack.c.bf16 %v1969, %v1966
      %v2022 = vpack.c.bf16 %v1977, %v1974
      %v2023 = vpack.c.bf16 %v1985, %v1982
      %v2024 = vpack.c.bf16 %v1993, %v1990
      %v2025 = vpack.c.bf16 %v2001, %v1998
      %v2026 = vpack.c.bf16 %v2009, %v2006
      %v2027 = vpack.c.bf16 %v2017, %v2014
      %v2028 = vld [vmem:[%s10] sm:$0xf]
      %v2029 = vld [vmem:[%s10 + $0x4] sm:$0xf]
      %v2030 = vld [vmem:[%s10 + $0x8] sm:$0xf]
      %v2031 = vld [vmem:[%s10 + $0xc] sm:$0xf]
      %v2032 = vld [vmem:[%s10 + $0x10] sm:$0xf]
      %v2033 = vld [vmem:[%s10 + $0x14] sm:$0xf]
      %v2034 = vld [vmem:[%s10 + $0x18] sm:$0xf]
      %v2035 = vld [vmem:[%s10 + $0x1c] sm:$0xf]
      %v2036 = vld [vmem:[%s11] sm:$0x1]
      %v2038 = vlaneseq
      %v2039 = vshrl.u32 %v2038, 7
      %v2040 = vsub.s32 0, %v2039
      %v2041 = vrot.slane %v2036, %v2040
      %v2051 = vunpack.c.l.b16 %v2028
      %v2052 = vunpack.c.l.b16 %v2029
      %v2053 = vunpack.c.l.b16 %v2030
      %v2054 = vunpack.c.l.b16 %v2031
      %v2055 = vunpack.c.l.b16 %v2032
      %v2056 = vunpack.c.l.b16 %v2033
      %v2057 = vunpack.c.l.b16 %v2034
      %v2058 = vunpack.c.l.b16 %v2035
      %v2059 = vpack.c.b16 %v2052, %v2051
      %v2060 = vpack.c.b16 %v2054, %v2053
      %v2061 = vpack.c.b16 %v2056, %v2055
      %v2062 = vpack.c.b16 %v2058, %v2057
      %v2068 = vsel %vm769, %v2020, 0
      %v2071 = vsel %vm769, %v2021, 0
      %v2074 = vsel %vm769, %v2022, 0
      %v2077 = vsel %vm769, %v2023, 0
      %v2080 = vsel %vm769, %v2024, 0
      %v2083 = vsel %vm769, %v2025, 0
      %v2086 = vsel %vm769, %v2026, 0
      %v2089 = vsel %vm769, %v2027, 0
      %2091 = vmatprep.subr.bf16.mxu0 0
      %2092 = vmatpush1.bf16.msra.mxu0 0
      %2093 = vmatprep.subr.bf16.mxu0 0
      %2094 = vmatpush1.bf16.msra.mxu0 0
      %2095 = vmatprep.subr.bf16.mxu0 0
      %2096 = vmatpush1.bf16.msra.mxu0 0
      %2097 = vmatprep.subr.bf16.mxu0 0
      %2098 = vmatpush1.bf16.msra.mxu0 0
      %2099 = vmatprep.subr.bf16.mxu0 0
      %2100 = vmatpush1.bf16.msra.mxu0 %v2062
      %2101 = vmatprep.subr.bf16.mxu0 0
      %2102 = vmatpush1.bf16.msra.mxu0 %v2061
      %2103 = vmatprep.subr.bf16.mxu0 0
      %2104 = vmatpush1.bf16.msra.mxu0 %v2060
      %2105 = vmatprep.subr.bf16.mxu0 0
      %2106 = vmatpush1.bf16.msra.mxu0 %v2059
      %2107 = vmatprep.subr.bf16.mxu0 0
      %2108 = vmatpush2.bf16.msra.mxu0 0
      %2109 = vmatprep.subr.bf16.mxu0 0
      %2110 = vmatpush2.bf16.msra.mxu0 0
      %2111 = vmatprep.subr.bf16.mxu0 0
      %2112 = vmatpush2.bf16.msra.mxu0 0
      %2113 = vmatprep.subr.bf16.mxu0 0
      %2114 = vmatpush2.bf16.msra.mxu0 0
      %2115 = vmatprep.subr.bf16.mxu0 0
      %2116 = vmatpush2.bf16.msra.mxu0 0
      %2117 = vmatprep.subr.bf16.mxu0 0
      %2118 = vmatpush2.bf16.msra.mxu0 0
      %2119 = vmatprep.subr.bf16.mxu0 0
      %2120 = vmatpush2.bf16.msra.mxu0 0
      %2121 = vmatprep.subr.bf16.mxu0 0
      %2122 = vmatpush2.bf16.msra.mxu0 0
      %2123 = vmatprep.mubr.bf16.mxu0 0
      %2124 = vmatmul.mubr.bf16.gmra.mxu0 %v2068
      %v2125 = vpop.f32.mrf.mxu0
      %v2126 = vadd.f32 %v2041, %v2125
      %v2127 = vpop.f32.mrf.mxu0
      %v2128 = vpop.f32.mrf.mxu0
      %v2129 = vadd.f32 %v2041, %v2128
      %v2130 = vpop.f32.mrf.mxu0
      %2131 = vmatprep.mubr.bf16.mxu0 0
      %2132 = vmatmul.mubr.bf16.gmra.mxu0 %v2071
      %v2133 = vpop.f32.mrf.mxu0
      %v2134 = vadd.f32 %v2041, %v2133
      %v2135 = vpop.f32.mrf.mxu0
      %v2136 = vpop.f32.mrf.mxu0
      %v2137 = vadd.f32 %v2041, %v2136
      %v2138 = vpop.f32.mrf.mxu0
      %2139 = vmatprep.mubr.bf16.mxu0 0
      %2140 = vmatmul.mubr.bf16.gmra.mxu0 %v2074
      %v2141 = vpop.f32.mrf.mxu0
      %v2142 = vadd.f32 %v2041, %v2141
      %v2143 = vpop.f32.mrf.mxu0
      %v2144 = vpop.f32.mrf.mxu0
      %v2145 = vadd.f32 %v2041, %v2144
      %v2146 = vpop.f32.mrf.mxu0
      %2147 = vmatprep.mubr.bf16.mxu0 0
      %2148 = vmatmul.mubr.bf16.gmra.mxu0 %v2077
      %v2149 = vpop.f32.mrf.mxu0
      %v2150 = vadd.f32 %v2041, %v2149
      %v2151 = vpop.f32.mrf.mxu0
      %v2152 = vpop.f32.mrf.mxu0
      %v2153 = vadd.f32 %v2041, %v2152
      %v2154 = vpop.f32.mrf.mxu0
      %2155 = vmatprep.mubr.bf16.mxu0 0
      %2156 = vmatmul.mubr.bf16.gmra.mxu0 %v2080
      %v2157 = vpop.f32.mrf.mxu0
      %v2158 = vadd.f32 %v2041, %v2157
      %v2159 = vpop.f32.mrf.mxu0
      %v2160 = vpop.f32.mrf.mxu0
      %v2161 = vadd.f32 %v2041, %v2160
      %v2162 = vpop.f32.mrf.mxu0
      %2163 = vmatprep.mubr.bf16.mxu0 0
      %2164 = vmatmul.mubr.bf16.gmra.mxu0 %v2083
      %v2165 = vpop.f32.mrf.mxu0
      %v2166 = vadd.f32 %v2041, %v2165
      %v2167 = vpop.f32.mrf.mxu0
      %v2168 = vpop.f32.mrf.mxu0
      %v2169 = vadd.f32 %v2041, %v2168
      %v2170 = vpop.f32.mrf.mxu0
      %2171 = vmatprep.mubr.bf16.mxu0 0
      %2172 = vmatmul.mubr.bf16.gmra.mxu0 %v2086
      %v2173 = vpop.f32.mrf.mxu0
      %v2174 = vadd.f32 %v2041, %v2173
      %v2175 = vpop.f32.mrf.mxu0
      %v2176 = vpop.f32.mrf.mxu0
      %v2177 = vadd.f32 %v2041, %v2176
      %v2178 = vpop.f32.mrf.mxu0
      %2179 = vmatprep.mubr.bf16.mxu0 0
      %2180 = vmatmul.mubr.bf16.gmra.mxu0 %v2089
      %v2181 = vpop.f32.mrf.mxu0
      %v2182 = vadd.f32 %v2041, %v2181
      %v2183 = vpop.f32.mrf.mxu0
      %v2184 = vpop.f32.mrf.mxu0
      %v2185 = vadd.f32 %v2041, %v2184
      %v2186 = vpop.f32.mrf.mxu0
      %2187 = vdwg.mxu0
      %v2188 = vadd.f32 %v1007, %v2126
      %v2189 = vadd.f32 %v1008, %v2129
      %v2190 = vadd.f32 %v1009, %v2134
      %v2191 = vadd.f32 %v1010, %v2137
      %v2192 = vadd.f32 %v1011, %v2142
      %v2193 = vadd.f32 %v1012, %v2145
      %v2194 = vadd.f32 %v1013, %v2150
      %v2195 = vadd.f32 %v1014, %v2153
      %v2196 = vadd.f32 %v1015, %v2158
      %v2197 = vadd.f32 %v1016, %v2161
      %v2198 = vadd.f32 %v1017, %v2166
      %v2199 = vadd.f32 %v1018, %v2169
      %v2200 = vadd.f32 %v1019, %v2174
      %v2201 = vadd.f32 %v1020, %v2177
      %v2202 = vadd.f32 %v1021, %v2182
      %v2203 = vadd.f32 %v1022, %v2185
      %v2204 = vld [vmem:[%s12] sm:$0x1]
      %v2205 = vld [vmem:[%s13] sm:$0x1]
      %v2206 = vsel %vm769, %v2188, 0.0
      %2207 = vadd.xlane.f32.xlu0 %v2206
      %v2208 = vpop.xlane.xlu0 %2207
      %v2209 = vsel %vm769, %v2189, 0.0
      %2210 = vadd.xlane.f32.xlu0 %v2209
      %v2211 = vpop.xlane.xlu0 %2210
      %v2212 = vsel %vm769, %v2190, 0.0
      %2213 = vadd.xlane.f32.xlu0 %v2212
      %v2214 = vpop.xlane.xlu0 %2213
      %v2215 = vsel %vm769, %v2191, 0.0
      %2216 = vadd.xlane.f32.xlu0 %v2215
      %v2217 = vpop.xlane.xlu0 %2216
      %v2218 = vsel %vm769, %v2192, 0.0
      %2219 = vadd.xlane.f32.xlu0 %v2218
      %v2220 = vpop.xlane.xlu0 %2219
      %v2221 = vsel %vm769, %v2193, 0.0
      %2222 = vadd.xlane.f32.xlu0 %v2221
      %v2223 = vpop.xlane.xlu0 %2222
      %v2224 = vsel %vm769, %v2194, 0.0
      %2225 = vadd.xlane.f32.xlu0 %v2224
      %v2226 = vpop.xlane.xlu0 %2225
      %v2227 = vsel %vm769, %v2195, 0.0
      %2228 = vadd.xlane.f32.xlu0 %v2227
      %v2229 = vpop.xlane.xlu0 %2228
      %v2230 = vsel %vm769, %v2196, 0.0
      %2231 = vadd.xlane.f32.xlu0 %v2230
      %v2232 = vpop.xlane.xlu0 %2231
      %v2233 = vsel %vm769, %v2197, 0.0
      %2234 = vadd.xlane.f32.xlu0 %v2233
      %v2235 = vpop.xlane.xlu0 %2234
      %v2236 = vsel %vm769, %v2198, 0.0
      %2237 = vadd.xlane.f32.xlu0 %v2236
      %v2238 = vpop.xlane.xlu0 %2237
      %v2239 = vsel %vm769, %v2199, 0.0
      %2240 = vadd.xlane.f32.xlu0 %v2239
      %v2241 = vpop.xlane.xlu0 %2240
      %v2242 = vsel %vm769, %v2200, 0.0
      %2243 = vadd.xlane.f32.xlu0 %v2242
      %v2244 = vpop.xlane.xlu0 %2243
      %v2245 = vsel %vm769, %v2201, 0.0
      %2246 = vadd.xlane.f32.xlu0 %v2245
      %v2247 = vpop.xlane.xlu0 %2246
      %v2248 = vsel %vm769, %v2202, 0.0
      %2249 = vadd.xlane.f32.xlu0 %v2248
      %v2250 = vpop.xlane.xlu0 %2249
      %v2251 = vsel %vm769, %v2203, 0.0
      %2252 = vadd.xlane.f32.xlu0 %v2251
      %v2253 = vpop.xlane.xlu0 %2252
      %v2254 = vmul.f32 %v2208, %v818
      %v2255 = vmul.f32 %v2211, %v818
      %v2256 = vmul.f32 %v2214, %v818
      %v2257 = vmul.f32 %v2217, %v818
      %v2258 = vmul.f32 %v2220, %v818
      %v2259 = vmul.f32 %v2223, %v818
      %v2260 = vmul.f32 %v2226, %v818
      %v2261 = vmul.f32 %v2229, %v818
      %v2262 = vmul.f32 %v2232, %v818
      %v2263 = vmul.f32 %v2235, %v818
      %v2264 = vmul.f32 %v2238, %v818
      %v2265 = vmul.f32 %v2241, %v818
      %v2266 = vmul.f32 %v2244, %v818
      %v2267 = vmul.f32 %v2247, %v818
      %v2268 = vmul.f32 %v2250, %v818
      %v2269 = vmul.f32 %v2253, %v818
      %v2270 = vsub.f32 %v2188, %v2254
      %v2271 = vsub.f32 %v2189, %v2255
      %v2272 = vsub.f32 %v2190, %v2256
      %v2273 = vsub.f32 %v2191, %v2257
      %v2274 = vsub.f32 %v2192, %v2258
      %v2275 = vsub.f32 %v2193, %v2259
      %v2276 = vsub.f32 %v2194, %v2260
      %v2277 = vsub.f32 %v2195, %v2261
      %v2278 = vsub.f32 %v2196, %v2262
      %v2279 = vsub.f32 %v2197, %v2263
      %v2280 = vsub.f32 %v2198, %v2264
      %v2281 = vsub.f32 %v2199, %v2265
      %v2282 = vsub.f32 %v2200, %v2266
      %v2283 = vsub.f32 %v2201, %v2267
      %v2284 = vsub.f32 %v2202, %v2268
      %v2285 = vsub.f32 %v2203, %v2269
      %v2286 = vmul.f32 %v2270, %v2270
      %v2287 = vmul.f32 %v2271, %v2271
      %v2288 = vmul.f32 %v2272, %v2272
      %v2289 = vmul.f32 %v2273, %v2273
      %v2290 = vmul.f32 %v2274, %v2274
      %v2291 = vmul.f32 %v2275, %v2275
      %v2292 = vmul.f32 %v2276, %v2276
      %v2293 = vmul.f32 %v2277, %v2277
      %v2294 = vmul.f32 %v2278, %v2278
      %v2295 = vmul.f32 %v2279, %v2279
      %v2296 = vmul.f32 %v2280, %v2280
      %v2297 = vmul.f32 %v2281, %v2281
      %v2298 = vmul.f32 %v2282, %v2282
      %v2299 = vmul.f32 %v2283, %v2283
      %v2300 = vmul.f32 %v2284, %v2284
      %v2301 = vmul.f32 %v2285, %v2285
      %v2302 = vsel %vm769, %v2286, 0.0
      %2303 = vadd.xlane.f32.xlu0 %v2302
      %v2304 = vpop.xlane.xlu0 %2303
      %v2305 = vsel %vm769, %v2287, 0.0
      %2306 = vadd.xlane.f32.xlu0 %v2305
      %v2307 = vpop.xlane.xlu0 %2306
      %v2308 = vsel %vm769, %v2288, 0.0
      %2309 = vadd.xlane.f32.xlu0 %v2308
      %v2310 = vpop.xlane.xlu0 %2309
      %v2311 = vsel %vm769, %v2289, 0.0
      %2312 = vadd.xlane.f32.xlu0 %v2311
      %v2313 = vpop.xlane.xlu0 %2312
      %v2314 = vsel %vm769, %v2290, 0.0
      %2315 = vadd.xlane.f32.xlu0 %v2314
      %v2316 = vpop.xlane.xlu0 %2315
      %v2317 = vsel %vm769, %v2291, 0.0
      %2318 = vadd.xlane.f32.xlu0 %v2317
      %v2319 = vpop.xlane.xlu0 %2318
      %v2320 = vsel %vm769, %v2292, 0.0
      %2321 = vadd.xlane.f32.xlu0 %v2320
      %v2322 = vpop.xlane.xlu0 %2321
      %v2323 = vsel %vm769, %v2293, 0.0
      %2324 = vadd.xlane.f32.xlu0 %v2323
      %v2325 = vpop.xlane.xlu0 %2324
      %v2326 = vsel %vm769, %v2294, 0.0
      %2327 = vadd.xlane.f32.xlu0 %v2326
      %v2328 = vpop.xlane.xlu0 %2327
      %v2329 = vsel %vm769, %v2295, 0.0
      %2330 = vadd.xlane.f32.xlu0 %v2329
      %v2331 = vpop.xlane.xlu0 %2330
      %v2332 = vsel %vm769, %v2296, 0.0
      %2333 = vadd.xlane.f32.xlu0 %v2332
      %v2334 = vpop.xlane.xlu0 %2333
      %v2335 = vsel %vm769, %v2297, 0.0
      %2336 = vadd.xlane.f32.xlu0 %v2335
      %v2337 = vpop.xlane.xlu0 %2336
      %v2338 = vsel %vm769, %v2298, 0.0
      %2339 = vadd.xlane.f32.xlu0 %v2338
      %v2340 = vpop.xlane.xlu0 %2339
      %v2341 = vsel %vm769, %v2299, 0.0
      %2342 = vadd.xlane.f32.xlu0 %v2341
      %v2343 = vpop.xlane.xlu0 %2342
      %v2344 = vsel %vm769, %v2300, 0.0
      %2345 = vadd.xlane.f32.xlu0 %v2344
      %v2346 = vpop.xlane.xlu0 %2345
      %v2347 = vsel %vm769, %v2301, 0.0
      %2348 = vadd.xlane.f32.xlu0 %v2347
      %v2349 = vpop.xlane.xlu0 %2348
      %v2350 = vmul.f32 %v2304, %v818
      %v2351 = vmul.f32 %v2307, %v818
      %v2352 = vmul.f32 %v2310, %v818
      %v2353 = vmul.f32 %v2313, %v818
      %v2354 = vmul.f32 %v2316, %v818
      %v2355 = vmul.f32 %v2319, %v818
      %v2356 = vmul.f32 %v2322, %v818
      %v2357 = vmul.f32 %v2325, %v818
      %v2358 = vmul.f32 %v2328, %v818
      %v2359 = vmul.f32 %v2331, %v818
      %v2360 = vmul.f32 %v2334, %v818
      %v2361 = vmul.f32 %v2337, %v818
      %v2362 = vmul.f32 %v2340, %v818
      %v2363 = vmul.f32 %v2343, %v818
      %v2364 = vmul.f32 %v2346, %v818
      %v2365 = vmul.f32 %v2349, %v818
      %v2366 = vadd.f32 %v2350, 1e-05
      %v2367 = vadd.f32 %v2351, 1e-05
      %v2368 = vadd.f32 %v2352, 1e-05
      %v2369 = vadd.f32 %v2353, 1e-05
      %v2370 = vadd.f32 %v2354, 1e-05
      %v2371 = vadd.f32 %v2355, 1e-05
      %v2372 = vadd.f32 %v2356, 1e-05
      %v2373 = vadd.f32 %v2357, 1e-05
      %v2374 = vadd.f32 %v2358, 1e-05
      %v2375 = vadd.f32 %v2359, 1e-05
      %v2376 = vadd.f32 %v2360, 1e-05
      %v2377 = vadd.f32 %v2361, 1e-05
      %v2378 = vadd.f32 %v2362, 1e-05
      %v2379 = vadd.f32 %v2363, 1e-05
      %v2380 = vadd.f32 %v2364, 1e-05
      %v2381 = vadd.f32 %v2365, 1e-05
      %v2382 = vrsqrt.pop %v2366
      %v2383 = vrsqrt.pop %v2367
      %v2384 = vrsqrt.pop %v2368
      %v2385 = vrsqrt.pop %v2369
      %v2386 = vrsqrt.pop %v2370
      %v2387 = vrsqrt.pop %v2371
      %v2388 = vrsqrt.pop %v2372
      %v2389 = vrsqrt.pop %v2373
      %v2390 = vrsqrt.pop %v2374
      %v2391 = vrsqrt.pop %v2375
      %v2392 = vrsqrt.pop %v2376
      %v2393 = vrsqrt.pop %v2377
      %v2394 = vrsqrt.pop %v2378
      %v2395 = vrsqrt.pop %v2379
      %v2396 = vrsqrt.pop %v2380
      %v2397 = vrsqrt.pop %v2381
      %v2398 = vmul.f32 %v2270, %v2382
      %v2399 = vmul.f32 %v2271, %v2383
      %v2400 = vmul.f32 %v2272, %v2384
      %v2401 = vmul.f32 %v2273, %v2385
      %v2402 = vmul.f32 %v2274, %v2386
      %v2403 = vmul.f32 %v2275, %v2387
      %v2404 = vmul.f32 %v2276, %v2388
      %v2405 = vmul.f32 %v2277, %v2389
      %v2406 = vmul.f32 %v2278, %v2390
      %v2407 = vmul.f32 %v2279, %v2391
      %v2408 = vmul.f32 %v2280, %v2392
      %v2409 = vmul.f32 %v2281, %v2393
      %v2410 = vmul.f32 %v2282, %v2394
      %v2411 = vmul.f32 %v2283, %v2395
      %v2412 = vmul.f32 %v2284, %v2396
      %v2413 = vmul.f32 %v2285, %v2397
      %v2415 = vlaneseq
      %v2416 = vshrl.u32 %v2415, 7
      %v2417 = vsub.s32 0, %v2416
      %v2418 = vrot.slane %v2204, %v2417
      %v2420 = vmul.f32 %v2398, %v2418
      %v2421 = vmul.f32 %v2399, %v2418
      %v2422 = vmul.f32 %v2400, %v2418
      %v2423 = vmul.f32 %v2401, %v2418
      %v2424 = vmul.f32 %v2402, %v2418
      %v2425 = vmul.f32 %v2403, %v2418
      %v2426 = vmul.f32 %v2404, %v2418
      %v2427 = vmul.f32 %v2405, %v2418
      %v2428 = vmul.f32 %v2406, %v2418
      %v2429 = vmul.f32 %v2407, %v2418
      %v2430 = vmul.f32 %v2408, %v2418
      %v2431 = vmul.f32 %v2409, %v2418
      %v2432 = vmul.f32 %v2410, %v2418
      %v2433 = vmul.f32 %v2411, %v2418
      %v2434 = vmul.f32 %v2412, %v2418
      %v2435 = vmul.f32 %v2413, %v2418
      %v2437 = vlaneseq
      %v2438 = vshrl.u32 %v2437, 7
      %v2439 = vsub.s32 0, %v2438
      %v2440 = vrot.slane %v2205, %v2439
      %v2442 = vadd.f32 %v2420, %v2440
      %v2443 = vadd.f32 %v2421, %v2440
      %v2444 = vadd.f32 %v2422, %v2440
      %v2445 = vadd.f32 %v2423, %v2440
      %v2446 = vadd.f32 %v2424, %v2440
      %v2447 = vadd.f32 %v2425, %v2440
      %v2448 = vadd.f32 %v2426, %v2440
      %v2449 = vadd.f32 %v2427, %v2440
      %v2450 = vadd.f32 %v2428, %v2440
      %v2451 = vadd.f32 %v2429, %v2440
      %v2452 = vadd.f32 %v2430, %v2440
      %v2453 = vadd.f32 %v2431, %v2440
      %v2454 = vadd.f32 %v2432, %v2440
      %v2455 = vadd.f32 %v2433, %v2440
      %v2456 = vadd.f32 %v2434, %v2440
      %v2457 = vadd.f32 %v2435, %v2440
      %v2458 = vpack.c.bf16 %v2443, %v2442
      %v2459 = vpack.c.bf16 %v2445, %v2444
      %v2460 = vpack.c.bf16 %v2447, %v2446
      %v2461 = vpack.c.bf16 %v2449, %v2448
      %v2462 = vpack.c.bf16 %v2451, %v2450
      %v2463 = vpack.c.bf16 %v2453, %v2452
      %v2464 = vpack.c.bf16 %v2455, %v2454
      %v2465 = vpack.c.bf16 %v2457, %v2456
      %v2466 = vld [vmem:[%s14] sm:$0xf]
      %v2467 = vld [vmem:[%s14 + $0x4] sm:$0xf]
      %v2468 = vld [vmem:[%s14 + $0x8] sm:$0xf]
      %v2469 = vld [vmem:[%s14 + $0xc] sm:$0xf]
      %v2470 = vld [vmem:[%s14 + $0x10] sm:$0xf]
      %v2471 = vld [vmem:[%s14 + $0x14] sm:$0xf]
      %v2472 = vld [vmem:[%s14 + $0x18] sm:$0xf]
      %v2473 = vld [vmem:[%s14 + $0x1c] sm:$0xf]
      %v2474 = vld [vmem:[%s15] sm:$0x1]
      %v2476 = vlaneseq
      %v2477 = vshrl.u32 %v2476, 7
      %v2478 = vsub.s32 0, %v2477
      %v2479 = vrot.slane %v2474, %v2478
      %v2489 = vunpack.c.l.b16 %v2466
      %v2490 = vunpack.c.l.b16 %v2467
      %v2491 = vunpack.c.l.b16 %v2468
      %v2492 = vunpack.c.l.b16 %v2469
      %v2493 = vunpack.c.l.b16 %v2470
      %v2494 = vunpack.c.l.b16 %v2471
      %v2495 = vunpack.c.l.b16 %v2472
      %v2496 = vunpack.c.l.b16 %v2473
      %v2497 = vpack.c.b16 %v2490, %v2489
      %v2498 = vpack.c.b16 %v2492, %v2491
      %v2499 = vpack.c.b16 %v2494, %v2493
      %v2500 = vpack.c.b16 %v2496, %v2495
      %v2506 = vsel %vm769, %v2458, 0
      %v2509 = vsel %vm769, %v2459, 0
      %v2512 = vsel %vm769, %v2460, 0
      %v2515 = vsel %vm769, %v2461, 0
      %v2518 = vsel %vm769, %v2462, 0
      %v2521 = vsel %vm769, %v2463, 0
      %v2524 = vsel %vm769, %v2464, 0
      %v2527 = vsel %vm769, %v2465, 0
      %2529 = vmatprep.subr.bf16.mxu0 0
      %2530 = vmatpush1.bf16.msra.mxu0 0
      %2531 = vmatprep.subr.bf16.mxu0 0
      %2532 = vmatpush1.bf16.msra.mxu0 0
      %2533 = vmatprep.subr.bf16.mxu0 0
      %2534 = vmatpush1.bf16.msra.mxu0 0
      %2535 = vmatprep.subr.bf16.mxu0 0
      %2536 = vmatpush1.bf16.msra.mxu0 0
      %2537 = vmatprep.subr.bf16.mxu0 0
      %2538 = vmatpush1.bf16.msra.mxu0 %v2500
      %2539 = vmatprep.subr.bf16.mxu0 0
      %2540 = vmatpush1.bf16.msra.mxu0 %v2499
      %2541 = vmatprep.subr.bf16.mxu0 0
      %2542 = vmatpush1.bf16.msra.mxu0 %v2498
      %2543 = vmatprep.subr.bf16.mxu0 0
      %2544 = vmatpush1.bf16.msra.mxu0 %v2497
      %2545 = vmatprep.subr.bf16.mxu0 0
      %2546 = vmatpush2.bf16.msra.mxu0 0
      %2547 = vmatprep.subr.bf16.mxu0 0
      %2548 = vmatpush2.bf16.msra.mxu0 0
      %2549 = vmatprep.subr.bf16.mxu0 0
      %2550 = vmatpush2.bf16.msra.mxu0 0
      %2551 = vmatprep.subr.bf16.mxu0 0
      %2552 = vmatpush2.bf16.msra.mxu0 0
      %2553 = vmatprep.subr.bf16.mxu0 0
      %2554 = vmatpush2.bf16.msra.mxu0 0
      %2555 = vmatprep.subr.bf16.mxu0 0
      %2556 = vmatpush2.bf16.msra.mxu0 0
      %2557 = vmatprep.subr.bf16.mxu0 0
      %2558 = vmatpush2.bf16.msra.mxu0 0
      %2559 = vmatprep.subr.bf16.mxu0 0
      %2560 = vmatpush2.bf16.msra.mxu0 0
      %2561 = vmatprep.mubr.bf16.mxu0 0
      %2562 = vmatmul.mubr.bf16.gmra.mxu0 %v2506
      %v2563 = vpop.f32.mrf.mxu0
      %v2564 = vadd.f32 %v2479, %v2563
      %v2565 = vpop.f32.mrf.mxu0
      %v2566 = vpop.f32.mrf.mxu0
      %v2567 = vadd.f32 %v2479, %v2566
      %v2568 = vpop.f32.mrf.mxu0
      %2569 = vmatprep.mubr.bf16.mxu0 0
      %2570 = vmatmul.mubr.bf16.gmra.mxu0 %v2509
      %v2571 = vpop.f32.mrf.mxu0
      %v2572 = vadd.f32 %v2479, %v2571
      %v2573 = vpop.f32.mrf.mxu0
      %v2574 = vpop.f32.mrf.mxu0
      %v2575 = vadd.f32 %v2479, %v2574
      %v2576 = vpop.f32.mrf.mxu0
      %2577 = vmatprep.mubr.bf16.mxu0 0
      %2578 = vmatmul.mubr.bf16.gmra.mxu0 %v2512
      %v2579 = vpop.f32.mrf.mxu0
      %v2580 = vadd.f32 %v2479, %v2579
      %v2581 = vpop.f32.mrf.mxu0
      %v2582 = vpop.f32.mrf.mxu0
      %v2583 = vadd.f32 %v2479, %v2582
      %v2584 = vpop.f32.mrf.mxu0
      %2585 = vmatprep.mubr.bf16.mxu0 0
      %2586 = vmatmul.mubr.bf16.gmra.mxu0 %v2515
      %v2587 = vpop.f32.mrf.mxu0
      %v2588 = vadd.f32 %v2479, %v2587
      %v2589 = vpop.f32.mrf.mxu0
      %v2590 = vpop.f32.mrf.mxu0
      %v2591 = vadd.f32 %v2479, %v2590
      %v2592 = vpop.f32.mrf.mxu0
      %2593 = vmatprep.mubr.bf16.mxu0 0
      %2594 = vmatmul.mubr.bf16.gmra.mxu0 %v2518
      %v2595 = vpop.f32.mrf.mxu0
      %v2596 = vadd.f32 %v2479, %v2595
      %v2597 = vpop.f32.mrf.mxu0
      %v2598 = vpop.f32.mrf.mxu0
      %v2599 = vadd.f32 %v2479, %v2598
      %v2600 = vpop.f32.mrf.mxu0
      %2601 = vmatprep.mubr.bf16.mxu0 0
      %2602 = vmatmul.mubr.bf16.gmra.mxu0 %v2521
      %v2603 = vpop.f32.mrf.mxu0
      %v2604 = vadd.f32 %v2479, %v2603
      %v2605 = vpop.f32.mrf.mxu0
      %v2606 = vpop.f32.mrf.mxu0
      %v2607 = vadd.f32 %v2479, %v2606
      %v2608 = vpop.f32.mrf.mxu0
      %2609 = vmatprep.mubr.bf16.mxu0 0
      %2610 = vmatmul.mubr.bf16.gmra.mxu0 %v2524
      %v2611 = vpop.f32.mrf.mxu0
      %v2612 = vadd.f32 %v2479, %v2611
      %v2613 = vpop.f32.mrf.mxu0
      %v2614 = vpop.f32.mrf.mxu0
      %v2615 = vadd.f32 %v2479, %v2614
      %v2616 = vpop.f32.mrf.mxu0
      %2617 = vmatprep.mubr.bf16.mxu0 0
      %2618 = vmatmul.mubr.bf16.gmra.mxu0 %v2527
      %v2619 = vpop.f32.mrf.mxu0
      %v2620 = vadd.f32 %v2479, %v2619
      %v2621 = vpop.f32.mrf.mxu0
      %v2622 = vpop.f32.mrf.mxu0
      %v2623 = vadd.f32 %v2479, %v2622
      %v2624 = vpop.f32.mrf.mxu0
      %2625 = vdwg.mxu0
      %v2626 = vmul.f32 %v2564, 0.5
      %v2627 = vmul.f32 %v2567, 0.5
      %v2628 = vmul.f32 %v2572, 0.5
      %v2629 = vmul.f32 %v2575, 0.5
      %v2630 = vmul.f32 %v2580, 0.5
      %v2631 = vmul.f32 %v2583, 0.5
      %v2632 = vmul.f32 %v2588, 0.5
      %v2633 = vmul.f32 %v2591, 0.5
      %v2634 = vmul.f32 %v2596, 0.5
      %v2635 = vmul.f32 %v2599, 0.5
      %v2636 = vmul.f32 %v2604, 0.5
      %v2637 = vmul.f32 %v2607, 0.5
      %v2638 = vmul.f32 %v2612, 0.5
      %v2639 = vmul.f32 %v2615, 0.5
      %v2640 = vmul.f32 %v2620, 0.5
      %v2641 = vmul.f32 %v2623, 0.5
      %v2642 = vmul.f32 %v2564, 0.044715
      %v2643 = vmul.f32 %v2567, 0.044715
      %v2644 = vmul.f32 %v2572, 0.044715
      %v2645 = vmul.f32 %v2575, 0.044715
      %v2646 = vmul.f32 %v2580, 0.044715
      %v2647 = vmul.f32 %v2583, 0.044715
      %v2648 = vmul.f32 %v2588, 0.044715
      %v2649 = vmul.f32 %v2591, 0.044715
      %v2650 = vmul.f32 %v2596, 0.044715
      %v2651 = vmul.f32 %v2599, 0.044715
      %v2652 = vmul.f32 %v2604, 0.044715
      %v2653 = vmul.f32 %v2607, 0.044715
      %v2654 = vmul.f32 %v2612, 0.044715
      %v2655 = vmul.f32 %v2615, 0.044715
      %v2656 = vmul.f32 %v2620, 0.044715
      %v2657 = vmul.f32 %v2623, 0.044715
      %v2658 = vmul.f32 %v2642, %v2564
      %v2659 = vmul.f32 %v2643, %v2567
      %v2660 = vmul.f32 %v2644, %v2572
      %v2661 = vmul.f32 %v2645, %v2575
      %v2662 = vmul.f32 %v2646, %v2580
      %v2663 = vmul.f32 %v2647, %v2583
      %v2664 = vmul.f32 %v2648, %v2588
      %v2665 = vmul.f32 %v2649, %v2591
      %v2666 = vmul.f32 %v2650, %v2596
      %v2667 = vmul.f32 %v2651, %v2599
      %v2668 = vmul.f32 %v2652, %v2604
      %v2669 = vmul.f32 %v2653, %v2607
      %v2670 = vmul.f32 %v2654, %v2612
      %v2671 = vmul.f32 %v2655, %v2615
      %v2672 = vmul.f32 %v2656, %v2620
      %v2673 = vmul.f32 %v2657, %v2623
      %v2674 = vmul.f32 %v2658, %v2564
      %v2675 = vmul.f32 %v2659, %v2567
      %v2676 = vmul.f32 %v2660, %v2572
      %v2677 = vmul.f32 %v2661, %v2575
      %v2678 = vmul.f32 %v2662, %v2580
      %v2679 = vmul.f32 %v2663, %v2583
      %v2680 = vmul.f32 %v2664, %v2588
      %v2681 = vmul.f32 %v2665, %v2591
      %v2682 = vmul.f32 %v2666, %v2596
      %v2683 = vmul.f32 %v2667, %v2599
      %v2684 = vmul.f32 %v2668, %v2604
      %v2685 = vmul.f32 %v2669, %v2607
      %v2686 = vmul.f32 %v2670, %v2612
      %v2687 = vmul.f32 %v2671, %v2615
      %v2688 = vmul.f32 %v2672, %v2620
      %v2689 = vmul.f32 %v2673, %v2623
      %v2690 = vadd.f32 %v2564, %v2674
      %v2691 = vadd.f32 %v2567, %v2675
      %v2692 = vadd.f32 %v2572, %v2676
      %v2693 = vadd.f32 %v2575, %v2677
      %v2694 = vadd.f32 %v2580, %v2678
      %v2695 = vadd.f32 %v2583, %v2679
      %v2696 = vadd.f32 %v2588, %v2680
      %v2697 = vadd.f32 %v2591, %v2681
      %v2698 = vadd.f32 %v2596, %v2682
      %v2699 = vadd.f32 %v2599, %v2683
      %v2700 = vadd.f32 %v2604, %v2684
      %v2701 = vadd.f32 %v2607, %v2685
      %v2702 = vadd.f32 %v2612, %v2686
      %v2703 = vadd.f32 %v2615, %v2687
      %v2704 = vadd.f32 %v2620, %v2688
      %v2705 = vadd.f32 %v2623, %v2689
      %v2706 = vmul.f32 %v2690, 0.7978846
      %v2707 = vmul.f32 %v2691, 0.7978846
      %v2708 = vmul.f32 %v2692, 0.7978846
      %v2709 = vmul.f32 %v2693, 0.7978846
      %v2710 = vmul.f32 %v2694, 0.7978846
      %v2711 = vmul.f32 %v2695, 0.7978846
      %v2712 = vmul.f32 %v2696, 0.7978846
      %v2713 = vmul.f32 %v2697, 0.7978846
      %v2714 = vmul.f32 %v2698, 0.7978846
      %v2715 = vmul.f32 %v2699, 0.7978846
      %v2716 = vmul.f32 %v2700, 0.7978846
      %v2717 = vmul.f32 %v2701, 0.7978846
      %v2718 = vmul.f32 %v2702, 0.7978846
      %v2719 = vmul.f32 %v2703, 0.7978846
      %v2720 = vmul.f32 %v2704, 0.7978846
      %v2721 = vmul.f32 %v2705, 0.7978846
      %v2722 = vtanh.pop %v2706
      %v2723 = vtanh.pop %v2707
      %v2724 = vtanh.pop %v2708
      %v2725 = vtanh.pop %v2709
      %v2726 = vtanh.pop %v2710
      %v2727 = vtanh.pop %v2711
      %v2728 = vtanh.pop %v2712
      %v2729 = vtanh.pop %v2713
      %v2730 = vtanh.pop %v2714
      %v2731 = vtanh.pop %v2715
      %v2732 = vtanh.pop %v2716
      %v2733 = vtanh.pop %v2717
      %v2734 = vtanh.pop %v2718
      %v2735 = vtanh.pop %v2719
      %v2736 = vtanh.pop %v2720
      %v2737 = vtanh.pop %v2721
      %v2738 = vadd.f32 %v2722, 1.0
      %v2739 = vadd.f32 %v2723, 1.0
      %v2740 = vadd.f32 %v2724, 1.0
      %v2741 = vadd.f32 %v2725, 1.0
      %v2742 = vadd.f32 %v2726, 1.0
      %v2743 = vadd.f32 %v2727, 1.0
      %v2744 = vadd.f32 %v2728, 1.0
      %v2745 = vadd.f32 %v2729, 1.0
      %v2746 = vadd.f32 %v2730, 1.0
      %v2747 = vadd.f32 %v2731, 1.0
      %v2748 = vadd.f32 %v2732, 1.0
      %v2749 = vadd.f32 %v2733, 1.0
      %v2750 = vadd.f32 %v2734, 1.0
      %v2751 = vadd.f32 %v2735, 1.0
      %v2752 = vadd.f32 %v2736, 1.0
      %v2753 = vadd.f32 %v2737, 1.0
      %v2754 = vmul.f32 %v2626, %v2738
      %v2755 = vmul.f32 %v2627, %v2739
      %v2756 = vmul.f32 %v2628, %v2740
      %v2757 = vmul.f32 %v2629, %v2741
      %v2758 = vmul.f32 %v2630, %v2742
      %v2759 = vmul.f32 %v2631, %v2743
      %v2760 = vmul.f32 %v2632, %v2744
      %v2761 = vmul.f32 %v2633, %v2745
      %v2762 = vmul.f32 %v2634, %v2746
      %v2763 = vmul.f32 %v2635, %v2747
      %v2764 = vmul.f32 %v2636, %v2748
      %v2765 = vmul.f32 %v2637, %v2749
      %v2766 = vmul.f32 %v2638, %v2750
      %v2767 = vmul.f32 %v2639, %v2751
      %v2768 = vmul.f32 %v2640, %v2752
      %v2769 = vmul.f32 %v2641, %v2753
      %v2770 = vpack.c.bf16 %v2755, %v2754
      %v2771 = vpack.c.bf16 %v2757, %v2756
      %v2772 = vpack.c.bf16 %v2759, %v2758
      %v2773 = vpack.c.bf16 %v2761, %v2760
      %v2774 = vpack.c.bf16 %v2763, %v2762
      %v2775 = vpack.c.bf16 %v2765, %v2764
      %v2776 = vpack.c.bf16 %v2767, %v2766
      %v2777 = vpack.c.bf16 %v2769, %v2768
      %v2778 = vld [vmem:[%s16] sm:$0xf]
      %v2779 = vld [vmem:[%s16 + $0x4] sm:$0xf]
      %v2780 = vld [vmem:[%s16 + $0x8] sm:$0xf]
      %v2781 = vld [vmem:[%s16 + $0xc] sm:$0xf]
      %v2782 = vld [vmem:[%s16 + $0x10] sm:$0xf]
      %v2783 = vld [vmem:[%s16 + $0x14] sm:$0xf]
      %v2784 = vld [vmem:[%s16 + $0x18] sm:$0xf]
      %v2785 = vld [vmem:[%s16 + $0x1c] sm:$0xf]
      %v2786 = vld [vmem:[%s16 + $0x20] sm:$0xf]
      %v2787 = vld [vmem:[%s16 + $0x24] sm:$0xf]
      %v2788 = vld [vmem:[%s16 + $0x28] sm:$0xf]
      %v2789 = vld [vmem:[%s16 + $0x2c] sm:$0xf]
      %v2790 = vld [vmem:[%s16 + $0x30] sm:$0xf]
      %v2791 = vld [vmem:[%s16 + $0x34] sm:$0xf]
      %v2792 = vld [vmem:[%s16 + $0x38] sm:$0xf]
      %v2793 = vld [vmem:[%s16 + $0x3c] sm:$0xf]
      %v2794 = vld [vmem:[%s17] sm:$0x1]
      %v2796 = vlaneseq
      %v2797 = vshrl.u32 %v2796, 7
      %v2798 = vsub.s32 0, %v2797
      %v2799 = vrot.slane %v2794, %v2798
      %v2817 = vunpack.c.l.b16 %v2778
      %v2818 = vunpack.c.l.b16 %v2779
      %v2819 = vunpack.c.l.b16 %v2780
      %v2820 = vunpack.c.l.b16 %v2781
      %v2821 = vunpack.c.l.b16 %v2782
      %v2822 = vunpack.c.l.b16 %v2783
      %v2823 = vunpack.c.l.b16 %v2784
      %v2824 = vunpack.c.l.b16 %v2785
      %v2825 = vunpack.c.l.b16 %v2786
      %v2826 = vunpack.c.l.b16 %v2787
      %v2827 = vunpack.c.l.b16 %v2788
      %v2828 = vunpack.c.l.b16 %v2789
      %v2829 = vunpack.c.l.b16 %v2790
      %v2830 = vunpack.c.l.b16 %v2791
      %v2831 = vunpack.c.l.b16 %v2792
      %v2832 = vunpack.c.l.b16 %v2793
      %v2833 = vpack.c.b16 %v2818, %v2817
      %v2834 = vpack.c.b16 %v2820, %v2819
      %v2835 = vpack.c.b16 %v2822, %v2821
      %v2836 = vpack.c.b16 %v2824, %v2823
      %v2837 = vpack.c.b16 %v2826, %v2825
      %v2838 = vpack.c.b16 %v2828, %v2827
      %v2839 = vpack.c.b16 %v2830, %v2829
      %v2840 = vpack.c.b16 %v2832, %v2831
      %2849 = vmatprep.subr.bf16.mxu0 0
      %2850 = vmatpush1.bf16.msra.mxu0 %v2840
      %2851 = vmatprep.subr.bf16.mxu0 0
      %2852 = vmatpush1.bf16.msra.mxu0 %v2839
      %2853 = vmatprep.subr.bf16.mxu0 0
      %2854 = vmatpush1.bf16.msra.mxu0 %v2838
      %2855 = vmatprep.subr.bf16.mxu0 0
      %2856 = vmatpush1.bf16.msra.mxu0 %v2837
      %2857 = vmatprep.subr.bf16.mxu0 0
      %2858 = vmatpush1.bf16.msra.mxu0 %v2836
      %2859 = vmatprep.subr.bf16.mxu0 0
      %2860 = vmatpush1.bf16.msra.mxu0 %v2835
      %2861 = vmatprep.subr.bf16.mxu0 0
      %2862 = vmatpush1.bf16.msra.mxu0 %v2834
      %2863 = vmatprep.subr.bf16.mxu0 0
      %2864 = vmatpush1.bf16.msra.mxu0 %v2833
      %2865 = vmatprep.subr.bf16.mxu0 0
      %2866 = vmatpush2.bf16.msra.mxu0 0
      %2867 = vmatprep.subr.bf16.mxu0 0
      %2868 = vmatpush2.bf16.msra.mxu0 0
      %2869 = vmatprep.subr.bf16.mxu0 0
      %2870 = vmatpush2.bf16.msra.mxu0 0
      %2871 = vmatprep.subr.bf16.mxu0 0
      %2872 = vmatpush2.bf16.msra.mxu0 0
      %2873 = vmatprep.subr.bf16.mxu0 0
      %2874 = vmatpush2.bf16.msra.mxu0 0
      %2875 = vmatprep.subr.bf16.mxu0 0
      %2876 = vmatpush2.bf16.msra.mxu0 0
      %2877 = vmatprep.subr.bf16.mxu0 0
      %2878 = vmatpush2.bf16.msra.mxu0 0
      %2879 = vmatprep.subr.bf16.mxu0 0
      %2880 = vmatpush2.bf16.msra.mxu0 0
      %2881 = vmatprep.mubr.bf16.mxu0 0
      %2882 = vmatmul.mubr.bf16.gmra.mxu0 %v2770
      %v2883 = vpop.f32.mrf.mxu0
      %v2884 = vadd.f32 %v2799, %v2883
      %v2885 = vpop.f32.mrf.mxu0
      %v2886 = vpop.f32.mrf.mxu0
      %v2887 = vadd.f32 %v2799, %v2886
      %v2888 = vpop.f32.mrf.mxu0
      %2889 = vmatprep.mubr.bf16.mxu0 0
      %2890 = vmatmul.mubr.bf16.gmra.mxu0 %v2771
      %v2891 = vpop.f32.mrf.mxu0
      %v2892 = vadd.f32 %v2799, %v2891
      %v2893 = vpop.f32.mrf.mxu0
      %v2894 = vpop.f32.mrf.mxu0
      %v2895 = vadd.f32 %v2799, %v2894
      %v2896 = vpop.f32.mrf.mxu0
      %2897 = vmatprep.mubr.bf16.mxu0 0
      %2898 = vmatmul.mubr.bf16.gmra.mxu0 %v2772
      %v2899 = vpop.f32.mrf.mxu0
      %v2900 = vadd.f32 %v2799, %v2899
      %v2901 = vpop.f32.mrf.mxu0
      %v2902 = vpop.f32.mrf.mxu0
      %v2903 = vadd.f32 %v2799, %v2902
      %v2904 = vpop.f32.mrf.mxu0
      %2905 = vmatprep.mubr.bf16.mxu0 0
      %2906 = vmatmul.mubr.bf16.gmra.mxu0 %v2773
      %v2907 = vpop.f32.mrf.mxu0
      %v2908 = vadd.f32 %v2799, %v2907
      %v2909 = vpop.f32.mrf.mxu0
      %v2910 = vpop.f32.mrf.mxu0
      %v2911 = vadd.f32 %v2799, %v2910
      %v2912 = vpop.f32.mrf.mxu0
      %2913 = vmatprep.mubr.bf16.mxu0 0
      %2914 = vmatmul.mubr.bf16.gmra.mxu0 %v2774
      %v2915 = vpop.f32.mrf.mxu0
      %v2916 = vadd.f32 %v2799, %v2915
      %v2917 = vpop.f32.mrf.mxu0
      %v2918 = vpop.f32.mrf.mxu0
      %v2919 = vadd.f32 %v2799, %v2918
      %v2920 = vpop.f32.mrf.mxu0
      %2921 = vmatprep.mubr.bf16.mxu0 0
      %2922 = vmatmul.mubr.bf16.gmra.mxu0 %v2775
      %v2923 = vpop.f32.mrf.mxu0
      %v2924 = vadd.f32 %v2799, %v2923
      %v2925 = vpop.f32.mrf.mxu0
      %v2926 = vpop.f32.mrf.mxu0
      %v2927 = vadd.f32 %v2799, %v2926
      %v2928 = vpop.f32.mrf.mxu0
      %2929 = vmatprep.mubr.bf16.mxu0 0
      %2930 = vmatmul.mubr.bf16.gmra.mxu0 %v2776
      %v2931 = vpop.f32.mrf.mxu0
      %v2932 = vadd.f32 %v2799, %v2931
      %v2933 = vpop.f32.mrf.mxu0
      %v2934 = vpop.f32.mrf.mxu0
      %v2935 = vadd.f32 %v2799, %v2934
      %v2936 = vpop.f32.mrf.mxu0
      %2937 = vmatprep.mubr.bf16.mxu0 0
      %2938 = vmatmul.mubr.bf16.gmra.mxu0 %v2777
      %v2939 = vpop.f32.mrf.mxu0
      %v2940 = vadd.f32 %v2799, %v2939
      %v2941 = vpop.f32.mrf.mxu0
      %v2942 = vpop.f32.mrf.mxu0
      %v2943 = vadd.f32 %v2799, %v2942
      %v2944 = vpop.f32.mrf.mxu0
      %2945 = vdwg.mxu0
      %v2946 = vadd.f32 %v2442, %v2884
      %v2947 = vadd.f32 %v2443, %v2887
      %v2948 = vadd.f32 %v2444, %v2892
      %v2949 = vadd.f32 %v2445, %v2895
      %v2950 = vadd.f32 %v2446, %v2900
      %v2951 = vadd.f32 %v2447, %v2903
      %v2952 = vadd.f32 %v2448, %v2908
      %v2953 = vadd.f32 %v2449, %v2911
      %v2954 = vadd.f32 %v2450, %v2916
      %v2955 = vadd.f32 %v2451, %v2919
      %v2956 = vadd.f32 %v2452, %v2924
      %v2957 = vadd.f32 %v2453, %v2927
      %v2958 = vadd.f32 %v2454, %v2932
      %v2959 = vadd.f32 %v2455, %v2935
      %v2960 = vadd.f32 %v2456, %v2940
      %v2961 = vadd.f32 %v2457, %v2943
      %v2962 = vld [vmem:[%s18] sm:$0x1]
      %v2963 = vld [vmem:[%s19] sm:$0x1]
      %v2964 = vsel %vm769, %v2946, 0.0
      %2965 = vadd.xlane.f32.xlu0 %v2964
      %v2966 = vpop.xlane.xlu0 %2965
      %v2967 = vsel %vm769, %v2947, 0.0
      %2968 = vadd.xlane.f32.xlu0 %v2967
      %v2969 = vpop.xlane.xlu0 %2968
      %v2970 = vsel %vm769, %v2948, 0.0
      %2971 = vadd.xlane.f32.xlu0 %v2970
      %v2972 = vpop.xlane.xlu0 %2971
      %v2973 = vsel %vm769, %v2949, 0.0
      %2974 = vadd.xlane.f32.xlu0 %v2973
      %v2975 = vpop.xlane.xlu0 %2974
      %v2976 = vsel %vm769, %v2950, 0.0
      %2977 = vadd.xlane.f32.xlu0 %v2976
      %v2978 = vpop.xlane.xlu0 %2977
      %v2979 = vsel %vm769, %v2951, 0.0
      %2980 = vadd.xlane.f32.xlu0 %v2979
      %v2981 = vpop.xlane.xlu0 %2980
      %v2982 = vsel %vm769, %v2952, 0.0
      %2983 = vadd.xlane.f32.xlu0 %v2982
      %v2984 = vpop.xlane.xlu0 %2983
      %v2985 = vsel %vm769, %v2953, 0.0
      %2986 = vadd.xlane.f32.xlu0 %v2985
      %v2987 = vpop.xlane.xlu0 %2986
      %v2988 = vsel %vm769, %v2954, 0.0
      %2989 = vadd.xlane.f32.xlu0 %v2988
      %v2990 = vpop.xlane.xlu0 %2989
      %v2991 = vsel %vm769, %v2955, 0.0
      %2992 = vadd.xlane.f32.xlu0 %v2991
      %v2993 = vpop.xlane.xlu0 %2992
      %v2994 = vsel %vm769, %v2956, 0.0
      %2995 = vadd.xlane.f32.xlu0 %v2994
      %v2996 = vpop.xlane.xlu0 %2995
      %v2997 = vsel %vm769, %v2957, 0.0
      %2998 = vadd.xlane.f32.xlu0 %v2997
      %v2999 = vpop.xlane.xlu0 %2998
      %v3000 = vsel %vm769, %v2958, 0.0
      %3001 = vadd.xlane.f32.xlu0 %v3000
      %v3002 = vpop.xlane.xlu0 %3001
      %v3003 = vsel %vm769, %v2959, 0.0
      %3004 = vadd.xlane.f32.xlu0 %v3003
      %v3005 = vpop.xlane.xlu0 %3004
      %v3006 = vsel %vm769, %v2960, 0.0
      %3007 = vadd.xlane.f32.xlu0 %v3006
      %v3008 = vpop.xlane.xlu0 %3007
      %v3009 = vsel %vm769, %v2961, 0.0
      %3010 = vadd.xlane.f32.xlu0 %v3009
      %v3011 = vpop.xlane.xlu0 %3010
      %v3012 = vmul.f32 %v2966, %v818
      %v3013 = vmul.f32 %v2969, %v818
      %v3014 = vmul.f32 %v2972, %v818
      %v3015 = vmul.f32 %v2975, %v818
      %v3016 = vmul.f32 %v2978, %v818
      %v3017 = vmul.f32 %v2981, %v818
      %v3018 = vmul.f32 %v2984, %v818
      %v3019 = vmul.f32 %v2987, %v818
      %v3020 = vmul.f32 %v2990, %v818
      %v3021 = vmul.f32 %v2993, %v818
      %v3022 = vmul.f32 %v2996, %v818
      %v3023 = vmul.f32 %v2999, %v818
      %v3024 = vmul.f32 %v3002, %v818
      %v3025 = vmul.f32 %v3005, %v818
      %v3026 = vmul.f32 %v3008, %v818
      %v3027 = vmul.f32 %v3011, %v818
      %v3028 = vsub.f32 %v2946, %v3012
      %v3029 = vsub.f32 %v2947, %v3013
      %v3030 = vsub.f32 %v2948, %v3014
      %v3031 = vsub.f32 %v2949, %v3015
      %v3032 = vsub.f32 %v2950, %v3016
      %v3033 = vsub.f32 %v2951, %v3017
      %v3034 = vsub.f32 %v2952, %v3018
      %v3035 = vsub.f32 %v2953, %v3019
      %v3036 = vsub.f32 %v2954, %v3020
      %v3037 = vsub.f32 %v2955, %v3021
      %v3038 = vsub.f32 %v2956, %v3022
      %v3039 = vsub.f32 %v2957, %v3023
      %v3040 = vsub.f32 %v2958, %v3024
      %v3041 = vsub.f32 %v2959, %v3025
      %v3042 = vsub.f32 %v2960, %v3026
      %v3043 = vsub.f32 %v2961, %v3027
      %v3044 = vmul.f32 %v3028, %v3028
      %v3045 = vmul.f32 %v3029, %v3029
      %v3046 = vmul.f32 %v3030, %v3030
      %v3047 = vmul.f32 %v3031, %v3031
      %v3048 = vmul.f32 %v3032, %v3032
      %v3049 = vmul.f32 %v3033, %v3033
      %v3050 = vmul.f32 %v3034, %v3034
      %v3051 = vmul.f32 %v3035, %v3035
      %v3052 = vmul.f32 %v3036, %v3036
      %v3053 = vmul.f32 %v3037, %v3037
      %v3054 = vmul.f32 %v3038, %v3038
      %v3055 = vmul.f32 %v3039, %v3039
      %v3056 = vmul.f32 %v3040, %v3040
      %v3057 = vmul.f32 %v3041, %v3041
      %v3058 = vmul.f32 %v3042, %v3042
      %v3059 = vmul.f32 %v3043, %v3043
      %v3060 = vsel %vm769, %v3044, 0.0
      %3061 = vadd.xlane.f32.xlu0 %v3060
      %v3062 = vpop.xlane.xlu0 %3061
      %v3063 = vsel %vm769, %v3045, 0.0
      %3064 = vadd.xlane.f32.xlu0 %v3063
      %v3065 = vpop.xlane.xlu0 %3064
      %v3066 = vsel %vm769, %v3046, 0.0
      %3067 = vadd.xlane.f32.xlu0 %v3066
      %v3068 = vpop.xlane.xlu0 %3067
      %v3069 = vsel %vm769, %v3047, 0.0
      %3070 = vadd.xlane.f32.xlu0 %v3069
      %v3071 = vpop.xlane.xlu0 %3070
      %v3072 = vsel %vm769, %v3048, 0.0
      %3073 = vadd.xlane.f32.xlu0 %v3072
      %v3074 = vpop.xlane.xlu0 %3073
      %v3075 = vsel %vm769, %v3049, 0.0
      %3076 = vadd.xlane.f32.xlu0 %v3075
      %v3077 = vpop.xlane.xlu0 %3076
      %v3078 = vsel %vm769, %v3050, 0.0
      %3079 = vadd.xlane.f32.xlu0 %v3078
      %v3080 = vpop.xlane.xlu0 %3079
      %v3081 = vsel %vm769, %v3051, 0.0
      %3082 = vadd.xlane.f32.xlu0 %v3081
      %v3083 = vpop.xlane.xlu0 %3082
      %v3084 = vsel %vm769, %v3052, 0.0
      %3085 = vadd.xlane.f32.xlu0 %v3084
      %v3086 = vpop.xlane.xlu0 %3085
      %v3087 = vsel %vm769, %v3053, 0.0
      %3088 = vadd.xlane.f32.xlu0 %v3087
      %v3089 = vpop.xlane.xlu0 %3088
      %v3090 = vsel %vm769, %v3054, 0.0
      %3091 = vadd.xlane.f32.xlu0 %v3090
      %v3092 = vpop.xlane.xlu0 %3091
      %v3093 = vsel %vm769, %v3055, 0.0
      %3094 = vadd.xlane.f32.xlu0 %v3093
      %v3095 = vpop.xlane.xlu0 %3094
      %v3096 = vsel %vm769, %v3056, 0.0
      %3097 = vadd.xlane.f32.xlu0 %v3096
      %v3098 = vpop.xlane.xlu0 %3097
      %v3099 = vsel %vm769, %v3057, 0.0
      %3100 = vadd.xlane.f32.xlu0 %v3099
      %v3101 = vpop.xlane.xlu0 %3100
      %v3102 = vsel %vm769, %v3058, 0.0
      %3103 = vadd.xlane.f32.xlu0 %v3102
      %v3104 = vpop.xlane.xlu0 %3103
      %v3105 = vsel %vm769, %v3059, 0.0
      %3106 = vadd.xlane.f32.xlu0 %v3105
      %v3107 = vpop.xlane.xlu0 %3106
      %v3108 = vmul.f32 %v3062, %v818
      %v3109 = vmul.f32 %v3065, %v818
      %v3110 = vmul.f32 %v3068, %v818
      %v3111 = vmul.f32 %v3071, %v818
      %v3112 = vmul.f32 %v3074, %v818
      %v3113 = vmul.f32 %v3077, %v818
      %v3114 = vmul.f32 %v3080, %v818
      %v3115 = vmul.f32 %v3083, %v818
      %v3116 = vmul.f32 %v3086, %v818
      %v3117 = vmul.f32 %v3089, %v818
      %v3118 = vmul.f32 %v3092, %v818
      %v3119 = vmul.f32 %v3095, %v818
      %v3120 = vmul.f32 %v3098, %v818
      %v3121 = vmul.f32 %v3101, %v818
      %v3122 = vmul.f32 %v3104, %v818
      %v3123 = vmul.f32 %v3107, %v818
      %v3124 = vadd.f32 %v3108, 1e-05
      %v3125 = vadd.f32 %v3109, 1e-05
      %v3126 = vadd.f32 %v3110, 1e-05
      %v3127 = vadd.f32 %v3111, 1e-05
      %v3128 = vadd.f32 %v3112, 1e-05
      %v3129 = vadd.f32 %v3113, 1e-05
      %v3130 = vadd.f32 %v3114, 1e-05
      %v3131 = vadd.f32 %v3115, 1e-05
      %v3132 = vadd.f32 %v3116, 1e-05
      %v3133 = vadd.f32 %v3117, 1e-05
      %v3134 = vadd.f32 %v3118, 1e-05
      %v3135 = vadd.f32 %v3119, 1e-05
      %v3136 = vadd.f32 %v3120, 1e-05
      %v3137 = vadd.f32 %v3121, 1e-05
      %v3138 = vadd.f32 %v3122, 1e-05
      %v3139 = vadd.f32 %v3123, 1e-05
      %v3140 = vrsqrt.pop %v3124
      %v3141 = vrsqrt.pop %v3125
      %v3142 = vrsqrt.pop %v3126
      %v3143 = vrsqrt.pop %v3127
      %v3144 = vrsqrt.pop %v3128
      %v3145 = vrsqrt.pop %v3129
      %v3146 = vrsqrt.pop %v3130
      %v3147 = vrsqrt.pop %v3131
      %v3148 = vrsqrt.pop %v3132
      %v3149 = vrsqrt.pop %v3133
      %v3150 = vrsqrt.pop %v3134
      %v3151 = vrsqrt.pop %v3135
      %v3152 = vrsqrt.pop %v3136
      %v3153 = vrsqrt.pop %v3137
      %v3154 = vrsqrt.pop %v3138
      %v3155 = vrsqrt.pop %v3139
      %v3156 = vmul.f32 %v3028, %v3140
      %v3157 = vmul.f32 %v3029, %v3141
      %v3158 = vmul.f32 %v3030, %v3142
      %v3159 = vmul.f32 %v3031, %v3143
      %v3160 = vmul.f32 %v3032, %v3144
      %v3161 = vmul.f32 %v3033, %v3145
      %v3162 = vmul.f32 %v3034, %v3146
      %v3163 = vmul.f32 %v3035, %v3147
      %v3164 = vmul.f32 %v3036, %v3148
      %v3165 = vmul.f32 %v3037, %v3149
      %v3166 = vmul.f32 %v3038, %v3150
      %v3167 = vmul.f32 %v3039, %v3151
      %v3168 = vmul.f32 %v3040, %v3152
      %v3169 = vmul.f32 %v3041, %v3153
      %v3170 = vmul.f32 %v3042, %v3154
      %v3171 = vmul.f32 %v3043, %v3155
      %v3173 = vlaneseq
      %v3174 = vshrl.u32 %v3173, 7
      %v3175 = vsub.s32 0, %v3174
      %v3176 = vrot.slane %v2962, %v3175
      %v3178 = vmul.f32 %v3156, %v3176
      %v3179 = vmul.f32 %v3157, %v3176
      %v3180 = vmul.f32 %v3158, %v3176
      %v3181 = vmul.f32 %v3159, %v3176
      %v3182 = vmul.f32 %v3160, %v3176
      %v3183 = vmul.f32 %v3161, %v3176
      %v3184 = vmul.f32 %v3162, %v3176
      %v3185 = vmul.f32 %v3163, %v3176
      %v3186 = vmul.f32 %v3164, %v3176
      %v3187 = vmul.f32 %v3165, %v3176
      %v3188 = vmul.f32 %v3166, %v3176
      %v3189 = vmul.f32 %v3167, %v3176
      %v3190 = vmul.f32 %v3168, %v3176
      %v3191 = vmul.f32 %v3169, %v3176
      %v3192 = vmul.f32 %v3170, %v3176
      %v3193 = vmul.f32 %v3171, %v3176
      %v3195 = vlaneseq
      %v3196 = vshrl.u32 %v3195, 7
      %v3197 = vsub.s32 0, %v3196
      %v3198 = vrot.slane %v2963, %v3197
      %v3200 = vadd.f32 %v3178, %v3198
      %v3201 = vadd.f32 %v3179, %v3198
      %v3202 = vadd.f32 %v3180, %v3198
      %v3203 = vadd.f32 %v3181, %v3198
      %v3204 = vadd.f32 %v3182, %v3198
      %v3205 = vadd.f32 %v3183, %v3198
      %v3206 = vadd.f32 %v3184, %v3198
      %v3207 = vadd.f32 %v3185, %v3198
      %v3208 = vadd.f32 %v3186, %v3198
      %v3209 = vadd.f32 %v3187, %v3198
      %v3210 = vadd.f32 %v3188, %v3198
      %v3211 = vadd.f32 %v3189, %v3198
      %v3212 = vadd.f32 %v3190, %v3198
      %v3213 = vadd.f32 %v3191, %v3198
      %v3214 = vadd.f32 %v3192, %v3198
      %v3215 = vadd.f32 %v3193, %v3198
      %v3216 = vpack.c.bf16 %v3201, %v3200
      %v3217 = vpack.c.bf16 %v3203, %v3202
      %v3218 = vpack.c.bf16 %v3205, %v3204
      %v3219 = vpack.c.bf16 %v3207, %v3206
      %v3220 = vpack.c.bf16 %v3209, %v3208
      %v3221 = vpack.c.bf16 %v3211, %v3210
      %v3222 = vpack.c.bf16 %v3213, %v3212
      %v3223 = vpack.c.bf16 %v3215, %v3214
      %s3224 = scalar_lea.vmem %s4, 32
      %v3225 = vld [vmem:[%s3224] sm:$0xf]
      %v3226 = vld [vmem:[%s3224 + $0x4] sm:$0xf]
      %v3227 = vld [vmem:[%s3224 + $0x8] sm:$0xf]
      %v3228 = vld [vmem:[%s3224 + $0xc] sm:$0xf]
      %v3229 = vld [vmem:[%s3224 + $0x10] sm:$0xf]
      %v3230 = vld [vmem:[%s3224 + $0x14] sm:$0xf]
      %v3231 = vld [vmem:[%s3224 + $0x18] sm:$0xf]
      %v3232 = vld [vmem:[%s3224 + $0x1c] sm:$0xf]
      %s3233 = scalar_lea.vmem %s5, 1
      %v3234 = vld [vmem:[%s3233] sm:$0x1]
      %v3236 = vlaneseq
      %v3237 = vshrl.u32 %v3236, 7
      %v3238 = vsub.s32 0, %v3237
      %v3239 = vrot.slane %v3234, %v3238
      %v3249 = vunpack.c.l.b16 %v3225
      %v3250 = vunpack.c.l.b16 %v3226
      %v3251 = vunpack.c.l.b16 %v3227
      %v3252 = vunpack.c.l.b16 %v3228
      %v3253 = vunpack.c.l.b16 %v3229
      %v3254 = vunpack.c.l.b16 %v3230
      %v3255 = vunpack.c.l.b16 %v3231
      %v3256 = vunpack.c.l.b16 %v3232
      %v3257 = vpack.c.b16 %v3250, %v3249
      %v3258 = vpack.c.b16 %v3252, %v3251
      %v3259 = vpack.c.b16 %v3254, %v3253
      %v3260 = vpack.c.b16 %v3256, %v3255
      %v3266 = vsel %vm769, %v3216, 0
      %v3269 = vsel %vm769, %v3217, 0
      %v3272 = vsel %vm769, %v3218, 0
      %v3275 = vsel %vm769, %v3219, 0
      %v3278 = vsel %vm769, %v3220, 0
      %v3281 = vsel %vm769, %v3221, 0
      %v3284 = vsel %vm769, %v3222, 0
      %v3287 = vsel %vm769, %v3223, 0
      %3289 = vmatprep.subr.bf16.mxu0 0
      %3290 = vmatpush1.bf16.msra.mxu0 0
      %3291 = vmatprep.subr.bf16.mxu0 0
      %3292 = vmatpush1.bf16.msra.mxu0 0
      %3293 = vmatprep.subr.bf16.mxu0 0
      %3294 = vmatpush1.bf16.msra.mxu0 0
      %3295 = vmatprep.subr.bf16.mxu0 0
      %3296 = vmatpush1.bf16.msra.mxu0 0
      %3297 = vmatprep.subr.bf16.mxu0 0
      %3298 = vmatpush1.bf16.msra.mxu0 %v3260
      %3299 = vmatprep.subr.bf16.mxu0 0
      %3300 = vmatpush1.bf16.msra.mxu0 %v3259
      %3301 = vmatprep.subr.bf16.mxu0 0
      %3302 = vmatpush1.bf16.msra.mxu0 %v3258
      %3303 = vmatprep.subr.bf16.mxu0 0
      %3304 = vmatpush1.bf16.msra.mxu0 %v3257
      %3305 = vmatprep.subr.bf16.mxu0 0
      %3306 = vmatpush2.bf16.msra.mxu0 0
      %3307 = vmatprep.subr.bf16.mxu0 0
      %3308 = vmatpush2.bf16.msra.mxu0 0
      %3309 = vmatprep.subr.bf16.mxu0 0
      %3310 = vmatpush2.bf16.msra.mxu0 0
      %3311 = vmatprep.subr.bf16.mxu0 0
      %3312 = vmatpush2.bf16.msra.mxu0 0
      %3313 = vmatprep.subr.bf16.mxu0 0
      %3314 = vmatpush2.bf16.msra.mxu0 0
      %3315 = vmatprep.subr.bf16.mxu0 0
      %3316 = vmatpush2.bf16.msra.mxu0 0
      %3317 = vmatprep.subr.bf16.mxu0 0
      %3318 = vmatpush2.bf16.msra.mxu0 0
      %3319 = vmatprep.subr.bf16.mxu0 0
      %3320 = vmatpush2.bf16.msra.mxu0 0
      %3321 = vmatprep.mubr.bf16.mxu0 0
      %3322 = vmatmul.mubr.bf16.gmra.mxu0 %v3266
      %v3323 = vpop.f32.mrf.mxu0
      %v3324 = vadd.f32 %v3239, %v3323
      %v3325 = vpop.f32.mrf.mxu0
      %v3326 = vpop.f32.mrf.mxu0
      %v3327 = vadd.f32 %v3239, %v3326
      %v3328 = vpop.f32.mrf.mxu0
      %3329 = vmatprep.mubr.bf16.mxu0 0
      %3330 = vmatmul.mubr.bf16.gmra.mxu0 %v3269
      %v3331 = vpop.f32.mrf.mxu0
      %v3332 = vadd.f32 %v3239, %v3331
      %v3333 = vpop.f32.mrf.mxu0
      %v3334 = vpop.f32.mrf.mxu0
      %v3335 = vadd.f32 %v3239, %v3334
      %v3336 = vpop.f32.mrf.mxu0
      %3337 = vmatprep.mubr.bf16.mxu0 0
      %3338 = vmatmul.mubr.bf16.gmra.mxu0 %v3272
      %v3339 = vpop.f32.mrf.mxu0
      %v3340 = vadd.f32 %v3239, %v3339
      %v3341 = vpop.f32.mrf.mxu0
      %v3342 = vpop.f32.mrf.mxu0
      %v3343 = vadd.f32 %v3239, %v3342
      %v3344 = vpop.f32.mrf.mxu0
      %3345 = vmatprep.mubr.bf16.mxu0 0
      %3346 = vmatmul.mubr.bf16.gmra.mxu0 %v3275
      %v3347 = vpop.f32.mrf.mxu0
      %v3348 = vadd.f32 %v3239, %v3347
      %v3349 = vpop.f32.mrf.mxu0
      %v3350 = vpop.f32.mrf.mxu0
      %v3351 = vadd.f32 %v3239, %v3350
      %v3352 = vpop.f32.mrf.mxu0
      %3353 = vmatprep.mubr.bf16.mxu0 0
      %3354 = vmatmul.mubr.bf16.gmra.mxu0 %v3278
      %v3355 = vpop.f32.mrf.mxu0
      %v3356 = vadd.f32 %v3239, %v3355
      %v3357 = vpop.f32.mrf.mxu0
      %v3358 = vpop.f32.mrf.mxu0
      %v3359 = vadd.f32 %v3239, %v3358
      %v3360 = vpop.f32.mrf.mxu0
      %3361 = vmatprep.mubr.bf16.mxu0 0
      %3362 = vmatmul.mubr.bf16.gmra.mxu0 %v3281
      %v3363 = vpop.f32.mrf.mxu0
      %v3364 = vadd.f32 %v3239, %v3363
      %v3365 = vpop.f32.mrf.mxu0
      %v3366 = vpop.f32.mrf.mxu0
      %v3367 = vadd.f32 %v3239, %v3366
      %v3368 = vpop.f32.mrf.mxu0
      %3369 = vmatprep.mubr.bf16.mxu0 0
      %3370 = vmatmul.mubr.bf16.gmra.mxu0 %v3284
      %v3371 = vpop.f32.mrf.mxu0
      %v3372 = vadd.f32 %v3239, %v3371
      %v3373 = vpop.f32.mrf.mxu0
      %v3374 = vpop.f32.mrf.mxu0
      %v3375 = vadd.f32 %v3239, %v3374
      %v3376 = vpop.f32.mrf.mxu0
      %3377 = vmatprep.mubr.bf16.mxu0 0
      %3378 = vmatmul.mubr.bf16.gmra.mxu0 %v3287
      %v3379 = vpop.f32.mrf.mxu0
      %v3380 = vadd.f32 %v3239, %v3379
      %v3381 = vpop.f32.mrf.mxu0
      %v3382 = vpop.f32.mrf.mxu0
      %v3383 = vadd.f32 %v3239, %v3382
      %v3384 = vpop.f32.mrf.mxu0
      %3385 = vdwg.mxu0
      %s3386 = scalar_lea.vmem %s6, 32
      %v3387 = vld [vmem:[%s3386] sm:$0xf]
      %v3388 = vld [vmem:[%s3386 + $0x4] sm:$0xf]
      %v3389 = vld [vmem:[%s3386 + $0x8] sm:$0xf]
      %v3390 = vld [vmem:[%s3386 + $0xc] sm:$0xf]
      %v3391 = vld [vmem:[%s3386 + $0x10] sm:$0xf]
      %v3392 = vld [vmem:[%s3386 + $0x14] sm:$0xf]
      %v3393 = vld [vmem:[%s3386 + $0x18] sm:$0xf]
      %v3394 = vld [vmem:[%s3386 + $0x1c] sm:$0xf]
      %s3395 = scalar_lea.vmem %s7, 1
      %v3396 = vld [vmem:[%s3395] sm:$0x1]
      %v3398 = vlaneseq
      %v3399 = vshrl.u32 %v3398, 7
      %v3400 = vsub.s32 0, %v3399
      %v3401 = vrot.slane %v3396, %v3400
      %v3411 = vunpack.c.l.b16 %v3387
      %v3412 = vunpack.c.l.b16 %v3388
      %v3413 = vunpack.c.l.b16 %v3389
      %v3414 = vunpack.c.l.b16 %v3390
      %v3415 = vunpack.c.l.b16 %v3391
      %v3416 = vunpack.c.l.b16 %v3392
      %v3417 = vunpack.c.l.b16 %v3393
      %v3418 = vunpack.c.l.b16 %v3394
      %v3419 = vpack.c.b16 %v3412, %v3411
      %v3420 = vpack.c.b16 %v3414, %v3413
      %v3421 = vpack.c.b16 %v3416, %v3415
      %v3422 = vpack.c.b16 %v3418, %v3417
      %3427 = vmatprep.subr.bf16.mxu0 0
      %3428 = vmatpush1.bf16.msra.mxu0 0
      %3429 = vmatprep.subr.bf16.mxu0 0
      %3430 = vmatpush1.bf16.msra.mxu0 0
      %3431 = vmatprep.subr.bf16.mxu0 0
      %3432 = vmatpush1.bf16.msra.mxu0 0
      %3433 = vmatprep.subr.bf16.mxu0 0
      %3434 = vmatpush1.bf16.msra.mxu0 0
      %3435 = vmatprep.subr.bf16.mxu0 0
      %3436 = vmatpush1.bf16.msra.mxu0 %v3422
      %3437 = vmatprep.subr.bf16.mxu0 0
      %3438 = vmatpush1.bf16.msra.mxu0 %v3421
      %3439 = vmatprep.subr.bf16.mxu0 0
      %3440 = vmatpush1.bf16.msra.mxu0 %v3420
      %3441 = vmatprep.subr.bf16.mxu0 0
      %3442 = vmatpush1.bf16.msra.mxu0 %v3419
      %3443 = vmatprep.subr.bf16.mxu0 0
      %3444 = vmatpush2.bf16.msra.mxu0 0
      %3445 = vmatprep.subr.bf16.mxu0 0
      %3446 = vmatpush2.bf16.msra.mxu0 0
      %3447 = vmatprep.subr.bf16.mxu0 0
      %3448 = vmatpush2.bf16.msra.mxu0 0
      %3449 = vmatprep.subr.bf16.mxu0 0
      %3450 = vmatpush2.bf16.msra.mxu0 0
      %3451 = vmatprep.subr.bf16.mxu0 0
      %3452 = vmatpush2.bf16.msra.mxu0 0
      %3453 = vmatprep.subr.bf16.mxu0 0
      %3454 = vmatpush2.bf16.msra.mxu0 0
      %3455 = vmatprep.subr.bf16.mxu0 0
      %3456 = vmatpush2.bf16.msra.mxu0 0
      %3457 = vmatprep.subr.bf16.mxu0 0
      %3458 = vmatpush2.bf16.msra.mxu0 0
      %3459 = vmatprep.mubr.bf16.mxu0 0
      %3460 = vmatmul.mubr.bf16.gmra.mxu0 %v3266
      %v3461 = vpop.f32.mrf.mxu0
      %v3462 = vadd.f32 %v3401, %v3461
      %v3463 = vpop.f32.mrf.mxu0
      %v3464 = vpop.f32.mrf.mxu0
      %v3465 = vadd.f32 %v3401, %v3464
      %v3466 = vpop.f32.mrf.mxu0
      %3467 = vmatprep.mubr.bf16.mxu0 0
      %3468 = vmatmul.mubr.bf16.gmra.mxu0 %v3269
      %v3469 = vpop.f32.mrf.mxu0
      %v3470 = vadd.f32 %v3401, %v3469
      %v3471 = vpop.f32.mrf.mxu0
      %v3472 = vpop.f32.mrf.mxu0
      %v3473 = vadd.f32 %v3401, %v3472
      %v3474 = vpop.f32.mrf.mxu0
      %3475 = vmatprep.mubr.bf16.mxu0 0
      %3476 = vmatmul.mubr.bf16.gmra.mxu0 %v3272
      %v3477 = vpop.f32.mrf.mxu0
      %v3478 = vadd.f32 %v3401, %v3477
      %v3479 = vpop.f32.mrf.mxu0
      %v3480 = vpop.f32.mrf.mxu0
      %v3481 = vadd.f32 %v3401, %v3480
      %v3482 = vpop.f32.mrf.mxu0
      %3483 = vmatprep.mubr.bf16.mxu0 0
      %3484 = vmatmul.mubr.bf16.gmra.mxu0 %v3275
      %v3485 = vpop.f32.mrf.mxu0
      %v3486 = vadd.f32 %v3401, %v3485
      %v3487 = vpop.f32.mrf.mxu0
      %v3488 = vpop.f32.mrf.mxu0
      %v3489 = vadd.f32 %v3401, %v3488
      %v3490 = vpop.f32.mrf.mxu0
      %3491 = vmatprep.mubr.bf16.mxu0 0
      %3492 = vmatmul.mubr.bf16.gmra.mxu0 %v3278
      %v3493 = vpop.f32.mrf.mxu0
      %v3494 = vadd.f32 %v3401, %v3493
      %v3495 = vpop.f32.mrf.mxu0
      %v3496 = vpop.f32.mrf.mxu0
      %v3497 = vadd.f32 %v3401, %v3496
      %v3498 = vpop.f32.mrf.mxu0
      %3499 = vmatprep.mubr.bf16.mxu0 0
      %3500 = vmatmul.mubr.bf16.gmra.mxu0 %v3281
      %v3501 = vpop.f32.mrf.mxu0
      %v3502 = vadd.f32 %v3401, %v3501
      %v3503 = vpop.f32.mrf.mxu0
      %v3504 = vpop.f32.mrf.mxu0
      %v3505 = vadd.f32 %v3401, %v3504
      %v3506 = vpop.f32.mrf.mxu0
      %3507 = vmatprep.mubr.bf16.mxu0 0
      %3508 = vmatmul.mubr.bf16.gmra.mxu0 %v3284
      %v3509 = vpop.f32.mrf.mxu0
      %v3510 = vadd.f32 %v3401, %v3509
      %v3511 = vpop.f32.mrf.mxu0
      %v3512 = vpop.f32.mrf.mxu0
      %v3513 = vadd.f32 %v3401, %v3512
      %v3514 = vpop.f32.mrf.mxu0
      %3515 = vmatprep.mubr.bf16.mxu0 0
      %3516 = vmatmul.mubr.bf16.gmra.mxu0 %v3287
      %v3517 = vpop.f32.mrf.mxu0
      %v3518 = vadd.f32 %v3401, %v3517
      %v3519 = vpop.f32.mrf.mxu0
      %v3520 = vpop.f32.mrf.mxu0
      %v3521 = vadd.f32 %v3401, %v3520
      %v3522 = vpop.f32.mrf.mxu0
      %3523 = vdwg.mxu0
      %s3524 = scalar_lea.vmem %s8, 32
      %v3525 = vld [vmem:[%s3524] sm:$0xf]
      %v3526 = vld [vmem:[%s3524 + $0x4] sm:$0xf]
      %v3527 = vld [vmem:[%s3524 + $0x8] sm:$0xf]
      %v3528 = vld [vmem:[%s3524 + $0xc] sm:$0xf]
      %v3529 = vld [vmem:[%s3524 + $0x10] sm:$0xf]
      %v3530 = vld [vmem:[%s3524 + $0x14] sm:$0xf]
      %v3531 = vld [vmem:[%s3524 + $0x18] sm:$0xf]
      %v3532 = vld [vmem:[%s3524 + $0x1c] sm:$0xf]
      %s3533 = scalar_lea.vmem %s9, 1
      %v3534 = vld [vmem:[%s3533] sm:$0x1]
      %v3536 = vlaneseq
      %v3537 = vshrl.u32 %v3536, 7
      %v3538 = vsub.s32 0, %v3537
      %v3539 = vrot.slane %v3534, %v3538
      %v3549 = vunpack.c.l.b16 %v3525
      %v3550 = vunpack.c.l.b16 %v3526
      %v3551 = vunpack.c.l.b16 %v3527
      %v3552 = vunpack.c.l.b16 %v3528
      %v3553 = vunpack.c.l.b16 %v3529
      %v3554 = vunpack.c.l.b16 %v3530
      %v3555 = vunpack.c.l.b16 %v3531
      %v3556 = vunpack.c.l.b16 %v3532
      %v3557 = vpack.c.b16 %v3550, %v3549
      %v3558 = vpack.c.b16 %v3552, %v3551
      %v3559 = vpack.c.b16 %v3554, %v3553
      %v3560 = vpack.c.b16 %v3556, %v3555
      %3565 = vmatprep.subr.bf16.mxu0 0
      %3566 = vmatpush1.bf16.msra.mxu0 0
      %3567 = vmatprep.subr.bf16.mxu0 0
      %3568 = vmatpush1.bf16.msra.mxu0 0
      %3569 = vmatprep.subr.bf16.mxu0 0
      %3570 = vmatpush1.bf16.msra.mxu0 0
      %3571 = vmatprep.subr.bf16.mxu0 0
      %3572 = vmatpush1.bf16.msra.mxu0 0
      %3573 = vmatprep.subr.bf16.mxu0 0
      %3574 = vmatpush1.bf16.msra.mxu0 %v3560
      %3575 = vmatprep.subr.bf16.mxu0 0
      %3576 = vmatpush1.bf16.msra.mxu0 %v3559
      %3577 = vmatprep.subr.bf16.mxu0 0
      %3578 = vmatpush1.bf16.msra.mxu0 %v3558
      %3579 = vmatprep.subr.bf16.mxu0 0
      %3580 = vmatpush1.bf16.msra.mxu0 %v3557
      %3581 = vmatprep.subr.bf16.mxu0 0
      %3582 = vmatpush2.bf16.msra.mxu0 0
      %3583 = vmatprep.subr.bf16.mxu0 0
      %3584 = vmatpush2.bf16.msra.mxu0 0
      %3585 = vmatprep.subr.bf16.mxu0 0
      %3586 = vmatpush2.bf16.msra.mxu0 0
      %3587 = vmatprep.subr.bf16.mxu0 0
      %3588 = vmatpush2.bf16.msra.mxu0 0
      %3589 = vmatprep.subr.bf16.mxu0 0
      %3590 = vmatpush2.bf16.msra.mxu0 0
      %3591 = vmatprep.subr.bf16.mxu0 0
      %3592 = vmatpush2.bf16.msra.mxu0 0
      %3593 = vmatprep.subr.bf16.mxu0 0
      %3594 = vmatpush2.bf16.msra.mxu0 0
      %3595 = vmatprep.subr.bf16.mxu0 0
      %3596 = vmatpush2.bf16.msra.mxu0 0
      %3597 = vmatprep.mubr.bf16.mxu0 0
      %3598 = vmatmul.mubr.bf16.gmra.mxu0 %v3266
      %v3599 = vpop.f32.mrf.mxu0
      %v3600 = vadd.f32 %v3539, %v3599
      %v3601 = vpop.f32.mrf.mxu0
      %v3602 = vpop.f32.mrf.mxu0
      %v3603 = vadd.f32 %v3539, %v3602
      %v3604 = vpop.f32.mrf.mxu0
      %3605 = vmatprep.mubr.bf16.mxu0 0
      %3606 = vmatmul.mubr.bf16.gmra.mxu0 %v3269
      %v3607 = vpop.f32.mrf.mxu0
      %v3608 = vadd.f32 %v3539, %v3607
      %v3609 = vpop.f32.mrf.mxu0
      %v3610 = vpop.f32.mrf.mxu0
      %v3611 = vadd.f32 %v3539, %v3610
      %v3612 = vpop.f32.mrf.mxu0
      %3613 = vmatprep.mubr.bf16.mxu0 0
      %3614 = vmatmul.mubr.bf16.gmra.mxu0 %v3272
      %v3615 = vpop.f32.mrf.mxu0
      %v3616 = vadd.f32 %v3539, %v3615
      %v3617 = vpop.f32.mrf.mxu0
      %v3618 = vpop.f32.mrf.mxu0
      %v3619 = vadd.f32 %v3539, %v3618
      %v3620 = vpop.f32.mrf.mxu0
      %3621 = vmatprep.mubr.bf16.mxu0 0
      %3622 = vmatmul.mubr.bf16.gmra.mxu0 %v3275
      %v3623 = vpop.f32.mrf.mxu0
      %v3624 = vadd.f32 %v3539, %v3623
      %v3625 = vpop.f32.mrf.mxu0
      %v3626 = vpop.f32.mrf.mxu0
      %v3627 = vadd.f32 %v3539, %v3626
      %v3628 = vpop.f32.mrf.mxu0
      %3629 = vmatprep.mubr.bf16.mxu0 0
      %3630 = vmatmul.mubr.bf16.gmra.mxu0 %v3278
      %v3631 = vpop.f32.mrf.mxu0
      %v3632 = vadd.f32 %v3539, %v3631
      %v3633 = vpop.f32.mrf.mxu0
      %v3634 = vpop.f32.mrf.mxu0
      %v3635 = vadd.f32 %v3539, %v3634
      %v3636 = vpop.f32.mrf.mxu0
      %3637 = vmatprep.mubr.bf16.mxu0 0
      %3638 = vmatmul.mubr.bf16.gmra.mxu0 %v3281
      %v3639 = vpop.f32.mrf.mxu0
      %v3640 = vadd.f32 %v3539, %v3639
      %v3641 = vpop.f32.mrf.mxu0
      %v3642 = vpop.f32.mrf.mxu0
      %v3643 = vadd.f32 %v3539, %v3642
      %v3644 = vpop.f32.mrf.mxu0
      %3645 = vmatprep.mubr.bf16.mxu0 0
      %3646 = vmatmul.mubr.bf16.gmra.mxu0 %v3284
      %v3647 = vpop.f32.mrf.mxu0
      %v3648 = vadd.f32 %v3539, %v3647
      %v3649 = vpop.f32.mrf.mxu0
      %v3650 = vpop.f32.mrf.mxu0
      %v3651 = vadd.f32 %v3539, %v3650
      %v3652 = vpop.f32.mrf.mxu0
      %3653 = vmatprep.mubr.bf16.mxu0 0
      %3654 = vmatmul.mubr.bf16.gmra.mxu0 %v3287
      %v3655 = vpop.f32.mrf.mxu0
      %v3656 = vadd.f32 %v3539, %v3655
      %v3657 = vpop.f32.mrf.mxu0
      %v3658 = vpop.f32.mrf.mxu0
      %v3659 = vadd.f32 %v3539, %v3658
      %v3660 = vpop.f32.mrf.mxu0
      %3661 = vdwg.mxu0
      %v3662 = vpack.c.bf16 %v3327, %v3324
      %v3663 = vpack.c.bf16 %v3335, %v3332
      %v3664 = vpack.c.bf16 %v3343, %v3340
      %v3665 = vpack.c.bf16 %v3351, %v3348
      %v3666 = vpack.c.bf16 %v3359, %v3356
      %v3667 = vpack.c.bf16 %v3367, %v3364
      %v3668 = vpack.c.bf16 %v3375, %v3372
      %v3669 = vpack.c.bf16 %v3383, %v3380
      %v3670 = vpack.c.bf16 %v3465, %v3462
      %v3671 = vpack.c.bf16 %v3473, %v3470
      %v3672 = vpack.c.bf16 %v3481, %v3478
      %v3673 = vpack.c.bf16 %v3489, %v3486
      %v3674 = vpack.c.bf16 %v3497, %v3494
      %v3675 = vpack.c.bf16 %v3505, %v3502
      %v3676 = vpack.c.bf16 %v3513, %v3510
      %v3677 = vpack.c.bf16 %v3521, %v3518
      %v3679 = vsel %vm769, %v3662, 0
      %v3682 = vsel %vm769, %v3663, 0
      %v3685 = vsel %vm769, %v3664, 0
      %v3688 = vsel %vm769, %v3665, 0
      %v3691 = vsel %vm769, %v3666, 0
      %v3694 = vsel %vm769, %v3667, 0
      %v3697 = vsel %vm769, %v3668, 0
      %v3700 = vsel %vm769, %v3669, 0
      %v3703 = vsel %vm769, %v3670, 0
      %v3706 = vsel %vm769, %v3671, 0
      %v3709 = vsel %vm769, %v3672, 0
      %v3712 = vsel %vm769, %v3673, 0
      %v3715 = vsel %vm769, %v3674, 0
      %v3718 = vsel %vm769, %v3675, 0
      %v3721 = vsel %vm769, %v3676, 0
      %v3724 = vsel %vm769, %v3677, 0
      %3726 = vmatprep.subr.bf16.mxu0 0
      %3727 = vmatpush1.bf16.xpose.msra.mxu0 %v3724
      %3728 = vmatprep.subr.bf16.mxu0 0
      %3729 = vmatpush1.bf16.xpose.msra.mxu0 %v3721
      %3730 = vmatprep.subr.bf16.mxu0 0
      %3731 = vmatpush1.bf16.xpose.msra.mxu0 %v3718
      %3732 = vmatprep.subr.bf16.mxu0 0
      %3733 = vmatpush1.bf16.xpose.msra.mxu0 %v3715
      %3734 = vmatprep.subr.bf16.mxu0 0
      %3735 = vmatpush1.bf16.xpose.msra.mxu0 %v3712
      %3736 = vmatprep.subr.bf16.mxu0 0
      %3737 = vmatpush1.bf16.xpose.msra.mxu0 %v3709
      %3738 = vmatprep.subr.bf16.mxu0 0
      %3739 = vmatpush1.bf16.xpose.msra.mxu0 %v3706
      %3740 = vmatprep.subr.bf16.mxu0 0
      %3741 = vmatpush1.bf16.xpose.msra.mxu0 %v3703
      %3742 = vmatprep.subr.bf16.mxu0 0
      %3743 = vmatpush2.bf16.xpose.msra.mxu0 0
      %3744 = vmatprep.subr.bf16.mxu0 0
      %3745 = vmatpush2.bf16.xpose.msra.mxu0 0
      %3746 = vmatprep.subr.bf16.mxu0 0
      %3747 = vmatpush2.bf16.xpose.msra.mxu0 0
      %3748 = vmatprep.subr.bf16.mxu0 0
      %3749 = vmatpush2.bf16.xpose.msra.mxu0 0
      %3750 = vmatprep.subr.bf16.mxu0 0
      %3751 = vmatpush2.bf16.xpose.msra.mxu0 0
      %3752 = vmatprep.subr.bf16.mxu0 0
      %3753 = vmatpush2.bf16.xpose.msra.mxu0 0
      %3754 = vmatprep.subr.bf16.mxu0 0
      %3755 = vmatpush2.bf16.xpose.msra.mxu0 0
      %3756 = vmatprep.subr.bf16.mxu0 0
      %3757 = vmatpush2.bf16.xpose.msra.mxu0 0
      %3758 = vmatprep.mubr.bf16.mxu0 0
      %3759 = vmatmul.mubr.bf16.gmra.mxu0 %v3679
      %v3760 = vpop.f32.mrf.mxu0
      %v3761 = vadd.f32 %v1146, %v3760
      %v3762 = vpop.f32.mrf.mxu0
      %v3763 = vpop.f32.mrf.mxu0
      %v3764 = vadd.f32 %v1147, %v3763
      %v3765 = vpop.f32.mrf.mxu0
      %3766 = vmatprep.mubr.bf16.mxu0 0
      %3767 = vmatmul.mubr.bf16.gmra.mxu0 %v3682
      %v3768 = vpop.f32.mrf.mxu0
      %v3769 = vadd.f32 %v1148, %v3768
      %v3770 = vpop.f32.mrf.mxu0
      %v3771 = vpop.f32.mrf.mxu0
      %v3772 = vadd.f32 %v1149, %v3771
      %v3773 = vpop.f32.mrf.mxu0
      %3774 = vmatprep.mubr.bf16.mxu0 0
      %3775 = vmatmul.mubr.bf16.gmra.mxu0 %v3685
      %v3776 = vpop.f32.mrf.mxu0
      %v3777 = vadd.f32 %v1150, %v3776
      %v3778 = vpop.f32.mrf.mxu0
      %v3779 = vpop.f32.mrf.mxu0
      %v3780 = vadd.f32 %v1151, %v3779
      %v3781 = vpop.f32.mrf.mxu0
      %3782 = vmatprep.mubr.bf16.mxu0 0
      %3783 = vmatmul.mubr.bf16.gmra.mxu0 %v3688
      %v3784 = vpop.f32.mrf.mxu0
      %v3785 = vadd.f32 %v1152, %v3784
      %v3786 = vpop.f32.mrf.mxu0
      %v3787 = vpop.f32.mrf.mxu0
      %v3788 = vadd.f32 %v1153, %v3787
      %v3789 = vpop.f32.mrf.mxu0
      %3790 = vmatprep.mubr.bf16.mxu0 0
      %3791 = vmatmul.mubr.bf16.gmra.mxu0 %v3691
      %v3792 = vpop.f32.mrf.mxu0
      %v3793 = vadd.f32 %v1154, %v3792
      %v3794 = vpop.f32.mrf.mxu0
      %v3795 = vpop.f32.mrf.mxu0
      %v3796 = vadd.f32 %v1155, %v3795
      %v3797 = vpop.f32.mrf.mxu0
      %3798 = vmatprep.mubr.bf16.mxu0 0
      %3799 = vmatmul.mubr.bf16.gmra.mxu0 %v3694
      %v3800 = vpop.f32.mrf.mxu0
      %v3801 = vadd.f32 %v1156, %v3800
      %v3802 = vpop.f32.mrf.mxu0
      %v3803 = vpop.f32.mrf.mxu0
      %v3804 = vadd.f32 %v1157, %v3803
      %v3805 = vpop.f32.mrf.mxu0
      %3806 = vmatprep.mubr.bf16.mxu0 0
      %3807 = vmatmul.mubr.bf16.gmra.mxu0 %v3697
      %v3808 = vpop.f32.mrf.mxu0
      %v3809 = vadd.f32 %v1158, %v3808
      %v3810 = vpop.f32.mrf.mxu0
      %v3811 = vpop.f32.mrf.mxu0
      %v3812 = vadd.f32 %v1159, %v3811
      %v3813 = vpop.f32.mrf.mxu0
      %3814 = vmatprep.mubr.bf16.mxu0 0
      %3815 = vmatmul.mubr.bf16.gmra.mxu0 %v3700
      %v3816 = vpop.f32.mrf.mxu0
      %v3817 = vadd.f32 %v1160, %v3816
      %v3818 = vpop.f32.mrf.mxu0
      %v3819 = vpop.f32.mrf.mxu0
      %v3820 = vadd.f32 %v1161, %v3819
      %v3821 = vpop.f32.mrf.mxu0
      %3822 = vdwg.mxu0
      %3823 = vmax.xlane.f32.xlu0 %v3761
      %v3824 = vpop.xlane.xlu0 %3823
      %3825 = vmax.xlane.f32.xlu0 %v3764
      %v3826 = vpop.xlane.xlu0 %3825
      %3827 = vmax.xlane.f32.xlu0 %v3769
      %v3828 = vpop.xlane.xlu0 %3827
      %3829 = vmax.xlane.f32.xlu0 %v3772
      %v3830 = vpop.xlane.xlu0 %3829
      %3831 = vmax.xlane.f32.xlu0 %v3777
      %v3832 = vpop.xlane.xlu0 %3831
      %3833 = vmax.xlane.f32.xlu0 %v3780
      %v3834 = vpop.xlane.xlu0 %3833
      %3835 = vmax.xlane.f32.xlu0 %v3785
      %v3836 = vpop.xlane.xlu0 %3835
      %3837 = vmax.xlane.f32.xlu0 %v3788
      %v3838 = vpop.xlane.xlu0 %3837
      %3839 = vmax.xlane.f32.xlu0 %v3793
      %v3840 = vpop.xlane.xlu0 %3839
      %3841 = vmax.xlane.f32.xlu0 %v3796
      %v3842 = vpop.xlane.xlu0 %3841
      %3843 = vmax.xlane.f32.xlu0 %v3801
      %v3844 = vpop.xlane.xlu0 %3843
      %3845 = vmax.xlane.f32.xlu0 %v3804
      %v3846 = vpop.xlane.xlu0 %3845
      %3847 = vmax.xlane.f32.xlu0 %v3809
      %v3848 = vpop.xlane.xlu0 %3847
      %3849 = vmax.xlane.f32.xlu0 %v3812
      %v3850 = vpop.xlane.xlu0 %3849
      %3851 = vmax.xlane.f32.xlu0 %v3817
      %v3852 = vpop.xlane.xlu0 %3851
      %3853 = vmax.xlane.f32.xlu0 %v3820
      %v3854 = vpop.xlane.xlu0 %3853
      %v3855 = vsub.f32 %v3761, %v3824
      %v3856 = vsub.f32 %v3764, %v3826
      %v3857 = vsub.f32 %v3769, %v3828
      %v3858 = vsub.f32 %v3772, %v3830
      %v3859 = vsub.f32 %v3777, %v3832
      %v3860 = vsub.f32 %v3780, %v3834
      %v3861 = vsub.f32 %v3785, %v3836
      %v3862 = vsub.f32 %v3788, %v3838
      %v3863 = vsub.f32 %v3793, %v3840
      %v3864 = vsub.f32 %v3796, %v3842
      %v3865 = vsub.f32 %v3801, %v3844
      %v3866 = vsub.f32 %v3804, %v3846
      %v3867 = vsub.f32 %v3809, %v3848
      %v3868 = vsub.f32 %v3812, %v3850
      %v3869 = vsub.f32 %v3817, %v3852
      %v3870 = vsub.f32 %v3820, %v3854
      %v3871 = vmul.f32 %v3855, 1.442695
      %v3872 = vpow.pop %v3871
      %v3873 = vmul.f32 %v3856, 1.442695
      %v3874 = vpow.pop %v3873
      %v3875 = vmul.f32 %v3857, 1.442695
      %v3876 = vpow.pop %v3875
      %v3877 = vmul.f32 %v3858, 1.442695
      %v3878 = vpow.pop %v3877
      %v3879 = vmul.f32 %v3859, 1.442695
      %v3880 = vpow.pop %v3879
      %v3881 = vmul.f32 %v3860, 1.442695
      %v3882 = vpow.pop %v3881
      %v3883 = vmul.f32 %v3861, 1.442695
      %v3884 = vpow.pop %v3883
      %v3885 = vmul.f32 %v3862, 1.442695
      %v3886 = vpow.pop %v3885
      %v3887 = vmul.f32 %v3863, 1.442695
      %v3888 = vpow.pop %v3887
      %v3889 = vmul.f32 %v3864, 1.442695
      %v3890 = vpow.pop %v3889
      %v3891 = vmul.f32 %v3865, 1.442695
      %v3892 = vpow.pop %v3891
      %v3893 = vmul.f32 %v3866, 1.442695
      %v3894 = vpow.pop %v3893
      %v3895 = vmul.f32 %v3867, 1.442695
      %v3896 = vpow.pop %v3895
      %v3897 = vmul.f32 %v3868, 1.442695
      %v3898 = vpow.pop %v3897
      %v3899 = vmul.f32 %v3869, 1.442695
      %v3900 = vpow.pop %v3899
      %v3901 = vmul.f32 %v3870, 1.442695
      %v3902 = vpow.pop %v3901
      %3903 = vadd.xlane.f32.xlu0 %v3872
      %v3904 = vpop.xlane.xlu0 %3903
      %3905 = vadd.xlane.f32.xlu0 %v3874
      %v3906 = vpop.xlane.xlu0 %3905
      %3907 = vadd.xlane.f32.xlu0 %v3876
      %v3908 = vpop.xlane.xlu0 %3907
      %3909 = vadd.xlane.f32.xlu0 %v3878
      %v3910 = vpop.xlane.xlu0 %3909
      %3911 = vadd.xlane.f32.xlu0 %v3880
      %v3912 = vpop.xlane.xlu0 %3911
      %3913 = vadd.xlane.f32.xlu0 %v3882
      %v3914 = vpop.xlane.xlu0 %3913
      %3915 = vadd.xlane.f32.xlu0 %v3884
      %v3916 = vpop.xlane.xlu0 %3915
      %3917 = vadd.xlane.f32.xlu0 %v3886
      %v3918 = vpop.xlane.xlu0 %3917
      %3919 = vadd.xlane.f32.xlu0 %v3888
      %v3920 = vpop.xlane.xlu0 %3919
      %3921 = vadd.xlane.f32.xlu0 %v3890
      %v3922 = vpop.xlane.xlu0 %3921
      %3923 = vadd.xlane.f32.xlu0 %v3892
      %v3924 = vpop.xlane.xlu0 %3923
      %3925 = vadd.xlane.f32.xlu0 %v3894
      %v3926 = vpop.xlane.xlu0 %3925
      %3927 = vadd.xlane.f32.xlu0 %v3896
      %v3928 = vpop.xlane.xlu0 %3927
      %3929 = vadd.xlane.f32.xlu0 %v3898
      %v3930 = vpop.xlane.xlu0 %3929
      %3931 = vadd.xlane.f32.xlu0 %v3900
      %v3932 = vpop.xlane.xlu0 %3931
      %3933 = vadd.xlane.f32.xlu0 %v3902
      %v3934 = vpop.xlane.xlu0 %3933
      %v3935 = vrcp.pop %v3904
      %v3936 = vrcp.pop %v3906
      %v3937 = vrcp.pop %v3908
      %v3938 = vrcp.pop %v3910
      %v3939 = vrcp.pop %v3912
      %v3940 = vrcp.pop %v3914
      %v3941 = vrcp.pop %v3916
      %v3942 = vrcp.pop %v3918
      %v3943 = vrcp.pop %v3920
      %v3944 = vrcp.pop %v3922
      %v3945 = vrcp.pop %v3924
      %v3946 = vrcp.pop %v3926
      %v3947 = vrcp.pop %v3928
      %v3948 = vrcp.pop %v3930
      %v3949 = vrcp.pop %v3932
      %v3950 = vrcp.pop %v3934
      %v3951 = vmul.f32 %v3872, %v3935
      %v3952 = vmul.f32 %v3874, %v3936
      %v3953 = vmul.f32 %v3876, %v3937
      %v3954 = vmul.f32 %v3878, %v3938
      %v3955 = vmul.f32 %v3880, %v3939
      %v3956 = vmul.f32 %v3882, %v3940
      %v3957 = vmul.f32 %v3884, %v3941
      %v3958 = vmul.f32 %v3886, %v3942
      %v3959 = vmul.f32 %v3888, %v3943
      %v3960 = vmul.f32 %v3890, %v3944
      %v3961 = vmul.f32 %v3892, %v3945
      %v3962 = vmul.f32 %v3894, %v3946
      %v3963 = vmul.f32 %v3896, %v3947
      %v3964 = vmul.f32 %v3898, %v3948
      %v3965 = vmul.f32 %v3900, %v3949
      %v3966 = vmul.f32 %v3902, %v3950
      %v3967 = vpack.c.bf16 %v3952, %v3951
      %v3968 = vpack.c.bf16 %v3954, %v3953
      %v3969 = vpack.c.bf16 %v3956, %v3955
      %v3970 = vpack.c.bf16 %v3958, %v3957
      %v3971 = vpack.c.bf16 %v3960, %v3959
      %v3972 = vpack.c.bf16 %v3962, %v3961
      %v3973 = vpack.c.bf16 %v3964, %v3963
      %v3974 = vpack.c.bf16 %v3966, %v3965
      %v3975 = vpack.c.bf16 %v3603, %v3600
      %v3976 = vpack.c.bf16 %v3611, %v3608
      %v3977 = vpack.c.bf16 %v3619, %v3616
      %v3978 = vpack.c.bf16 %v3627, %v3624
      %v3979 = vpack.c.bf16 %v3635, %v3632
      %v3980 = vpack.c.bf16 %v3643, %v3640
      %v3981 = vpack.c.bf16 %v3651, %v3648
      %v3982 = vpack.c.bf16 %v3659, %v3656
      %3983 = vmatprep.subr.bf16.mxu0 0
      %3984 = vmatpush1.bf16.msra.mxu0 %v3982
      %3985 = vmatprep.subr.bf16.mxu0 0
      %3986 = vmatpush1.bf16.msra.mxu0 %v3981
      %3987 = vmatprep.subr.bf16.mxu0 0
      %3988 = vmatpush1.bf16.msra.mxu0 %v3980
      %3989 = vmatprep.subr.bf16.mxu0 0
      %3990 = vmatpush1.bf16.msra.mxu0 %v3979
      %3991 = vmatprep.subr.bf16.mxu0 0
      %3992 = vmatpush1.bf16.msra.mxu0 %v3978
      %3993 = vmatprep.subr.bf16.mxu0 0
      %3994 = vmatpush1.bf16.msra.mxu0 %v3977
      %3995 = vmatprep.subr.bf16.mxu0 0
      %3996 = vmatpush1.bf16.msra.mxu0 %v3976
      %3997 = vmatprep.subr.bf16.mxu0 0
      %3998 = vmatpush1.bf16.msra.mxu0 %v3975
      %3999 = vmatprep.subr.bf16.mxu0 0
      %4000 = vmatpush2.bf16.msra.mxu0 0
      %4001 = vmatprep.subr.bf16.mxu0 0
      %4002 = vmatpush2.bf16.msra.mxu0 0
      %4003 = vmatprep.subr.bf16.mxu0 0
      %4004 = vmatpush2.bf16.msra.mxu0 0
      %4005 = vmatprep.subr.bf16.mxu0 0
      %4006 = vmatpush2.bf16.msra.mxu0 0
      %4007 = vmatprep.subr.bf16.mxu0 0
      %4008 = vmatpush2.bf16.msra.mxu0 0
      %4009 = vmatprep.subr.bf16.mxu0 0
      %4010 = vmatpush2.bf16.msra.mxu0 0
      %4011 = vmatprep.subr.bf16.mxu0 0
      %4012 = vmatpush2.bf16.msra.mxu0 0
      %4013 = vmatprep.subr.bf16.mxu0 0
      %4014 = vmatpush2.bf16.msra.mxu0 0
      %4015 = vmatprep.mubr.bf16.mxu0 0
      %4016 = vmatmul.mubr.bf16.gmra.mxu0 %v3967
      %v4017 = vpop.f32.mrf.mxu0
      %v4018 = vadd.f32 0.0, %v4017
      %v4019 = vpop.f32.mrf.mxu0
      %v4020 = vpop.f32.mrf.mxu0
      %v4021 = vadd.f32 0.0, %v4020
      %v4022 = vpop.f32.mrf.mxu0
      %4023 = vmatprep.mubr.bf16.mxu0 0
      %4024 = vmatmul.mubr.bf16.gmra.mxu0 %v3968
      %v4025 = vpop.f32.mrf.mxu0
      %v4026 = vadd.f32 0.0, %v4025
      %v4027 = vpop.f32.mrf.mxu0
      %v4028 = vpop.f32.mrf.mxu0
      %v4029 = vadd.f32 0.0, %v4028
      %v4030 = vpop.f32.mrf.mxu0
      %4031 = vmatprep.mubr.bf16.mxu0 0
      %4032 = vmatmul.mubr.bf16.gmra.mxu0 %v3969
      %v4033 = vpop.f32.mrf.mxu0
      %v4034 = vadd.f32 0.0, %v4033
      %v4035 = vpop.f32.mrf.mxu0
      %v4036 = vpop.f32.mrf.mxu0
      %v4037 = vadd.f32 0.0, %v4036
      %v4038 = vpop.f32.mrf.mxu0
      %4039 = vmatprep.mubr.bf16.mxu0 0
      %4040 = vmatmul.mubr.bf16.gmra.mxu0 %v3970
      %v4041 = vpop.f32.mrf.mxu0
      %v4042 = vadd.f32 0.0, %v4041
      %v4043 = vpop.f32.mrf.mxu0
      %v4044 = vpop.f32.mrf.mxu0
      %v4045 = vadd.f32 0.0, %v4044
      %v4046 = vpop.f32.mrf.mxu0
      %4047 = vmatprep.mubr.bf16.mxu0 0
      %4048 = vmatmul.mubr.bf16.gmra.mxu0 %v3971
      %v4049 = vpop.f32.mrf.mxu0
      %v4050 = vadd.f32 0.0, %v4049
      %v4051 = vpop.f32.mrf.mxu0
      %v4052 = vpop.f32.mrf.mxu0
      %v4053 = vadd.f32 0.0, %v4052
      %v4054 = vpop.f32.mrf.mxu0
      %4055 = vmatprep.mubr.bf16.mxu0 0
      %4056 = vmatmul.mubr.bf16.gmra.mxu0 %v3972
      %v4057 = vpop.f32.mrf.mxu0
      %v4058 = vadd.f32 0.0, %v4057
      %v4059 = vpop.f32.mrf.mxu0
      %v4060 = vpop.f32.mrf.mxu0
      %v4061 = vadd.f32 0.0, %v4060
      %v4062 = vpop.f32.mrf.mxu0
      %4063 = vmatprep.mubr.bf16.mxu0 0
      %4064 = vmatmul.mubr.bf16.gmra.mxu0 %v3973
      %v4065 = vpop.f32.mrf.mxu0
      %v4066 = vadd.f32 0.0, %v4065
      %v4067 = vpop.f32.mrf.mxu0
      %v4068 = vpop.f32.mrf.mxu0
      %v4069 = vadd.f32 0.0, %v4068
      %v4070 = vpop.f32.mrf.mxu0
      %4071 = vmatprep.mubr.bf16.mxu0 0
      %4072 = vmatmul.mubr.bf16.gmra.mxu0 %v3974
      %v4073 = vpop.f32.mrf.mxu0
      %v4074 = vadd.f32 0.0, %v4073
      %v4075 = vpop.f32.mrf.mxu0
      %v4076 = vpop.f32.mrf.mxu0
      %v4077 = vadd.f32 0.0, %v4076
      %v4078 = vpop.f32.mrf.mxu0
      %4079 = vdwg.mxu0
      %v4080 = vpack.c.bf16 %v4021, %v4018
      %v4081 = vpack.c.bf16 %v4029, %v4026
      %v4082 = vpack.c.bf16 %v4037, %v4034
      %v4083 = vpack.c.bf16 %v4045, %v4042
      %v4084 = vpack.c.bf16 %v4053, %v4050
      %v4085 = vpack.c.bf16 %v4061, %v4058
      %v4086 = vpack.c.bf16 %v4069, %v4066
      %v4087 = vpack.c.bf16 %v4077, %v4074
      %s4088 = scalar_lea.vmem %s10, 32
      %v4089 = vld [vmem:[%s4088] sm:$0xf]
      %v4090 = vld [vmem:[%s4088 + $0x4] sm:$0xf]
      %v4091 = vld [vmem:[%s4088 + $0x8] sm:$0xf]
      %v4092 = vld [vmem:[%s4088 + $0xc] sm:$0xf]
      %v4093 = vld [vmem:[%s4088 + $0x10] sm:$0xf]
      %v4094 = vld [vmem:[%s4088 + $0x14] sm:$0xf]
      %v4095 = vld [vmem:[%s4088 + $0x18] sm:$0xf]
      %v4096 = vld [vmem:[%s4088 + $0x1c] sm:$0xf]
      %s4097 = scalar_lea.vmem %s11, 1
      %v4098 = vld [vmem:[%s4097] sm:$0x1]
      %v4100 = vlaneseq
      %v4101 = vshrl.u32 %v4100, 7
      %v4102 = vsub.s32 0, %v4101
      %v4103 = vrot.slane %v4098, %v4102
      %v4113 = vunpack.c.l.b16 %v4089
      %v4114 = vunpack.c.l.b16 %v4090
      %v4115 = vunpack.c.l.b16 %v4091
      %v4116 = vunpack.c.l.b16 %v4092
      %v4117 = vunpack.c.l.b16 %v4093
      %v4118 = vunpack.c.l.b16 %v4094
      %v4119 = vunpack.c.l.b16 %v4095
      %v4120 = vunpack.c.l.b16 %v4096
      %v4121 = vpack.c.b16 %v4114, %v4113
      %v4122 = vpack.c.b16 %v4116, %v4115
      %v4123 = vpack.c.b16 %v4118, %v4117
      %v4124 = vpack.c.b16 %v4120, %v4119
      %v4130 = vsel %vm769, %v4080, 0
      %v4133 = vsel %vm769, %v4081, 0
      %v4136 = vsel %vm769, %v4082, 0
      %v4139 = vsel %vm769, %v4083, 0
      %v4142 = vsel %vm769, %v4084, 0
      %v4145 = vsel %vm769, %v4085, 0
      %v4148 = vsel %vm769, %v4086, 0
      %v4151 = vsel %vm769, %v4087, 0
      %4153 = vmatprep.subr.bf16.mxu0 0
      %4154 = vmatpush1.bf16.msra.mxu0 0
      %4155 = vmatprep.subr.bf16.mxu0 0
      %4156 = vmatpush1.bf16.msra.mxu0 0
      %4157 = vmatprep.subr.bf16.mxu0 0
      %4158 = vmatpush1.bf16.msra.mxu0 0
      %4159 = vmatprep.subr.bf16.mxu0 0
      %4160 = vmatpush1.bf16.msra.mxu0 0
      %4161 = vmatprep.subr.bf16.mxu0 0
      %4162 = vmatpush1.bf16.msra.mxu0 %v4124
      %4163 = vmatprep.subr.bf16.mxu0 0
      %4164 = vmatpush1.bf16.msra.mxu0 %v4123
      %4165 = vmatprep.subr.bf16.mxu0 0
      %4166 = vmatpush1.bf16.msra.mxu0 %v4122
      %4167 = vmatprep.subr.bf16.mxu0 0
      %4168 = vmatpush1.bf16.msra.mxu0 %v4121
      %4169 = vmatprep.subr.bf16.mxu0 0
      %4170 = vmatpush2.bf16.msra.mxu0 0
      %4171 = vmatprep.subr.bf16.mxu0 0
      %4172 = vmatpush2.bf16.msra.mxu0 0
      %4173 = vmatprep.subr.bf16.mxu0 0
      %4174 = vmatpush2.bf16.msra.mxu0 0
      %4175 = vmatprep.subr.bf16.mxu0 0
      %4176 = vmatpush2.bf16.msra.mxu0 0
      %4177 = vmatprep.subr.bf16.mxu0 0
      %4178 = vmatpush2.bf16.msra.mxu0 0
      %4179 = vmatprep.subr.bf16.mxu0 0
      %4180 = vmatpush2.bf16.msra.mxu0 0
      %4181 = vmatprep.subr.bf16.mxu0 0
      %4182 = vmatpush2.bf16.msra.mxu0 0
      %4183 = vmatprep.subr.bf16.mxu0 0
      %4184 = vmatpush2.bf16.msra.mxu0 0
      %4185 = vmatprep.mubr.bf16.mxu0 0
      %4186 = vmatmul.mubr.bf16.gmra.mxu0 %v4130
      %v4187 = vpop.f32.mrf.mxu0
      %v4188 = vadd.f32 %v4103, %v4187
      %v4189 = vpop.f32.mrf.mxu0
      %v4190 = vpop.f32.mrf.mxu0
      %v4191 = vadd.f32 %v4103, %v4190
      %v4192 = vpop.f32.mrf.mxu0
      %4193 = vmatprep.mubr.bf16.mxu0 0
      %4194 = vmatmul.mubr.bf16.gmra.mxu0 %v4133
      %v4195 = vpop.f32.mrf.mxu0
      %v4196 = vadd.f32 %v4103, %v4195
      %v4197 = vpop.f32.mrf.mxu0
      %v4198 = vpop.f32.mrf.mxu0
      %v4199 = vadd.f32 %v4103, %v4198
      %v4200 = vpop.f32.mrf.mxu0
      %4201 = vmatprep.mubr.bf16.mxu0 0
      %4202 = vmatmul.mubr.bf16.gmra.mxu0 %v4136
      %v4203 = vpop.f32.mrf.mxu0
      %v4204 = vadd.f32 %v4103, %v4203
      %v4205 = vpop.f32.mrf.mxu0
      %v4206 = vpop.f32.mrf.mxu0
      %v4207 = vadd.f32 %v4103, %v4206
      %v4208 = vpop.f32.mrf.mxu0
      %4209 = vmatprep.mubr.bf16.mxu0 0
      %4210 = vmatmul.mubr.bf16.gmra.mxu0 %v4139
      %v4211 = vpop.f32.mrf.mxu0
      %v4212 = vadd.f32 %v4103, %v4211
      %v4213 = vpop.f32.mrf.mxu0
      %v4214 = vpop.f32.mrf.mxu0
      %v4215 = vadd.f32 %v4103, %v4214
      %v4216 = vpop.f32.mrf.mxu0
      %4217 = vmatprep.mubr.bf16.mxu0 0
      %4218 = vmatmul.mubr.bf16.gmra.mxu0 %v4142
      %v4219 = vpop.f32.mrf.mxu0
      %v4220 = vadd.f32 %v4103, %v4219
      %v4221 = vpop.f32.mrf.mxu0
      %v4222 = vpop.f32.mrf.mxu0
      %v4223 = vadd.f32 %v4103, %v4222
      %v4224 = vpop.f32.mrf.mxu0
      %4225 = vmatprep.mubr.bf16.mxu0 0
      %4226 = vmatmul.mubr.bf16.gmra.mxu0 %v4145
      %v4227 = vpop.f32.mrf.mxu0
      %v4228 = vadd.f32 %v4103, %v4227
      %v4229 = vpop.f32.mrf.mxu0
      %v4230 = vpop.f32.mrf.mxu0
      %v4231 = vadd.f32 %v4103, %v4230
      %v4232 = vpop.f32.mrf.mxu0
      %4233 = vmatprep.mubr.bf16.mxu0 0
      %4234 = vmatmul.mubr.bf16.gmra.mxu0 %v4148
      %v4235 = vpop.f32.mrf.mxu0
      %v4236 = vadd.f32 %v4103, %v4235
      %v4237 = vpop.f32.mrf.mxu0
      %v4238 = vpop.f32.mrf.mxu0
      %v4239 = vadd.f32 %v4103, %v4238
      %v4240 = vpop.f32.mrf.mxu0
      %4241 = vmatprep.mubr.bf16.mxu0 0
      %4242 = vmatmul.mubr.bf16.gmra.mxu0 %v4151
      %v4243 = vpop.f32.mrf.mxu0
      %v4244 = vadd.f32 %v4103, %v4243
      %v4245 = vpop.f32.mrf.mxu0
      %v4246 = vpop.f32.mrf.mxu0
      %v4247 = vadd.f32 %v4103, %v4246
      %v4248 = vpop.f32.mrf.mxu0
      %4249 = vdwg.mxu0
      %v4250 = vadd.f32 %v3200, %v4188
      %v4251 = vadd.f32 %v3201, %v4191
      %v4252 = vadd.f32 %v3202, %v4196
      %v4253 = vadd.f32 %v3203, %v4199
      %v4254 = vadd.f32 %v3204, %v4204
      %v4255 = vadd.f32 %v3205, %v4207
      %v4256 = vadd.f32 %v3206, %v4212
      %v4257 = vadd.f32 %v3207, %v4215
      %v4258 = vadd.f32 %v3208, %v4220
      %v4259 = vadd.f32 %v3209, %v4223
      %v4260 = vadd.f32 %v3210, %v4228
      %v4261 = vadd.f32 %v3211, %v4231
      %v4262 = vadd.f32 %v3212, %v4236
      %v4263 = vadd.f32 %v3213, %v4239
      %v4264 = vadd.f32 %v3214, %v4244
      %v4265 = vadd.f32 %v3215, %v4247
      %s4266 = scalar_lea.vmem %s12, 1
      %v4267 = vld [vmem:[%s4266] sm:$0x1]
      %s4268 = scalar_lea.vmem %s13, 1
      %v4269 = vld [vmem:[%s4268] sm:$0x1]
      %v4270 = vsel %vm769, %v4250, 0.0
      %4271 = vadd.xlane.f32.xlu0 %v4270
      %v4272 = vpop.xlane.xlu0 %4271
      %v4273 = vsel %vm769, %v4251, 0.0
      %4274 = vadd.xlane.f32.xlu0 %v4273
      %v4275 = vpop.xlane.xlu0 %4274
      %v4276 = vsel %vm769, %v4252, 0.0
      %4277 = vadd.xlane.f32.xlu0 %v4276
      %v4278 = vpop.xlane.xlu0 %4277
      %v4279 = vsel %vm769, %v4253, 0.0
      %4280 = vadd.xlane.f32.xlu0 %v4279
      %v4281 = vpop.xlane.xlu0 %4280
      %v4282 = vsel %vm769, %v4254, 0.0
      %4283 = vadd.xlane.f32.xlu0 %v4282
      %v4284 = vpop.xlane.xlu0 %4283
      %v4285 = vsel %vm769, %v4255, 0.0
      %4286 = vadd.xlane.f32.xlu0 %v4285
      %v4287 = vpop.xlane.xlu0 %4286
      %v4288 = vsel %vm769, %v4256, 0.0
      %4289 = vadd.xlane.f32.xlu0 %v4288
      %v4290 = vpop.xlane.xlu0 %4289
      %v4291 = vsel %vm769, %v4257, 0.0
      %4292 = vadd.xlane.f32.xlu0 %v4291
      %v4293 = vpop.xlane.xlu0 %4292
      %v4294 = vsel %vm769, %v4258, 0.0
      %4295 = vadd.xlane.f32.xlu0 %v4294
      %v4296 = vpop.xlane.xlu0 %4295
      %v4297 = vsel %vm769, %v4259, 0.0
      %4298 = vadd.xlane.f32.xlu0 %v4297
      %v4299 = vpop.xlane.xlu0 %4298
      %v4300 = vsel %vm769, %v4260, 0.0
      %4301 = vadd.xlane.f32.xlu0 %v4300
      %v4302 = vpop.xlane.xlu0 %4301
      %v4303 = vsel %vm769, %v4261, 0.0
      %4304 = vadd.xlane.f32.xlu0 %v4303
      %v4305 = vpop.xlane.xlu0 %4304
      %v4306 = vsel %vm769, %v4262, 0.0
      %4307 = vadd.xlane.f32.xlu0 %v4306
      %v4308 = vpop.xlane.xlu0 %4307
      %v4309 = vsel %vm769, %v4263, 0.0
      %4310 = vadd.xlane.f32.xlu0 %v4309
      %v4311 = vpop.xlane.xlu0 %4310
      %v4312 = vsel %vm769, %v4264, 0.0
      %4313 = vadd.xlane.f32.xlu0 %v4312
      %v4314 = vpop.xlane.xlu0 %4313
      %v4315 = vsel %vm769, %v4265, 0.0
      %4316 = vadd.xlane.f32.xlu0 %v4315
      %v4317 = vpop.xlane.xlu0 %4316
      %v4318 = vmul.f32 %v4272, %v818
      %v4319 = vmul.f32 %v4275, %v818
      %v4320 = vmul.f32 %v4278, %v818
      %v4321 = vmul.f32 %v4281, %v818
      %v4322 = vmul.f32 %v4284, %v818
      %v4323 = vmul.f32 %v4287, %v818
      %v4324 = vmul.f32 %v4290, %v818
      %v4325 = vmul.f32 %v4293, %v818
      %v4326 = vmul.f32 %v4296, %v818
      %v4327 = vmul.f32 %v4299, %v818
      %v4328 = vmul.f32 %v4302, %v818
      %v4329 = vmul.f32 %v4305, %v818
      %v4330 = vmul.f32 %v4308, %v818
      %v4331 = vmul.f32 %v4311, %v818
      %v4332 = vmul.f32 %v4314, %v818
      %v4333 = vmul.f32 %v4317, %v818
      %v4334 = vsub.f32 %v4250, %v4318
      %v4335 = vsub.f32 %v4251, %v4319
      %v4336 = vsub.f32 %v4252, %v4320
      %v4337 = vsub.f32 %v4253, %v4321
      %v4338 = vsub.f32 %v4254, %v4322
      %v4339 = vsub.f32 %v4255, %v4323
      %v4340 = vsub.f32 %v4256, %v4324
      %v4341 = vsub.f32 %v4257, %v4325
      %v4342 = vsub.f32 %v4258, %v4326
      %v4343 = vsub.f32 %v4259, %v4327
      %v4344 = vsub.f32 %v4260, %v4328
      %v4345 = vsub.f32 %v4261, %v4329
      %v4346 = vsub.f32 %v4262, %v4330
      %v4347 = vsub.f32 %v4263, %v4331
      %v4348 = vsub.f32 %v4264, %v4332
      %v4349 = vsub.f32 %v4265, %v4333
      %v4350 = vmul.f32 %v4334, %v4334
      %v4351 = vmul.f32 %v4335, %v4335
      %v4352 = vmul.f32 %v4336, %v4336
      %v4353 = vmul.f32 %v4337, %v4337
      %v4354 = vmul.f32 %v4338, %v4338
      %v4355 = vmul.f32 %v4339, %v4339
      %v4356 = vmul.f32 %v4340, %v4340
      %v4357 = vmul.f32 %v4341, %v4341
      %v4358 = vmul.f32 %v4342, %v4342
      %v4359 = vmul.f32 %v4343, %v4343
      %v4360 = vmul.f32 %v4344, %v4344
      %v4361 = vmul.f32 %v4345, %v4345
      %v4362 = vmul.f32 %v4346, %v4346
      %v4363 = vmul.f32 %v4347, %v4347
      %v4364 = vmul.f32 %v4348, %v4348
      %v4365 = vmul.f32 %v4349, %v4349
      %v4366 = vsel %vm769, %v4350, 0.0
      %4367 = vadd.xlane.f32.xlu0 %v4366
      %v4368 = vpop.xlane.xlu0 %4367
      %v4369 = vsel %vm769, %v4351, 0.0
      %4370 = vadd.xlane.f32.xlu0 %v4369
      %v4371 = vpop.xlane.xlu0 %4370
      %v4372 = vsel %vm769, %v4352, 0.0
      %4373 = vadd.xlane.f32.xlu0 %v4372
      %v4374 = vpop.xlane.xlu0 %4373
      %v4375 = vsel %vm769, %v4353, 0.0
      %4376 = vadd.xlane.f32.xlu0 %v4375
      %v4377 = vpop.xlane.xlu0 %4376
      %v4378 = vsel %vm769, %v4354, 0.0
      %4379 = vadd.xlane.f32.xlu0 %v4378
      %v4380 = vpop.xlane.xlu0 %4379
      %v4381 = vsel %vm769, %v4355, 0.0
      %4382 = vadd.xlane.f32.xlu0 %v4381
      %v4383 = vpop.xlane.xlu0 %4382
      %v4384 = vsel %vm769, %v4356, 0.0
      %4385 = vadd.xlane.f32.xlu0 %v4384
      %v4386 = vpop.xlane.xlu0 %4385
      %v4387 = vsel %vm769, %v4357, 0.0
      %4388 = vadd.xlane.f32.xlu0 %v4387
      %v4389 = vpop.xlane.xlu0 %4388
      %v4390 = vsel %vm769, %v4358, 0.0
      %4391 = vadd.xlane.f32.xlu0 %v4390
      %v4392 = vpop.xlane.xlu0 %4391
      %v4393 = vsel %vm769, %v4359, 0.0
      %4394 = vadd.xlane.f32.xlu0 %v4393
      %v4395 = vpop.xlane.xlu0 %4394
      %v4396 = vsel %vm769, %v4360, 0.0
      %4397 = vadd.xlane.f32.xlu0 %v4396
      %v4398 = vpop.xlane.xlu0 %4397
      %v4399 = vsel %vm769, %v4361, 0.0
      %4400 = vadd.xlane.f32.xlu0 %v4399
      %v4401 = vpop.xlane.xlu0 %4400
      %v4402 = vsel %vm769, %v4362, 0.0
      %4403 = vadd.xlane.f32.xlu0 %v4402
      %v4404 = vpop.xlane.xlu0 %4403
      %v4405 = vsel %vm769, %v4363, 0.0
      %4406 = vadd.xlane.f32.xlu0 %v4405
      %v4407 = vpop.xlane.xlu0 %4406
      %v4408 = vsel %vm769, %v4364, 0.0
      %4409 = vadd.xlane.f32.xlu0 %v4408
      %v4410 = vpop.xlane.xlu0 %4409
      %v4411 = vsel %vm769, %v4365, 0.0
      %4412 = vadd.xlane.f32.xlu0 %v4411
      %v4413 = vpop.xlane.xlu0 %4412
      %v4414 = vmul.f32 %v4368, %v818
      %v4415 = vmul.f32 %v4371, %v818
      %v4416 = vmul.f32 %v4374, %v818
      %v4417 = vmul.f32 %v4377, %v818
      %v4418 = vmul.f32 %v4380, %v818
      %v4419 = vmul.f32 %v4383, %v818
      %v4420 = vmul.f32 %v4386, %v818
      %v4421 = vmul.f32 %v4389, %v818
      %v4422 = vmul.f32 %v4392, %v818
      %v4423 = vmul.f32 %v4395, %v818
      %v4424 = vmul.f32 %v4398, %v818
      %v4425 = vmul.f32 %v4401, %v818
      %v4426 = vmul.f32 %v4404, %v818
      %v4427 = vmul.f32 %v4407, %v818
      %v4428 = vmul.f32 %v4410, %v818
      %v4429 = vmul.f32 %v4413, %v818
      %v4430 = vadd.f32 %v4414, 1e-05
      %v4431 = vadd.f32 %v4415, 1e-05
      %v4432 = vadd.f32 %v4416, 1e-05
      %v4433 = vadd.f32 %v4417, 1e-05
      %v4434 = vadd.f32 %v4418, 1e-05
      %v4435 = vadd.f32 %v4419, 1e-05
      %v4436 = vadd.f32 %v4420, 1e-05
      %v4437 = vadd.f32 %v4421, 1e-05
      %v4438 = vadd.f32 %v4422, 1e-05
      %v4439 = vadd.f32 %v4423, 1e-05
      %v4440 = vadd.f32 %v4424, 1e-05
      %v4441 = vadd.f32 %v4425, 1e-05
      %v4442 = vadd.f32 %v4426, 1e-05
      %v4443 = vadd.f32 %v4427, 1e-05
      %v4444 = vadd.f32 %v4428, 1e-05
      %v4445 = vadd.f32 %v4429, 1e-05
      %v4446 = vrsqrt.pop %v4430
      %v4447 = vrsqrt.pop %v4431
      %v4448 = vrsqrt.pop %v4432
      %v4449 = vrsqrt.pop %v4433
      %v4450 = vrsqrt.pop %v4434
      %v4451 = vrsqrt.pop %v4435
      %v4452 = vrsqrt.pop %v4436
      %v4453 = vrsqrt.pop %v4437
      %v4454 = vrsqrt.pop %v4438
      %v4455 = vrsqrt.pop %v4439
      %v4456 = vrsqrt.pop %v4440
      %v4457 = vrsqrt.pop %v4441
      %v4458 = vrsqrt.pop %v4442
      %v4459 = vrsqrt.pop %v4443
      %v4460 = vrsqrt.pop %v4444
      %v4461 = vrsqrt.pop %v4445
      %v4462 = vmul.f32 %v4334, %v4446
      %v4463 = vmul.f32 %v4335, %v4447
      %v4464 = vmul.f32 %v4336, %v4448
      %v4465 = vmul.f32 %v4337, %v4449
      %v4466 = vmul.f32 %v4338, %v4450
      %v4467 = vmul.f32 %v4339, %v4451
      %v4468 = vmul.f32 %v4340, %v4452
      %v4469 = vmul.f32 %v4341, %v4453
      %v4470 = vmul.f32 %v4342, %v4454
      %v4471 = vmul.f32 %v4343, %v4455
      %v4472 = vmul.f32 %v4344, %v4456
      %v4473 = vmul.f32 %v4345, %v4457
      %v4474 = vmul.f32 %v4346, %v4458
      %v4475 = vmul.f32 %v4347, %v4459
      %v4476 = vmul.f32 %v4348, %v4460
      %v4477 = vmul.f32 %v4349, %v4461
      %v4479 = vlaneseq
      %v4480 = vshrl.u32 %v4479, 7
      %v4481 = vsub.s32 0, %v4480
      %v4482 = vrot.slane %v4267, %v4481
      %v4484 = vmul.f32 %v4462, %v4482
      %v4485 = vmul.f32 %v4463, %v4482
      %v4486 = vmul.f32 %v4464, %v4482
      %v4487 = vmul.f32 %v4465, %v4482
      %v4488 = vmul.f32 %v4466, %v4482
      %v4489 = vmul.f32 %v4467, %v4482
      %v4490 = vmul.f32 %v4468, %v4482
      %v4491 = vmul.f32 %v4469, %v4482
      %v4492 = vmul.f32 %v4470, %v4482
      %v4493 = vmul.f32 %v4471, %v4482
      %v4494 = vmul.f32 %v4472, %v4482
      %v4495 = vmul.f32 %v4473, %v4482
      %v4496 = vmul.f32 %v4474, %v4482
      %v4497 = vmul.f32 %v4475, %v4482
      %v4498 = vmul.f32 %v4476, %v4482
      %v4499 = vmul.f32 %v4477, %v4482
      %v4501 = vlaneseq
      %v4502 = vshrl.u32 %v4501, 7
      %v4503 = vsub.s32 0, %v4502
      %v4504 = vrot.slane %v4269, %v4503
      %v4506 = vadd.f32 %v4484, %v4504
      %v4507 = vadd.f32 %v4485, %v4504
      %v4508 = vadd.f32 %v4486, %v4504
      %v4509 = vadd.f32 %v4487, %v4504
      %v4510 = vadd.f32 %v4488, %v4504
      %v4511 = vadd.f32 %v4489, %v4504
      %v4512 = vadd.f32 %v4490, %v4504
      %v4513 = vadd.f32 %v4491, %v4504
      %v4514 = vadd.f32 %v4492, %v4504
      %v4515 = vadd.f32 %v4493, %v4504
      %v4516 = vadd.f32 %v4494, %v4504
      %v4517 = vadd.f32 %v4495, %v4504
      %v4518 = vadd.f32 %v4496, %v4504
      %v4519 = vadd.f32 %v4497, %v4504
      %v4520 = vadd.f32 %v4498, %v4504
      %v4521 = vadd.f32 %v4499, %v4504
      %v4522 = vpack.c.bf16 %v4507, %v4506
      %v4523 = vpack.c.bf16 %v4509, %v4508
      %v4524 = vpack.c.bf16 %v4511, %v4510
      %v4525 = vpack.c.bf16 %v4513, %v4512
      %v4526 = vpack.c.bf16 %v4515, %v4514
      %v4527 = vpack.c.bf16 %v4517, %v4516
      %v4528 = vpack.c.bf16 %v4519, %v4518
      %v4529 = vpack.c.bf16 %v4521, %v4520
      %s4530 = scalar_lea.vmem %s14, 32
      %v4531 = vld [vmem:[%s4530] sm:$0xf]
      %v4532 = vld [vmem:[%s4530 + $0x4] sm:$0xf]
      %v4533 = vld [vmem:[%s4530 + $0x8] sm:$0xf]
      %v4534 = vld [vmem:[%s4530 + $0xc] sm:$0xf]
      %v4535 = vld [vmem:[%s4530 + $0x10] sm:$0xf]
      %v4536 = vld [vmem:[%s4530 + $0x14] sm:$0xf]
      %v4537 = vld [vmem:[%s4530 + $0x18] sm:$0xf]
      %v4538 = vld [vmem:[%s4530 + $0x1c] sm:$0xf]
      %s4539 = scalar_lea.vmem %s15, 1
      %v4540 = vld [vmem:[%s4539] sm:$0x1]
      %v4542 = vlaneseq
      %v4543 = vshrl.u32 %v4542, 7
      %v4544 = vsub.s32 0, %v4543
      %v4545 = vrot.slane %v4540, %v4544
      %v4555 = vunpack.c.l.b16 %v4531
      %v4556 = vunpack.c.l.b16 %v4532
      %v4557 = vunpack.c.l.b16 %v4533
      %v4558 = vunpack.c.l.b16 %v4534
      %v4559 = vunpack.c.l.b16 %v4535
      %v4560 = vunpack.c.l.b16 %v4536
      %v4561 = vunpack.c.l.b16 %v4537
      %v4562 = vunpack.c.l.b16 %v4538
      %v4563 = vpack.c.b16 %v4556, %v4555
      %v4564 = vpack.c.b16 %v4558, %v4557
      %v4565 = vpack.c.b16 %v4560, %v4559
      %v4566 = vpack.c.b16 %v4562, %v4561
      %v4572 = vsel %vm769, %v4522, 0
      %v4575 = vsel %vm769, %v4523, 0
      %v4578 = vsel %vm769, %v4524, 0
      %v4581 = vsel %vm769, %v4525, 0
      %v4584 = vsel %vm769, %v4526, 0
      %v4587 = vsel %vm769, %v4527, 0
      %v4590 = vsel %vm769, %v4528, 0
      %v4593 = vsel %vm769, %v4529, 0
      %4595 = vmatprep.subr.bf16.mxu0 0
      %4596 = vmatpush1.bf16.msra.mxu0 0
      %4597 = vmatprep.subr.bf16.mxu0 0
      %4598 = vmatpush1.bf16.msra.mxu0 0
      %4599 = vmatprep.subr.bf16.mxu0 0
      %4600 = vmatpush1.bf16.msra.mxu0 0
      %4601 = vmatprep.subr.bf16.mxu0 0
      %4602 = vmatpush1.bf16.msra.mxu0 0
      %4603 = vmatprep.subr.bf16.mxu0 0
      %4604 = vmatpush1.bf16.msra.mxu0 %v4566
      %4605 = vmatprep.subr.bf16.mxu0 0
      %4606 = vmatpush1.bf16.msra.mxu0 %v4565
      %4607 = vmatprep.subr.bf16.mxu0 0
      %4608 = vmatpush1.bf16.msra.mxu0 %v4564
      %4609 = vmatprep.subr.bf16.mxu0 0
      %4610 = vmatpush1.bf16.msra.mxu0 %v4563
      %4611 = vmatprep.subr.bf16.mxu0 0
      %4612 = vmatpush2.bf16.msra.mxu0 0
      %4613 = vmatprep.subr.bf16.mxu0 0
      %4614 = vmatpush2.bf16.msra.mxu0 0
      %4615 = vmatprep.subr.bf16.mxu0 0
      %4616 = vmatpush2.bf16.msra.mxu0 0
      %4617 = vmatprep.subr.bf16.mxu0 0
      %4618 = vmatpush2.bf16.msra.mxu0 0
      %4619 = vmatprep.subr.bf16.mxu0 0
      %4620 = vmatpush2.bf16.msra.mxu0 0
      %4621 = vmatprep.subr.bf16.mxu0 0
      %4622 = vmatpush2.bf16.msra.mxu0 0
      %4623 = vmatprep.subr.bf16.mxu0 0
      %4624 = vmatpush2.bf16.msra.mxu0 0
      %4625 = vmatprep.subr.bf16.mxu0 0
      %4626 = vmatpush2.bf16.msra.mxu0 0
      %4627 = vmatprep.mubr.bf16.mxu0 0
      %4628 = vmatmul.mubr.bf16.gmra.mxu0 %v4572
      %v4629 = vpop.f32.mrf.mxu0
      %v4630 = vadd.f32 %v4545, %v4629
      %v4631 = vpop.f32.mrf.mxu0
      %v4632 = vpop.f32.mrf.mxu0
      %v4633 = vadd.f32 %v4545, %v4632
      %v4634 = vpop.f32.mrf.mxu0
      %4635 = vmatprep.mubr.bf16.mxu0 0
      %4636 = vmatmul.mubr.bf16.gmra.mxu0 %v4575
      %v4637 = vpop.f32.mrf.mxu0
      %v4638 = vadd.f32 %v4545, %v4637
      %v4639 = vpop.f32.mrf.mxu0
      %v4640 = vpop.f32.mrf.mxu0
      %v4641 = vadd.f32 %v4545, %v4640
      %v4642 = vpop.f32.mrf.mxu0
      %4643 = vmatprep.mubr.bf16.mxu0 0
      %4644 = vmatmul.mubr.bf16.gmra.mxu0 %v4578
      %v4645 = vpop.f32.mrf.mxu0
      %v4646 = vadd.f32 %v4545, %v4645
      %v4647 = vpop.f32.mrf.mxu0
      %v4648 = vpop.f32.mrf.mxu0
      %v4649 = vadd.f32 %v4545, %v4648
      %v4650 = vpop.f32.mrf.mxu0
      %4651 = vmatprep.mubr.bf16.mxu0 0
      %4652 = vmatmul.mubr.bf16.gmra.mxu0 %v4581
      %v4653 = vpop.f32.mrf.mxu0
      %v4654 = vadd.f32 %v4545, %v4653
      %v4655 = vpop.f32.mrf.mxu0
      %v4656 = vpop.f32.mrf.mxu0
      %v4657 = vadd.f32 %v4545, %v4656
      %v4658 = vpop.f32.mrf.mxu0
      %4659 = vmatprep.mubr.bf16.mxu0 0
      %4660 = vmatmul.mubr.bf16.gmra.mxu0 %v4584
      %v4661 = vpop.f32.mrf.mxu0
      %v4662 = vadd.f32 %v4545, %v4661
      %v4663 = vpop.f32.mrf.mxu0
      %v4664 = vpop.f32.mrf.mxu0
      %v4665 = vadd.f32 %v4545, %v4664
      %v4666 = vpop.f32.mrf.mxu0
      %4667 = vmatprep.mubr.bf16.mxu0 0
      %4668 = vmatmul.mubr.bf16.gmra.mxu0 %v4587
      %v4669 = vpop.f32.mrf.mxu0
      %v4670 = vadd.f32 %v4545, %v4669
      %v4671 = vpop.f32.mrf.mxu0
      %v4672 = vpop.f32.mrf.mxu0
      %v4673 = vadd.f32 %v4545, %v4672
      %v4674 = vpop.f32.mrf.mxu0
      %4675 = vmatprep.mubr.bf16.mxu0 0
      %4676 = vmatmul.mubr.bf16.gmra.mxu0 %v4590
      %v4677 = vpop.f32.mrf.mxu0
      %v4678 = vadd.f32 %v4545, %v4677
      %v4679 = vpop.f32.mrf.mxu0
      %v4680 = vpop.f32.mrf.mxu0
      %v4681 = vadd.f32 %v4545, %v4680
      %v4682 = vpop.f32.mrf.mxu0
      %4683 = vmatprep.mubr.bf16.mxu0 0
      %4684 = vmatmul.mubr.bf16.gmra.mxu0 %v4593
      %v4685 = vpop.f32.mrf.mxu0
      %v4686 = vadd.f32 %v4545, %v4685
      %v4687 = vpop.f32.mrf.mxu0
      %v4688 = vpop.f32.mrf.mxu0
      %v4689 = vadd.f32 %v4545, %v4688
      %v4690 = vpop.f32.mrf.mxu0
      %4691 = vdwg.mxu0
      %v4692 = vmul.f32 %v4630, 0.5
      %v4693 = vmul.f32 %v4633, 0.5
      %v4694 = vmul.f32 %v4638, 0.5
      %v4695 = vmul.f32 %v4641, 0.5
      %v4696 = vmul.f32 %v4646, 0.5
      %v4697 = vmul.f32 %v4649, 0.5
      %v4698 = vmul.f32 %v4654, 0.5
      %v4699 = vmul.f32 %v4657, 0.5
      %v4700 = vmul.f32 %v4662, 0.5
      %v4701 = vmul.f32 %v4665, 0.5
      %v4702 = vmul.f32 %v4670, 0.5
      %v4703 = vmul.f32 %v4673, 0.5
      %v4704 = vmul.f32 %v4678, 0.5
      %v4705 = vmul.f32 %v4681, 0.5
      %v4706 = vmul.f32 %v4686, 0.5
      %v4707 = vmul.f32 %v4689, 0.5
      %v4708 = vmul.f32 %v4630, 0.044715
      %v4709 = vmul.f32 %v4633, 0.044715
      %v4710 = vmul.f32 %v4638, 0.044715
      %v4711 = vmul.f32 %v4641, 0.044715
      %v4712 = vmul.f32 %v4646, 0.044715
      %v4713 = vmul.f32 %v4649, 0.044715
      %v4714 = vmul.f32 %v4654, 0.044715
      %v4715 = vmul.f32 %v4657, 0.044715
      %v4716 = vmul.f32 %v4662, 0.044715
      %v4717 = vmul.f32 %v4665, 0.044715
      %v4718 = vmul.f32 %v4670, 0.044715
      %v4719 = vmul.f32 %v4673, 0.044715
      %v4720 = vmul.f32 %v4678, 0.044715
      %v4721 = vmul.f32 %v4681, 0.044715
      %v4722 = vmul.f32 %v4686, 0.044715
      %v4723 = vmul.f32 %v4689, 0.044715
      %v4724 = vmul.f32 %v4708, %v4630
      %v4725 = vmul.f32 %v4709, %v4633
      %v4726 = vmul.f32 %v4710, %v4638
      %v4727 = vmul.f32 %v4711, %v4641
      %v4728 = vmul.f32 %v4712, %v4646
      %v4729 = vmul.f32 %v4713, %v4649
      %v4730 = vmul.f32 %v4714, %v4654
      %v4731 = vmul.f32 %v4715, %v4657
      %v4732 = vmul.f32 %v4716, %v4662
      %v4733 = vmul.f32 %v4717, %v4665
      %v4734 = vmul.f32 %v4718, %v4670
      %v4735 = vmul.f32 %v4719, %v4673
      %v4736 = vmul.f32 %v4720, %v4678
      %v4737 = vmul.f32 %v4721, %v4681
      %v4738 = vmul.f32 %v4722, %v4686
      %v4739 = vmul.f32 %v4723, %v4689
      %v4740 = vmul.f32 %v4724, %v4630
      %v4741 = vmul.f32 %v4725, %v4633
      %v4742 = vmul.f32 %v4726, %v4638
      %v4743 = vmul.f32 %v4727, %v4641
      %v4744 = vmul.f32 %v4728, %v4646
      %v4745 = vmul.f32 %v4729, %v4649
      %v4746 = vmul.f32 %v4730, %v4654
      %v4747 = vmul.f32 %v4731, %v4657
      %v4748 = vmul.f32 %v4732, %v4662
      %v4749 = vmul.f32 %v4733, %v4665
      %v4750 = vmul.f32 %v4734, %v4670
      %v4751 = vmul.f32 %v4735, %v4673
      %v4752 = vmul.f32 %v4736, %v4678
      %v4753 = vmul.f32 %v4737, %v4681
      %v4754 = vmul.f32 %v4738, %v4686
      %v4755 = vmul.f32 %v4739, %v4689
      %v4756 = vadd.f32 %v4630, %v4740
      %v4757 = vadd.f32 %v4633, %v4741
      %v4758 = vadd.f32 %v4638, %v4742
      %v4759 = vadd.f32 %v4641, %v4743
      %v4760 = vadd.f32 %v4646, %v4744
      %v4761 = vadd.f32 %v4649, %v4745
      %v4762 = vadd.f32 %v4654, %v4746
      %v4763 = vadd.f32 %v4657, %v4747
      %v4764 = vadd.f32 %v4662, %v4748
      %v4765 = vadd.f32 %v4665, %v4749
      %v4766 = vadd.f32 %v4670, %v4750
      %v4767 = vadd.f32 %v4673, %v4751
      %v4768 = vadd.f32 %v4678, %v4752
      %v4769 = vadd.f32 %v4681, %v4753
      %v4770 = vadd.f32 %v4686, %v4754
      %v4771 = vadd.f32 %v4689, %v4755
      %v4772 = vmul.f32 %v4756, 0.7978846
      %v4773 = vmul.f32 %v4757, 0.7978846
      %v4774 = vmul.f32 %v4758, 0.7978846
      %v4775 = vmul.f32 %v4759, 0.7978846
      %v4776 = vmul.f32 %v4760, 0.7978846
      %v4777 = vmul.f32 %v4761, 0.7978846
      %v4778 = vmul.f32 %v4762, 0.7978846
      %v4779 = vmul.f32 %v4763, 0.7978846
      %v4780 = vmul.f32 %v4764, 0.7978846
      %v4781 = vmul.f32 %v4765, 0.7978846
      %v4782 = vmul.f32 %v4766, 0.7978846
      %v4783 = vmul.f32 %v4767, 0.7978846
      %v4784 = vmul.f32 %v4768, 0.7978846
      %v4785 = vmul.f32 %v4769, 0.7978846
      %v4786 = vmul.f32 %v4770, 0.7978846
      %v4787 = vmul.f32 %v4771, 0.7978846
      %v4788 = vtanh.pop %v4772
      %v4789 = vtanh.pop %v4773
      %v4790 = vtanh.pop %v4774
      %v4791 = vtanh.pop %v4775
      %v4792 = vtanh.pop %v4776
      %v4793 = vtanh.pop %v4777
      %v4794 = vtanh.pop %v4778
      %v4795 = vtanh.pop %v4779
      %v4796 = vtanh.pop %v4780
      %v4797 = vtanh.pop %v4781
      %v4798 = vtanh.pop %v4782
      %v4799 = vtanh.pop %v4783
      %v4800 = vtanh.pop %v4784
      %v4801 = vtanh.pop %v4785
      %v4802 = vtanh.pop %v4786
      %v4803 = vtanh.pop %v4787
      %v4804 = vadd.f32 %v4788, 1.0
      %v4805 = vadd.f32 %v4789, 1.0
      %v4806 = vadd.f32 %v4790, 1.0
      %v4807 = vadd.f32 %v4791, 1.0
      %v4808 = vadd.f32 %v4792, 1.0
      %v4809 = vadd.f32 %v4793, 1.0
      %v4810 = vadd.f32 %v4794, 1.0
      %v4811 = vadd.f32 %v4795, 1.0
      %v4812 = vadd.f32 %v4796, 1.0
      %v4813 = vadd.f32 %v4797, 1.0
      %v4814 = vadd.f32 %v4798, 1.0
      %v4815 = vadd.f32 %v4799, 1.0
      %v4816 = vadd.f32 %v4800, 1.0
      %v4817 = vadd.f32 %v4801, 1.0
      %v4818 = vadd.f32 %v4802, 1.0
      %v4819 = vadd.f32 %v4803, 1.0
      %v4820 = vmul.f32 %v4692, %v4804
      %v4821 = vmul.f32 %v4693, %v4805
      %v4822 = vmul.f32 %v4694, %v4806
      %v4823 = vmul.f32 %v4695, %v4807
      %v4824 = vmul.f32 %v4696, %v4808
      %v4825 = vmul.f32 %v4697, %v4809
      %v4826 = vmul.f32 %v4698, %v4810
      %v4827 = vmul.f32 %v4699, %v4811
      %v4828 = vmul.f32 %v4700, %v4812
      %v4829 = vmul.f32 %v4701, %v4813
      %v4830 = vmul.f32 %v4702, %v4814
      %v4831 = vmul.f32 %v4703, %v4815
      %v4832 = vmul.f32 %v4704, %v4816
      %v4833 = vmul.f32 %v4705, %v4817
      %v4834 = vmul.f32 %v4706, %v4818
      %v4835 = vmul.f32 %v4707, %v4819
      %v4836 = vpack.c.bf16 %v4821, %v4820
      %v4837 = vpack.c.bf16 %v4823, %v4822
      %v4838 = vpack.c.bf16 %v4825, %v4824
      %v4839 = vpack.c.bf16 %v4827, %v4826
      %v4840 = vpack.c.bf16 %v4829, %v4828
      %v4841 = vpack.c.bf16 %v4831, %v4830
      %v4842 = vpack.c.bf16 %v4833, %v4832
      %v4843 = vpack.c.bf16 %v4835, %v4834
      %s4844 = scalar_lea.vmem %s16, 64
      %v4845 = vld [vmem:[%s4844] sm:$0xf]
      %v4846 = vld [vmem:[%s4844 + $0x4] sm:$0xf]
      %v4847 = vld [vmem:[%s4844 + $0x8] sm:$0xf]
      %v4848 = vld [vmem:[%s4844 + $0xc] sm:$0xf]
      %v4849 = vld [vmem:[%s4844 + $0x10] sm:$0xf]
      %v4850 = vld [vmem:[%s4844 + $0x14] sm:$0xf]
      %v4851 = vld [vmem:[%s4844 + $0x18] sm:$0xf]
      %v4852 = vld [vmem:[%s4844 + $0x1c] sm:$0xf]
      %v4853 = vld [vmem:[%s4844 + $0x20] sm:$0xf]
      %v4854 = vld [vmem:[%s4844 + $0x24] sm:$0xf]
      %v4855 = vld [vmem:[%s4844 + $0x28] sm:$0xf]
      %v4856 = vld [vmem:[%s4844 + $0x2c] sm:$0xf]
      %v4857 = vld [vmem:[%s4844 + $0x30] sm:$0xf]
      %v4858 = vld [vmem:[%s4844 + $0x34] sm:$0xf]
      %v4859 = vld [vmem:[%s4844 + $0x38] sm:$0xf]
      %v4860 = vld [vmem:[%s4844 + $0x3c] sm:$0xf]
      %s4861 = scalar_lea.vmem %s17, 1
      %v4862 = vld [vmem:[%s4861] sm:$0x1]
      %v4864 = vlaneseq
      %v4865 = vshrl.u32 %v4864, 7
      %v4866 = vsub.s32 0, %v4865
      %v4867 = vrot.slane %v4862, %v4866
      %v4885 = vunpack.c.l.b16 %v4845
      %v4886 = vunpack.c.l.b16 %v4846
      %v4887 = vunpack.c.l.b16 %v4847
      %v4888 = vunpack.c.l.b16 %v4848
      %v4889 = vunpack.c.l.b16 %v4849
      %v4890 = vunpack.c.l.b16 %v4850
      %v4891 = vunpack.c.l.b16 %v4851
      %v4892 = vunpack.c.l.b16 %v4852
      %v4893 = vunpack.c.l.b16 %v4853
      %v4894 = vunpack.c.l.b16 %v4854
      %v4895 = vunpack.c.l.b16 %v4855
      %v4896 = vunpack.c.l.b16 %v4856
      %v4897 = vunpack.c.l.b16 %v4857
      %v4898 = vunpack.c.l.b16 %v4858
      %v4899 = vunpack.c.l.b16 %v4859
      %v4900 = vunpack.c.l.b16 %v4860
      %v4901 = vpack.c.b16 %v4886, %v4885
      %v4902 = vpack.c.b16 %v4888, %v4887
      %v4903 = vpack.c.b16 %v4890, %v4889
      %v4904 = vpack.c.b16 %v4892, %v4891
      %v4905 = vpack.c.b16 %v4894, %v4893
      %v4906 = vpack.c.b16 %v4896, %v4895
      %v4907 = vpack.c.b16 %v4898, %v4897
      %v4908 = vpack.c.b16 %v4900, %v4899
      %4917 = vmatprep.subr.bf16.mxu0 0
      %4918 = vmatpush1.bf16.msra.mxu0 %v4908
      %4919 = vmatprep.subr.bf16.mxu0 0
      %4920 = vmatpush1.bf16.msra.mxu0 %v4907
      %4921 = vmatprep.subr.bf16.mxu0 0
      %4922 = vmatpush1.bf16.msra.mxu0 %v4906
      %4923 = vmatprep.subr.bf16.mxu0 0
      %4924 = vmatpush1.bf16.msra.mxu0 %v4905
      %4925 = vmatprep.subr.bf16.mxu0 0
      %4926 = vmatpush1.bf16.msra.mxu0 %v4904
      %4927 = vmatprep.subr.bf16.mxu0 0
      %4928 = vmatpush1.bf16.msra.mxu0 %v4903
      %4929 = vmatprep.subr.bf16.mxu0 0
      %4930 = vmatpush1.bf16.msra.mxu0 %v4902
      %4931 = vmatprep.subr.bf16.mxu0 0
      %4932 = vmatpush1.bf16.msra.mxu0 %v4901
      %4933 = vmatprep.subr.bf16.mxu0 0
      %4934 = vmatpush2.bf16.msra.mxu0 0
      %4935 = vmatprep.subr.bf16.mxu0 0
      %4936 = vmatpush2.bf16.msra.mxu0 0
      %4937 = vmatprep.subr.bf16.mxu0 0
      %4938 = vmatpush2.bf16.msra.mxu0 0
      %4939 = vmatprep.subr.bf16.mxu0 0
      %4940 = vmatpush2.bf16.msra.mxu0 0
      %4941 = vmatprep.subr.bf16.mxu0 0
      %4942 = vmatpush2.bf16.msra.mxu0 0
      %4943 = vmatprep.subr.bf16.mxu0 0
      %4944 = vmatpush2.bf16.msra.mxu0 0
      %4945 = vmatprep.subr.bf16.mxu0 0
      %4946 = vmatpush2.bf16.msra.mxu0 0
      %4947 = vmatprep.subr.bf16.mxu0 0
      %4948 = vmatpush2.bf16.msra.mxu0 0
      %4949 = vmatprep.mubr.bf16.mxu0 0
      %4950 = vmatmul.mubr.bf16.gmra.mxu0 %v4836
      %v4951 = vpop.f32.mrf.mxu0
      %v4952 = vadd.f32 %v4867, %v4951
      %v4953 = vpop.f32.mrf.mxu0
      %v4954 = vpop.f32.mrf.mxu0
      %v4955 = vpop.f32.mrf.mxu0
      %4956 = vmatprep.mubr.bf16.mxu0 0
      %4957 = vmatmul.mubr.bf16.gmra.mxu0 %v4837
      %v4958 = vpop.f32.mrf.mxu0
      %v4959 = vpop.f32.mrf.mxu0
      %v4960 = vpop.f32.mrf.mxu0
      %v4961 = vpop.f32.mrf.mxu0
      %4962 = vmatprep.mubr.bf16.mxu0 0
      %4963 = vmatmul.mubr.bf16.gmra.mxu0 %v4838
      %v4964 = vpop.f32.mrf.mxu0
      %v4965 = vpop.f32.mrf.mxu0
      %v4966 = vpop.f32.mrf.mxu0
      %v4967 = vpop.f32.mrf.mxu0
      %4968 = vmatprep.mubr.bf16.mxu0 0
      %4969 = vmatmul.mubr.bf16.gmra.mxu0 %v4839
      %v4970 = vpop.f32.mrf.mxu0
      %v4971 = vpop.f32.mrf.mxu0
      %v4972 = vpop.f32.mrf.mxu0
      %v4973 = vpop.f32.mrf.mxu0
      %4974 = vmatprep.mubr.bf16.mxu0 0
      %4975 = vmatmul.mubr.bf16.gmra.mxu0 %v4840
      %v4976 = vpop.f32.mrf.mxu0
      %v4977 = vpop.f32.mrf.mxu0
      %v4978 = vpop.f32.mrf.mxu0
      %v4979 = vpop.f32.mrf.mxu0
      %4980 = vmatprep.mubr.bf16.mxu0 0
      %4981 = vmatmul.mubr.bf16.gmra.mxu0 %v4841
      %v4982 = vpop.f32.mrf.mxu0
      %v4983 = vpop.f32.mrf.mxu0
      %v4984 = vpop.f32.mrf.mxu0
      %v4985 = vpop.f32.mrf.mxu0
      %4986 = vmatprep.mubr.bf16.mxu0 0
      %4987 = vmatmul.mubr.bf16.gmra.mxu0 %v4842
      %v4988 = vpop.f32.mrf.mxu0
      %v4989 = vpop.f32.mrf.mxu0
      %v4990 = vpop.f32.mrf.mxu0
      %v4991 = vpop.f32.mrf.mxu0
      %4992 = vmatprep.mubr.bf16.mxu0 0
      %4993 = vmatmul.mubr.bf16.gmra.mxu0 %v4843
      %v4994 = vpop.f32.mrf.mxu0
      %v4995 = vpop.f32.mrf.mxu0
      %v4996 = vpop.f32.mrf.mxu0
      %v4997 = vpop.f32.mrf.mxu0
      %4998 = vdwg.mxu0
      %v4999 = vadd.f32 %v4506, %v4952
      %s5000 = scalar_lea.vmem %s18, 1
      %v5001 = vld [vmem:[%s5000] sm:$0x1]
      %s5002 = scalar_lea.vmem %s19, 1
      %v5003 = vld [vmem:[%s5002] sm:$0x1]
      %v5004 = vsel %vm769, %v4999, 0.0
      %5005 = vadd.xlane.f32.xlu0 %v5004
      %v5006 = vpop.xlane.xlu0 %5005
      %v5007 = vmul.f32 %v5006, %v818
      %v5008 = vsub.f32 %v4999, %v5007
      %v5009 = vmul.f32 %v5008, %v5008
      %v5010 = vsel %vm769, %v5009, 0.0
      %5011 = vadd.xlane.f32.xlu0 %v5010
      %v5012 = vpop.xlane.xlu0 %5011
      %v5013 = vmul.f32 %v5012, %v818
      %v5014 = vadd.f32 %v5013, 1e-05
      %v5015 = vrsqrt.pop %v5014
      %v5016 = vmul.f32 %v5008, %v5015
      %v5018 = vlaneseq
      %v5019 = vshrl.u32 %v5018, 7
      %v5020 = vsub.s32 0, %v5019
      %v5021 = vrot.slane %v5001, %v5020
      %v5023 = vmul.f32 %v5016, %v5021
      %v5025 = vlaneseq
      %v5026 = vshrl.u32 %v5025, 7
      %v5027 = vsub.s32 0, %v5026
      %v5028 = vrot.slane %v5003, %v5027
      %v5030 = vadd.f32 %v5023, %v5028
      %v5031 = vpack.c.bf16 %v5030, %v5030
      %v5032 = vld [vmem:[%s20] sm:$0xff]
      %v5033 = vld [vmem:[%s20 + $0x8] sm:$0xff]
      %v5034 = vld [vmem:[%s20 + $0x10] sm:$0xff]
      %v5035 = vld [vmem:[%s20 + $0x18] sm:$0xff]
      %v5036 = vld [vmem:[%s20 + $0x20] sm:$0xff]
      %v5037 = vld [vmem:[%s20 + $0x28] sm:$0xff]
      %v5038 = vld [vmem:[%s20 + $0x30] sm:$0xff]
      %v5039 = vld [vmem:[%s20 + $0x38] sm:$0xff]
      %v5040 = vld [vmem:[%s20 + $0x40] sm:$0xff]
      %v5041 = vld [vmem:[%s20 + $0x48] sm:$0xff]
      %v5042 = vld [vmem:[%s20 + $0x50] sm:$0xff]
      %v5043 = vld [vmem:[%s20 + $0x58] sm:$0xff]
      %v5044 = vld [vmem:[%s20 + $0x60] sm:$0xff]
      %v5045 = vld [vmem:[%s20 + $0x68] sm:$0xff]
      %v5046 = vld [vmem:[%s20 + $0x70] sm:$0xff]
      %v5047 = vld [vmem:[%s20 + $0x78] sm:$0xff]
      %v5048 = vld [vmem:[%s21] sm:$0xf]
      %v5065 = vunpack.c.l.b16 %v5032
      %v5066 = vunpack.c.h.b16 %v5032
      %v5067 = vunpack.c.l.b16 %v5033
      %v5068 = vunpack.c.h.b16 %v5033
      %v5069 = vunpack.c.l.b16 %v5034
      %v5070 = vunpack.c.h.b16 %v5034
      %v5071 = vunpack.c.l.b16 %v5035
      %v5072 = vunpack.c.h.b16 %v5035
      %v5073 = vunpack.c.l.b16 %v5036
      %v5074 = vunpack.c.h.b16 %v5036
      %v5075 = vunpack.c.l.b16 %v5037
      %v5076 = vunpack.c.h.b16 %v5037
      %v5077 = vunpack.c.l.b16 %v5038
      %v5078 = vunpack.c.h.b16 %v5038
      %v5079 = vunpack.c.l.b16 %v5039
      %v5080 = vunpack.c.h.b16 %v5039
      %v5081 = vunpack.c.l.b16 %v5040
      %v5082 = vunpack.c.h.b16 %v5040
      %v5083 = vunpack.c.l.b16 %v5041
      %v5084 = vunpack.c.h.b16 %v5041
      %v5085 = vunpack.c.l.b16 %v5042
      %v5086 = vunpack.c.h.b16 %v5042
      %v5087 = vunpack.c.l.b16 %v5043
      %v5088 = vunpack.c.h.b16 %v5043
      %v5089 = vunpack.c.l.b16 %v5044
      %v5090 = vunpack.c.h.b16 %v5044
      %v5091 = vunpack.c.l.b16 %v5045
      %v5092 = vunpack.c.h.b16 %v5045
      %v5093 = vunpack.c.l.b16 %v5046
      %v5094 = vunpack.c.h.b16 %v5046
      %v5095 = vunpack.c.l.b16 %v5047
      %v5096 = vunpack.c.h.b16 %v5047
      %v5097 = vpack.c.b16 %v5069, %v5065
      %v5098 = vpack.c.b16 %v5070, %v5066
      %v5099 = vpack.c.b16 %v5071, %v5067
      %v5100 = vpack.c.b16 %v5072, %v5068
      %v5101 = vpack.c.b16 %v5077, %v5073
      %v5102 = vpack.c.b16 %v5078, %v5074
      %v5103 = vpack.c.b16 %v5079, %v5075
      %v5104 = vpack.c.b16 %v5080, %v5076
      %v5105 = vpack.c.b16 %v5085, %v5081
      %v5106 = vpack.c.b16 %v5086, %v5082
      %v5107 = vpack.c.b16 %v5087, %v5083
      %v5108 = vpack.c.b16 %v5088, %v5084
      %v5109 = vpack.c.b16 %v5093, %v5089
      %v5110 = vpack.c.b16 %v5094, %v5090
      %v5111 = vpack.c.b16 %v5095, %v5091
      %v5112 = vpack.c.b16 %v5096, %v5092
      %v5130 = vlaneseq
      %v5131 = vshrl.u32 %v5130, 7
      %v5132 = vsub.s32 0, %v5131
      %v5133 = vrot.slane %v5048, %v5132
      %v5134 = vlaneseq
      %v5135 = vshrl.u32 %v5134, 7
      %v5136 = vsub.s32 1, %v5135
      %v5137 = vrot.slane %v5048, %v5136
      %v5138 = vlaneseq
      %v5139 = vshrl.u32 %v5138, 7
      %v5140 = vsub.s32 2, %v5139
      %v5141 = vrot.slane %v5048, %v5140
      %v5142 = vlaneseq
      %v5143 = vshrl.u32 %v5142, 7
      %v5144 = vsub.s32 3, %v5143
      %v5145 = vrot.slane %v5048, %v5144
      %v5151 = vsel %vm769, %v5031, 0
      %5153 = vmatprep.subr.bf16.mxu0 0
      %5154 = vmatpush1.bf16.msra.mxu0 0
      %5155 = vmatprep.subr.bf16.mxu0 0
      %5156 = vmatpush1.bf16.msra.mxu0 0
      %5157 = vmatprep.subr.bf16.mxu0 0
      %5158 = vmatpush1.bf16.msra.mxu0 0
      %5159 = vmatprep.subr.bf16.mxu0 0
      %5160 = vmatpush1.bf16.msra.mxu0 0
      %5161 = vmatprep.subr.bf16.mxu0 %v5110
      %5162 = vmatpush1.bf16.msra.mxu0 %v5109
      %5163 = vmatprep.subr.bf16.mxu0 %v5106
      %5164 = vmatpush1.bf16.msra.mxu0 %v5105
      %5165 = vmatprep.subr.bf16.mxu0 %v5102
      %5166 = vmatpush1.bf16.msra.mxu0 %v5101
      %5167 = vmatprep.subr.bf16.mxu0 %v5098
      %5168 = vmatpush1.bf16.msra.mxu0 %v5097
      %5169 = vmatprep.subr.bf16.mxu0 0
      %5170 = vmatpush2.bf16.msra.mxu0 0
      %5171 = vmatprep.subr.bf16.mxu0 0
      %5172 = vmatpush2.bf16.msra.mxu0 0
      %5173 = vmatprep.subr.bf16.mxu0 0
      %5174 = vmatpush2.bf16.msra.mxu0 0
      %5175 = vmatprep.subr.bf16.mxu0 0
      %5176 = vmatpush2.bf16.msra.mxu0 0
      %5177 = vmatprep.subr.bf16.mxu0 0
      %5178 = vmatpush2.bf16.msra.mxu0 0
      %5179 = vmatprep.subr.bf16.mxu0 0
      %5180 = vmatpush2.bf16.msra.mxu0 0
      %5181 = vmatprep.subr.bf16.mxu0 0
      %5182 = vmatpush2.bf16.msra.mxu0 0
      %5183 = vmatprep.subr.bf16.mxu0 0
      %5184 = vmatpush2.bf16.msra.mxu0 0
      %5185 = vmatprep.mubr.bf16.mxu0 0
      %5186 = vmatmul.mubr.bf16.gmra.mxu0 %v5151
      %v5187 = vpop.f32.mrf.mxu0
      %v5188 = vadd.f32 %v5133, %v5187
      %v5189 = vpop.f32.mrf.mxu0
      %v5190 = vadd.f32 %v5137, %v5189
      %v5191 = vpop.f32.mrf.mxu0
      %v5192 = vpop.f32.mrf.mxu0
      %5193 = vdwg.mxu0
      %5194 = vmatprep.subr.bf16.mxu0 0
      %5195 = vmatpush1.bf16.msra.mxu0 0
      %5196 = vmatprep.subr.bf16.mxu0 0
      %5197 = vmatpush1.bf16.msra.mxu0 0
      %5198 = vmatprep.subr.bf16.mxu0 0
      %5199 = vmatpush1.bf16.msra.mxu0 0
      %5200 = vmatprep.subr.bf16.mxu0 0
      %5201 = vmatpush1.bf16.msra.mxu0 0
      %5202 = vmatprep.subr.bf16.mxu0 %v5112
      %5203 = vmatpush1.bf16.msra.mxu0 %v5111
      %5204 = vmatprep.subr.bf16.mxu0 %v5108
      %5205 = vmatpush1.bf16.msra.mxu0 %v5107
      %5206 = vmatprep.subr.bf16.mxu0 %v5104
      %5207 = vmatpush1.bf16.msra.mxu0 %v5103
      %5208 = vmatprep.subr.bf16.mxu0 %v5100
      %5209 = vmatpush1.bf16.msra.mxu0 %v5099
      %5210 = vmatprep.subr.bf16.mxu0 0
      %5211 = vmatpush2.bf16.msra.mxu0 0
      %5212 = vmatprep.subr.bf16.mxu0 0
      %5213 = vmatpush2.bf16.msra.mxu0 0
      %5214 = vmatprep.subr.bf16.mxu0 0
      %5215 = vmatpush2.bf16.msra.mxu0 0
      %5216 = vmatprep.subr.bf16.mxu0 0
      %5217 = vmatpush2.bf16.msra.mxu0 0
      %5218 = vmatprep.subr.bf16.mxu0 0
      %5219 = vmatpush2.bf16.msra.mxu0 0
      %5220 = vmatprep.subr.bf16.mxu0 0
      %5221 = vmatpush2.bf16.msra.mxu0 0
      %5222 = vmatprep.subr.bf16.mxu0 0
      %5223 = vmatpush2.bf16.msra.mxu0 0
      %5224 = vmatprep.subr.bf16.mxu0 0
      %5225 = vmatpush2.bf16.msra.mxu0 0
      %5226 = vmatprep.mubr.bf16.mxu0 0
      %5227 = vmatmul.mubr.bf16.gmra.mxu0 %v5151
      %v5228 = vpop.f32.mrf.mxu0
      %v5229 = vadd.f32 %v5141, %v5228
      %v5230 = vpop.f32.mrf.mxu0
      %v5231 = vadd.f32 %v5145, %v5230
      %v5232 = vpop.f32.mrf.mxu0
      %v5233 = vpop.f32.mrf.mxu0
      %5234 = vdwg.mxu0
      %v5235 = vmax.f32 %v5188, 0.0
      %v5236 = vmax.f32 %v5190, 0.0
      %v5237 = vmax.f32 %v5229, 0.0
      %v5238 = vmax.f32 %v5231, 0.0
      %v5239 = vld [vmem:[%s22] sm:$0xf]
      %v5240 = vunpack.c.l.bf16 %v5239
      %v5242 = vlaneseq
      %v5243 = vshrl.u32 %v5242, 7
      %v5244 = vsub.s32 0, %v5243
      %v5245 = vrot.slane %v5240, %v5244
      %v5246 = vlaneseq
      %v5247 = vshrl.u32 %v5246, 7
      %v5248 = vsub.s32 2, %v5247
      %v5249 = vrot.slane %v5240, %v5248
      %v5250 = vlaneseq
      %v5251 = vshrl.u32 %v5250, 7
      %v5252 = vsub.s32 4, %v5251
      %v5253 = vrot.slane %v5240, %v5252
      %v5254 = vlaneseq
      %v5255 = vshrl.u32 %v5254, 7
      %v5256 = vsub.s32 6, %v5255
      %v5257 = vrot.slane %v5240, %v5256
      %v5262 = vmul.f32 %v5235, %v5245
      %v5263 = vmul.f32 %v5236, %v5249
      %v5264 = vmul.f32 %v5237, %v5253
      %v5265 = vmul.f32 %v5238, %v5257
      %vm5266 = vcmask 1040384
      %v5267 = vsel %vm5266, %v5262, 0.0
      %v5268 = vsel %vm5266, %v5263, 0.0
      %v5269 = vadd.f32 %v5267, %v5268
      %v5270 = vsel %vm5266, %v5264, 0.0
      %v5271 = vadd.f32 %v5269, %v5270
      %v5272 = vsel %vm5266, %v5265, 0.0
      %v5273 = vadd.f32 %v5271, %v5272
      %5274 = vadd.xlane.f32.xlu0 %v5273
      %v5275 = vpop.xlane.xlu0 %5274
      %v5276 = vld [vmem:[#allocation2] sm:$0x1]
      %v5277 = vadd.f32 %v5275, %v5276
      %5279 = vset.pattern.permute.xlu0 0
      %5280 = vperm.xlu0 %5279, %v5277
      %v5281 = vpop.permute.xlu0 %5280
      %5283 = vst [vmem:[%s749] sm:$0x1] %v5281
      %p5284 = scmp.lt.s32.totalorder %s37, 1
      %s5285 = scalar_select %p5284, %s37, 1
      %s5286 = scalar_lea.vmem %s24, %s5285
      // Predicated region
      $region117: #{single_head_longformer_forward.1} parent=115 // pred_check
        %p5287 = pneg %p569
      $region118: #{single_head_longformer_forward.1} parent=115 // pred_check_branch
        %5289 = sbr.rel (%p5287) target = $region120
      $region119: #{single_head_longformer_forward.1} parent=115 // pred_region
        _
      $region120: #{single_head_longformer_forward.1} parent=115 // pred_fallthru
        _
    $region116: #{single_head_longformer_forward.1} parent=5 // pred_fallthru
      _
    %p5290 = scmp.le.s32.totalorder 2, %s32
    // Predicated region
    $region121: #{single_head_longformer_forward.1} parent=5 // pred_check
      %p5291 = pneg %p5290
    $region122: #{single_head_longformer_forward.1} parent=5 // pred_check_branch
      %5293 = sbr.rel (%p5291) target = $region124
    $region123: #{single_head_longformer_forward.1} parent=5 // pred_region
      %s5294 = ssub.s32 %s32, 2
      // Predicated region
      $region125: #{single_head_longformer_forward.1} parent=123 // pred_check
        %p5295 = pneg %p575
      $region126: #{single_head_longformer_forward.1} parent=123 // pred_check_branch
        %5297 = sbr.rel (%p5295) target = $region128
      $region127: #{single_head_longformer_forward.1} parent=123 // pred_region
        %p5298 = scmp.lt.s32.totalorder %s38, 1
        %s5299 = scalar_select %p5298, %s38, 1
        %s5300 = scalar_lea.vmem %s24, %s5299
      $region128: #{single_head_longformer_forward.1} parent=123 // pred_fallthru
        _
    $region124: #{single_head_longformer_forward.1} parent=5 // pred_fallthru
      _
  $region6: #{single_head_longformer_forward.1} parent=0 // loop_footer
    %s36 = sadd.s32 1, %s32
  $region7: #{single_head_longformer_forward.1} parent=0 // loop_footer_branch
    %31 = sbr.rel target = $region3
  $region8: #{single_head_longformer_forward.1} parent=0 // loop_exit
    _

</llo_original>
